<compile_context>
chip_gen: v7x
topology: tpu7x:2x2x1
jax: 0.10.0
libtpu: 0.0.40
codegen_flags: <defaults>
</compile_context>

<pallas_src>
import functools

import jax
import jax.numpy as jnp
from jax import lax
from jax.experimental import pallas as pl
from jax.experimental.pallas import tpu as pltpu


# ----------------------------------------------------------------------------
# helpers
# ----------------------------------------------------------------------------
def _round_up(x, m):
    return ((x + m - 1) // m) * m


def _fused_vmem_bytes(M, Cin, Cout):
    """Rough VMEM footprint of the single-block fused kernel."""
    x_bytes = M * Cin * 2            # bf16 activations
    o_bytes = M * Cout * 4           # f32 output
    # 2x for pipelining buffers + f32 temporaries (y, y-mean) + headroom
    return 2 * (x_bytes + o_bytes) + 3 * M * Cout * 4 + (2 << 20)


_FUSED_VMEM_CAP = 48 << 20           # safe on v5e/v6e (128 MiB) and v7x (64 MiB)


# ----------------------------------------------------------------------------
# Fused kernel: 1x1 conv (bf16 MXU, f32 acc) + bias + BatchNorm(batch stats,
# training mode, biased var) + ReLU.  Whole problem lives in one VMEM block,
# so the BN reduction needs no cross-tile pass and y never touches HBM.
# ----------------------------------------------------------------------------
def _up_fused_kernel(x_ref, w_ref, b_ref, g_ref, be_ref, o_ref, *, eps):
    # x_ref: (M, Cin) bf16, w_ref: (Cin, Cout) bf16, b/g/be: (1, Cout) f32
    y = jnp.dot(x_ref[...], w_ref[...], preferred_element_type=jnp.float32)
    y = y + b_ref[...]                                   # fold conv bias
    m = y.shape[0]
    mean = jnp.sum(y, axis=0, keepdims=True) * (1.0 / m)
    d = y - mean
    var = jnp.sum(d * d, axis=0, keepdims=True) * (1.0 / m)   # stable, biased
    scale = g_ref[...] * lax.rsqrt(var + eps)
    o_ref[...] = jnp.maximum(d * scale + be_ref[...], 0.0)


def _conv1x1_bn_relu_fused(x_flat, w, b, g, be, eps):
    M, Cin = x_flat.shape
    Cout = w.shape[1]
    vmem_limit = int(min(max(_fused_vmem_bytes(M, Cin, Cout), 24 << 20),
                         _FUSED_VMEM_CAP))
    kernel = functools.partial(_up_fused_kernel, eps=eps)
    vec = lambda v: v.reshape(1, Cout).astype(jnp.float32)
    return pl.pallas_call(
        kernel,
        out_shape=jax.ShapeDtypeStruct((M, Cout), jnp.float32),
        grid=(1,),
        in_specs=[pl.BlockSpec((M, Cin), lambda i: (0, 0)),
                  pl.BlockSpec((Cin, Cout), lambda i: (0, 0)),
                  pl.BlockSpec((1, Cout), lambda i: (0, 0)),
                  pl.BlockSpec((1, Cout), lambda i: (0, 0)),
                  pl.BlockSpec((1, Cout), lambda i: (0, 0))],
        out_specs=pl.BlockSpec((M, Cout), lambda i: (0, 0)),
        compiler_params=pltpu.CompilerParams(
            dimension_semantics=("arbitrary",),
            vmem_limit_bytes=vmem_limit),
    )(x_flat.astype(jnp.bfloat16), w.astype(jnp.bfloat16),
      vec(b), vec(g), vec(be))


# ----------------------------------------------------------------------------
# Tiled fallback for large inputs: matmul+bias kernel (parallel over M tiles,
# uses both v7x TensorCores), tiny plain-JAX stats, then affine+ReLU kernel.
# ----------------------------------------------------------------------------
def _matmul_bias_kernel(x_ref, w_ref, b_ref, y_ref):
    y_ref[...] = jnp.dot(x_ref[...], w_ref[...],
                         preferred_element_type=jnp.float32) + b_ref[...]


def _affine_relu_kernel(y_ref, sc_ref, sh_ref, o_ref):
    o_ref[...] = jnp.maximum(y_ref[...] * sc_ref[...] + sh_ref[...], 0.0)


def _conv1x1_bn_relu_tiled(x_flat, w, b, g, be, eps, tm=1024):
    M, Cin = x_flat.shape
    Cout = w.shape[1]
    Mp = _round_up(M, tm)
    xp = jnp.pad(x_flat, ((0, Mp - M), (0, 0))).astype(jnp.bfloat16)
    grid = (Mp // tm,)
    cp = pltpu.CompilerParams(dimension_semantics=("parallel",))
    vec = lambda v: v.reshape(1, Cout).astype(jnp.float32)

    y = pl.pallas_call(
        _matmul_bias_kernel,
        out_shape=jax.ShapeDtypeStruct((Mp, Cout), jnp.float32),
        grid=grid,
        in_specs=[pl.BlockSpec((tm, Cin), lambda i: (i, 0)),
                  pl.BlockSpec((Cin, Cout), lambda i: (0, 0)),
                  pl.BlockSpec((1, Cout), lambda i: (0, 0))],
        out_specs=pl.BlockSpec((tm, Cout), lambda i: (i, 0)),
        compiler_params=cp,
    )(xp, w.astype(jnp.bfloat16), vec(b))

    yv = y[:M]
    mean = jnp.mean(yv, axis=0)
    var = jnp.mean(jnp.square(yv - mean[None, :]), axis=0)   # stable, biased
    scale = g / jnp.sqrt(var + eps)
    shift = be - mean * scale

    out = pl.pallas_call(
        _affine_relu_kernel,
        out_shape=jax.ShapeDtypeStruct((Mp, Cout), jnp.float32),
        grid=grid,
        in_specs=[pl.BlockSpec((tm, Cout), lambda i: (i, 0)),
                  pl.BlockSpec((1, Cout), lambda i: (0, 0)),
                  pl.BlockSpec((1, Cout), lambda i: (0, 0))],
        out_specs=pl.BlockSpec((tm, Cout), lambda i: (i, 0)),
        compiler_params=cp,
    )(y, vec(scale), vec(shift))
    return out[:M]


def conv1x1_bn_relu(x_flat, w, b, g, be, eps=1e-5):
    M, Cin = x_flat.shape
    Cout = w.shape[1]
    if _fused_vmem_bytes(M, Cin, Cout) <= _FUSED_VMEM_CAP:
        return _conv1x1_bn_relu_fused(x_flat, w, b, g, be, eps)
    return _conv1x1_bn_relu_tiled(x_flat, w, b, g, be, eps)


# ----------------------------------------------------------------------------
# Bilinear x2 upsample (align_corners=True) as separable fixed-matrix
# contractions (no gathers).  Plain-JAX glue feeding the fused Pallas kernel.
# ----------------------------------------------------------------------------
def _upsample_matrix(n_in, n_out):
    if n_in == 1:
        return jnp.ones((n_out, 1), jnp.float32)
    t = jnp.arange(n_out, dtype=jnp.float32) * (float(n_in - 1) / float(n_out - 1))
    i0 = jnp.clip(jnp.floor(t), 0.0, float(n_in - 2))
    frac = t - i0
    i0i = i0.astype(jnp.int32)
    cols = jnp.arange(n_in, dtype=jnp.int32)
    w0 = jnp.where(cols[None, :] == i0i[:, None], 1.0 - frac[:, None], 0.0)
    w1 = jnp.where(cols[None, :] == (i0i + 1)[:, None], frac[:, None], 0.0)
    return (w0 + w1).astype(jnp.float32)


def upsample_bilinear_x2(x):
    """nn.Upsample(scale_factor=2, mode='bilinear', align_corners=True), NHWC."""
    N, H, W, C = x.shape
    uh = _upsample_matrix(H, 2 * H)      # (2H, H)
    uw = _upsample_matrix(W, 2 * W)      # (2W, W)
    t = jnp.einsum('oh,nhwc->nowc', uh, x)
    return jnp.einsum('pw,nowc->nopc', uw, t)   # (N, 2H, 2W, C)


# ----------------------------------------------------------------------------
# Up forward (transpose=False path of the PyTorch module)
# ----------------------------------------------------------------------------
# TODO(synk): transpose=True branch (nn.ConvTranspose2d k=2 s=2) not implemented.
def up_forward(params, x_nchw):
    x = jnp.transpose(x_nchw, (0, 2, 3, 1)).astype(jnp.float32)   # -> NHWC
    N, H, W, Cin = x.shape
    xu = upsample_bilinear_x2(x)                                  # (N,2H,2W,Cin)
    Ho, Wo = 2 * H, 2 * W
    xf = xu.reshape(N * Ho * Wo, Cin)
    y = conv1x1_bn_relu(xf, params["w"], params["b"], params["g"], params["be"])
    y = y.reshape(N, Ho, Wo, -1)
    return jnp.transpose(y, (0, 3, 1, 2))                          # -> NCHW


# ----------------------------------------------------------------------------
# Parameter init (deterministic; conv weight kaiming-normal, PyTorch-style
# conv bias, fresh BatchNorm: gamma=1, beta=0, eps=1e-5, train-mode stats)
# ----------------------------------------------------------------------------
def init_up_params(key, in_channel, out_channel):
    k_w, k_b = jax.random.split(key)
    fan_in = in_channel                          # 1x1 conv
    w = (jax.random.normal(k_w, (in_channel, out_channel), jnp.float32)
         * jnp.sqrt(2.0 / fan_in))               # stored in (Cin, Cout) matmul layout
    bound = 1.0 / float(fan_in) ** 0.5
    b = jax.random.uniform(k_b, (out_channel,), jnp.float32, -bound, bound)
    return {"w": w, "b": b,
            "g": jnp.ones((out_channel,), jnp.float32),
            "be": jnp.zeros((out_channel,), jnp.float32)}


# ----------------------------------------------------------------------------
if __name__ == "__main__":
    key = jax.random.PRNGKey(0)
    k_params, k_x = jax.random.split(key)
    in_ch, out_ch = 32, 16
    params = init_up_params(k_params, in_ch, out_ch)
    # Small input consistent with the module: NCHW (2, 32, 16, 16)
    x = jax.random.normal(k_x, (2, in_ch, 16, 16), jnp.float32)

    fwd = jax.jit(up_forward)
    out = jax.block_until_ready(fwd(params, x))

    assert out.shape == (2, out_ch, 32, 32), out.shape
    assert bool(jnp.all(jnp.isfinite(out)))
    assert bool(jnp.all(out >= 0.0))     # ReLU output
    print("KERNEL_OK")
</pallas_src>

<mosaic_0001>
module attributes {stable_mosaic.version = 11 : i64} {
  func.func @_up_fused_kernel(%arg0: i32, %arg1: memref<2048x32xbf16, #tpu.memory_space<vmem>>, %arg2: memref<32x16xbf16, #tpu.memory_space<vmem>>, %arg3: memref<1x16xf32, #tpu.memory_space<vmem>>, %arg4: memref<1x16xf32, #tpu.memory_space<vmem>>, %arg5: memref<1x16xf32, #tpu.memory_space<vmem>>, %arg6: memref<2048x16xf32, #tpu.memory_space<vmem>>) attributes {dimension_semantics = [#tpu.dimension_semantics<arbitrary>], iteration_bounds = array<i64: 1>, scalar_prefetch = 0 : i64, scratch_operands = 0 : i64, tpu.core_type = #tpu.core_type<tc>, window_params = [{pipeline_mode = #tpu.pipeline_mode<synchronous>, transform_indices = @transform_0, window_bounds = array<i64: 2048, 32>}, {pipeline_mode = #tpu.pipeline_mode<synchronous>, transform_indices = @transform_1, window_bounds = array<i64: 32, 16>}, {pipeline_mode = #tpu.pipeline_mode<synchronous>, transform_indices = @transform_2, window_bounds = array<i64: 1, 16>}, {pipeline_mode = #tpu.pipeline_mode<synchronous>, transform_indices = @transform_3, window_bounds = array<i64: 1, 16>}, {pipeline_mode = #tpu.pipeline_mode<synchronous>, transform_indices = @transform_4, window_bounds = array<i64: 1, 16>}, {pipeline_mode = #tpu.pipeline_mode<synchronous>, transform_indices = @transform_5, window_bounds = array<i64: 2048, 16>}]} {
    %c0 = arith.constant 0 : index
    %c0_0 = arith.constant 0 : index
    %0 = vector.load %arg1[%c0, %c0_0] : memref<2048x32xbf16, #tpu.memory_space<vmem>>, vector<2048x32xbf16>
    %c0_1 = arith.constant 0 : index
    %c0_2 = arith.constant 0 : index
    %1 = vector.load %arg2[%c0_1, %c0_2] : memref<32x16xbf16, #tpu.memory_space<vmem>>, vector<32x16xbf16>
    %cst = arith.constant dense<0.000000e+00> : vector<2048x16xf32>
    %2 = tpu.matmul %0, %1, %cst {dimension_numbers = #tpu.dot_dimension_numbers<[1], [0], [0], [1], [0, 0, 1, 1], [], []>} : vector<2048x32xbf16>, vector<32x16xbf16>, vector<2048x16xf32> -> vector<2048x16xf32>
    %c0_3 = arith.constant 0 : index
    %c0_4 = arith.constant 0 : index
    %3 = vector.load %arg3[%c0_3, %c0_4] : memref<1x16xf32, #tpu.memory_space<vmem>>, vector<1x16xf32>
    %4 = vector.broadcast %3 : vector<1x16xf32> to vector<2048x16xf32>
    %5 = arith.addf %2, %4 : vector<2048x16xf32>
    %cst_5 = arith.constant dense<0.000000e+00> : vector<16xf32>
    %6 = vector.multi_reduction <add>, %5, %cst_5 [0] : vector<2048x16xf32> to vector<16xf32>
    %7 = vector.shape_cast %6 : vector<16xf32> to vector<1x16xf32>
    %cst_6 = arith.constant 4.8828125E-4 : f32
    %8 = vector.broadcast %cst_6 : f32 to vector<1x16xf32>
    %9 = arith.mulf %7, %8 : vector<1x16xf32>
    %10 = vector.broadcast %9 : vector<1x16xf32> to vector<2048x16xf32>
    %11 = arith.subf %5, %10 : vector<2048x16xf32>
    %12 = arith.mulf %11, %11 : vector<2048x16xf32>
    %cst_7 = arith.constant dense<0.000000e+00> : vector<16xf32>
    %13 = vector.multi_reduction <add>, %12, %cst_7 [0] : vector<2048x16xf32> to vector<16xf32>
    %14 = vector.shape_cast %13 : vector<16xf32> to vector<1x16xf32>
    %cst_8 = arith.constant 4.8828125E-4 : f32
    %15 = vector.broadcast %cst_8 : f32 to vector<1x16xf32>
    %16 = arith.mulf %14, %15 : vector<1x16xf32>
    %c0_9 = arith.constant 0 : index
    %c0_10 = arith.constant 0 : index
    %17 = vector.load %arg4[%c0_9, %c0_10] : memref<1x16xf32, #tpu.memory_space<vmem>>, vector<1x16xf32>
    %cst_11 = arith.constant 9.99999974E-6 : f32
    %18 = vector.broadcast %cst_11 : f32 to vector<1x16xf32>
    %19 = arith.addf %16, %18 : vector<1x16xf32>
    %20 = math.rsqrt %19 : vector<1x16xf32>
    %21 = arith.mulf %17, %20 : vector<1x16xf32>
    %22 = vector.broadcast %21 : vector<1x16xf32> to vector<2048x16xf32>
    %23 = arith.mulf %11, %22 : vector<2048x16xf32>
    %c0_12 = arith.constant 0 : index
    %c0_13 = arith.constant 0 : index
    %24 = vector.load %arg5[%c0_12, %c0_13] : memref<1x16xf32, #tpu.memory_space<vmem>>, vector<1x16xf32>
    %25 = vector.broadcast %24 : vector<1x16xf32> to vector<2048x16xf32>
    %26 = arith.addf %23, %25 : vector<2048x16xf32>
    %cst_14 = arith.constant 0.000000e+00 : f32
    %27 = vector.broadcast %cst_14 : f32 to vector<2048x16xf32>
    %28 = arith.maximumf %26, %27 : vector<2048x16xf32>
    %c0_15 = arith.constant 0 : index
    %c0_16 = arith.constant 0 : index
    %29 = vector.load %arg6[%c0_15, %c0_16] : memref<2048x16xf32, #tpu.memory_space<vmem>>, vector<2048x16xf32>
    tpu.vector_store %arg6[%c0_15, %c0_16], %28 {strides = array<i32>} : memref<2048x16xf32, #tpu.memory_space<vmem>>, vector<2048x16xf32>,
    return
  }
  func.func @transform_0(%arg0: i32) -> (i32, i32) {
    %c0_i32 = arith.constant 0 : i32
    %c0_i32_0 = arith.constant 0 : i32
    %c0_i32_1 = arith.constant 0 : i32
    return %c0_i32, %c0_i32_0 : i32, i32
  }
  func.func @transform_1(%arg0: i32) -> (i32, i32) {
    %c0_i32 = arith.constant 0 : i32
    %c0_i32_0 = arith.constant 0 : i32
    %c0_i32_1 = arith.constant 0 : i32
    return %c0_i32, %c0_i32_0 : i32, i32
  }
  func.func @transform_2(%arg0: i32) -> (i32, i32) {
    %c0_i32 = arith.constant 0 : i32
    %c0_i32_0 = arith.constant 0 : i32
    %c0_i32_1 = arith.constant 0 : i32
    return %c0_i32, %c0_i32_0 : i32, i32
  }
  func.func @transform_3(%arg0: i32) -> (i32, i32) {
    %c0_i32 = arith.constant 0 : i32
    %c0_i32_0 = arith.constant 0 : i32
    %c0_i32_1 = arith.constant 0 : i32
    return %c0_i32, %c0_i32_0 : i32, i32
  }
  func.func @transform_4(%arg0: i32) -> (i32, i32) {
    %c0_i32 = arith.constant 0 : i32
    %c0_i32_0 = arith.constant 0 : i32
    %c0_i32_1 = arith.constant 0 : i32
    return %c0_i32, %c0_i32_0 : i32, i32
  }
  func.func @transform_5(%arg0: i32) -> (i32, i32) {
    %c0_i32 = arith.constant 0 : i32
    %c0_i32_0 = arith.constant 0 : i32
    %c0_i32_1 = arith.constant 0 : i32
    return %c0_i32, %c0_i32_0 : i32, i32
  }
}

</mosaic_0001>

<llo_original>
// kernel: up_forward.1
$region0: #{up_forward.1}
  #allocation0 [shape = 'u32[]', space=smem, size = 0x4, offset = 0x4, fixed_abs, tag = 'smem constant byte address 0x4 - core index']
  #allocation1 [shape = 'u32[144,128]{1,0:T(1,128)}', space=vmem, size = 0x12000, scoped, tag = 'internal scratch']
  %s0 = inlined_call_operand.vmem [shape: bf16[2048,32], index: 0, kind: input, shape index: {}]
  %s1 = inlined_call_operand.vmem [shape: bf16[32,16], index: 1, kind: input, shape index: {}]
  %s2 = inlined_call_operand.vmem [shape: f32[1,16], index: 2, kind: input, shape index: {}]
  %s3 = inlined_call_operand.vmem [shape: f32[1,16], index: 3, kind: input, shape index: {}]
  %s4 = inlined_call_operand.vmem [shape: f32[1,16], index: 4, kind: input, shape index: {}]
  %s5 = inlined_call_operand.vmem [shape: f32[2048,16], index: 5, kind: output, shape index: {}]
  %s6 = sld [smem:[#allocation0]]
  $region30: #{up_forward.1} parent=0
    _
  %s8 = ssub.s32 1, %s6
  %s9 = scalar_select 0, %s8, %s6
  // Predicated region
  $region2: #{up_forward.1} parent=0 // pred_check
    _
  $region3: #{up_forward.1} parent=0 // pred_check_branch
    %11 = sbr.rel (0) target = $region5
  $region4: #{up_forward.1} parent=0 // pred_region
    _
  $region5: #{up_forward.1} parent=0 // pred_fallthru
    _
  // Predicated region
  $region6: #{up_forward.1} parent=0 // pred_check
    _
  $region7: #{up_forward.1} parent=0 // pred_check_branch
    %13 = sbr.rel (0) target = $region9
  $region8: #{up_forward.1} parent=0 // pred_region
    _
  $region9: #{up_forward.1} parent=0 // pred_fallthru
    _
  // Predicated region
  $region10: #{up_forward.1} parent=0 // pred_check
    _
  $region11: #{up_forward.1} parent=0 // pred_check_branch
    %15 = sbr.rel (0) target = $region13
  $region12: #{up_forward.1} parent=0 // pred_region
    _
  $region13: #{up_forward.1} parent=0 // pred_fallthru
    _
  // Predicated region
  $region14: #{up_forward.1} parent=0 // pred_check
    _
  $region15: #{up_forward.1} parent=0 // pred_check_branch
    %17 = sbr.rel (0) target = $region17
  $region16: #{up_forward.1} parent=0 // pred_region
    _
  $region17: #{up_forward.1} parent=0 // pred_fallthru
    _
  // Predicated region
  $region18: #{up_forward.1} parent=0 // pred_check
    _
  $region19: #{up_forward.1} parent=0 // pred_check_branch
    %19 = sbr.rel (0) target = $region21
  $region20: #{up_forward.1} parent=0 // pred_region
    _
  $region21: #{up_forward.1} parent=0 // pred_fallthru
    _
  %v21 = vld [vmem:[%s0] sm:$0xf]
  %v22 = vld [vmem:[%s0 + $0x4] sm:$0xf]
  %v23 = vld [vmem:[%s0 + $0x8] sm:$0xf]
  %v24 = vld [vmem:[%s0 + $0xc] sm:$0xf]
  %v25 = vld [vmem:[%s0 + $0x10] sm:$0xf]
  %v26 = vld [vmem:[%s0 + $0x14] sm:$0xf]
  %v27 = vld [vmem:[%s0 + $0x18] sm:$0xf]
  %v28 = vld [vmem:[%s0 + $0x1c] sm:$0xf]
  %v29 = vld [vmem:[%s0 + $0x20] sm:$0xf]
  %v30 = vld [vmem:[%s0 + $0x24] sm:$0xf]
  %v31 = vld [vmem:[%s0 + $0x28] sm:$0xf]
  %v32 = vld [vmem:[%s0 + $0x2c] sm:$0xf]
  %v33 = vld [vmem:[%s0 + $0x30] sm:$0xf]
  %v34 = vld [vmem:[%s0 + $0x34] sm:$0xf]
  %v35 = vld [vmem:[%s0 + $0x38] sm:$0xf]
  %v36 = vld [vmem:[%s0 + $0x3c] sm:$0xf]
  %v37 = vld [vmem:[%s0 + $0x40] sm:$0xf]
  %v38 = vld [vmem:[%s0 + $0x44] sm:$0xf]
  %v39 = vld [vmem:[%s0 + $0x48] sm:$0xf]
  %v40 = vld [vmem:[%s0 + $0x4c] sm:$0xf]
  %v41 = vld [vmem:[%s0 + $0x50] sm:$0xf]
  %v42 = vld [vmem:[%s0 + $0x54] sm:$0xf]
  %v43 = vld [vmem:[%s0 + $0x58] sm:$0xf]
  %v44 = vld [vmem:[%s0 + $0x5c] sm:$0xf]
  %v45 = vld [vmem:[%s0 + $0x60] sm:$0xf]
  %v46 = vld [vmem:[%s0 + $0x64] sm:$0xf]
  %v47 = vld [vmem:[%s0 + $0x68] sm:$0xf]
  %v48 = vld [vmem:[%s0 + $0x6c] sm:$0xf]
  %v49 = vld [vmem:[%s0 + $0x70] sm:$0xf]
  %v50 = vld [vmem:[%s0 + $0x74] sm:$0xf]
  %v51 = vld [vmem:[%s0 + $0x78] sm:$0xf]
  %v52 = vld [vmem:[%s0 + $0x7c] sm:$0xf]
  %v53 = vld [vmem:[%s0 + $0x80] sm:$0xf]
  %v54 = vld [vmem:[%s0 + $0x84] sm:$0xf]
  %v55 = vld [vmem:[%s0 + $0x88] sm:$0xf]
  %v56 = vld [vmem:[%s0 + $0x8c] sm:$0xf]
  %v57 = vld [vmem:[%s0 + $0x90] sm:$0xf]
  %v58 = vld [vmem:[%s0 + $0x94] sm:$0xf]
  %v59 = vld [vmem:[%s0 + $0x98] sm:$0xf]
  %v60 = vld [vmem:[%s0 + $0x9c] sm:$0xf]
  %v61 = vld [vmem:[%s0 + $0xa0] sm:$0xf]
  %v62 = vld [vmem:[%s0 + $0xa4] sm:$0xf]
  %v63 = vld [vmem:[%s0 + $0xa8] sm:$0xf]
  %v64 = vld [vmem:[%s0 + $0xac] sm:$0xf]
  %v65 = vld [vmem:[%s0 + $0xb0] sm:$0xf]
  %v66 = vld [vmem:[%s0 + $0xb4] sm:$0xf]
  %v67 = vld [vmem:[%s0 + $0xb8] sm:$0xf]
  %v68 = vld [vmem:[%s0 + $0xbc] sm:$0xf]
  %v69 = vld [vmem:[%s0 + $0xc0] sm:$0xf]
  %v70 = vld [vmem:[%s0 + $0xc4] sm:$0xf]
  %v71 = vld [vmem:[%s0 + $0xc8] sm:$0xf]
  %v72 = vld [vmem:[%s0 + $0xcc] sm:$0xf]
  %v73 = vld [vmem:[%s0 + $0xd0] sm:$0xf]
  %v74 = vld [vmem:[%s0 + $0xd4] sm:$0xf]
  %v75 = vld [vmem:[%s0 + $0xd8] sm:$0xf]
  %v76 = vld [vmem:[%s0 + $0xdc] sm:$0xf]
  %v77 = vld [vmem:[%s0 + $0xe0] sm:$0xf]
  %v78 = vld [vmem:[%s0 + $0xe4] sm:$0xf]
  %v79 = vld [vmem:[%s0 + $0xe8] sm:$0xf]
  %v80 = vld [vmem:[%s0 + $0xec] sm:$0xf]
  %v81 = vld [vmem:[%s0 + $0xf0] sm:$0xf]
  %v82 = vld [vmem:[%s0 + $0xf4] sm:$0xf]
  %v83 = vld [vmem:[%s0 + $0xf8] sm:$0xf]
  %v84 = vld [vmem:[%s0 + $0xfc] sm:$0xf]
  %v85 = vld [vmem:[%s0 + $0x100] sm:$0xf]
  %v86 = vld [vmem:[%s0 + $0x104] sm:$0xf]
  %v87 = vld [vmem:[%s0 + $0x108] sm:$0xf]
  %v88 = vld [vmem:[%s0 + $0x10c] sm:$0xf]
  %v89 = vld [vmem:[%s0 + $0x110] sm:$0xf]
  %v90 = vld [vmem:[%s0 + $0x114] sm:$0xf]
  %v91 = vld [vmem:[%s0 + $0x118] sm:$0xf]
  %v92 = vld [vmem:[%s0 + $0x11c] sm:$0xf]
  %v93 = vld [vmem:[%s0 + $0x120] sm:$0xf]
  %v94 = vld [vmem:[%s0 + $0x124] sm:$0xf]
  %v95 = vld [vmem:[%s0 + $0x128] sm:$0xf]
  %v96 = vld [vmem:[%s0 + $0x12c] sm:$0xf]
  %v97 = vld [vmem:[%s0 + $0x130] sm:$0xf]
  %v98 = vld [vmem:[%s0 + $0x134] sm:$0xf]
  %v99 = vld [vmem:[%s0 + $0x138] sm:$0xf]
  %v100 = vld [vmem:[%s0 + $0x13c] sm:$0xf]
  %v101 = vld [vmem:[%s0 + $0x140] sm:$0xf]
  %v102 = vld [vmem:[%s0 + $0x144] sm:$0xf]
  %v103 = vld [vmem:[%s0 + $0x148] sm:$0xf]
  %v104 = vld [vmem:[%s0 + $0x14c] sm:$0xf]
  %v105 = vld [vmem:[%s0 + $0x150] sm:$0xf]
  %v106 = vld [vmem:[%s0 + $0x154] sm:$0xf]
  %v107 = vld [vmem:[%s0 + $0x158] sm:$0xf]
  %v108 = vld [vmem:[%s0 + $0x15c] sm:$0xf]
  %v109 = vld [vmem:[%s0 + $0x160] sm:$0xf]
  %v110 = vld [vmem:[%s0 + $0x164] sm:$0xf]
  %v111 = vld [vmem:[%s0 + $0x168] sm:$0xf]
  %v112 = vld [vmem:[%s0 + $0x16c] sm:$0xf]
  %v113 = vld [vmem:[%s0 + $0x170] sm:$0xf]
  %v114 = vld [vmem:[%s0 + $0x174] sm:$0xf]
  %v115 = vld [vmem:[%s0 + $0x178] sm:$0xf]
  %v116 = vld [vmem:[%s0 + $0x17c] sm:$0xf]
  %v117 = vld [vmem:[%s0 + $0x180] sm:$0xf]
  %v118 = vld [vmem:[%s0 + $0x184] sm:$0xf]
  %v119 = vld [vmem:[%s0 + $0x188] sm:$0xf]
  %v120 = vld [vmem:[%s0 + $0x18c] sm:$0xf]
  %v121 = vld [vmem:[%s0 + $0x190] sm:$0xf]
  %v122 = vld [vmem:[%s0 + $0x194] sm:$0xf]
  %v123 = vld [vmem:[%s0 + $0x198] sm:$0xf]
  %v124 = vld [vmem:[%s0 + $0x19c] sm:$0xf]
  %v125 = vld [vmem:[%s0 + $0x1a0] sm:$0xf]
  %v126 = vld [vmem:[%s0 + $0x1a4] sm:$0xf]
  %v127 = vld [vmem:[%s0 + $0x1a8] sm:$0xf]
  %v128 = vld [vmem:[%s0 + $0x1ac] sm:$0xf]
  %v129 = vld [vmem:[%s0 + $0x1b0] sm:$0xf]
  %v130 = vld [vmem:[%s0 + $0x1b4] sm:$0xf]
  %v131 = vld [vmem:[%s0 + $0x1b8] sm:$0xf]
  %v132 = vld [vmem:[%s0 + $0x1bc] sm:$0xf]
  %v133 = vld [vmem:[%s0 + $0x1c0] sm:$0xf]
  %v134 = vld [vmem:[%s0 + $0x1c4] sm:$0xf]
  %v135 = vld [vmem:[%s0 + $0x1c8] sm:$0xf]
  %v136 = vld [vmem:[%s0 + $0x1cc] sm:$0xf]
  %v137 = vld [vmem:[%s0 + $0x1d0] sm:$0xf]
  %v138 = vld [vmem:[%s0 + $0x1d4] sm:$0xf]
  %v139 = vld [vmem:[%s0 + $0x1d8] sm:$0xf]
  %v140 = vld [vmem:[%s0 + $0x1dc] sm:$0xf]
  %v141 = vld [vmem:[%s0 + $0x1e0] sm:$0xf]
  %v142 = vld [vmem:[%s0 + $0x1e4] sm:$0xf]
  %v143 = vld [vmem:[%s0 + $0x1e8] sm:$0xf]
  %v144 = vld [vmem:[%s0 + $0x1ec] sm:$0xf]
  %v145 = vld [vmem:[%s0 + $0x1f0] sm:$0xf]
  %v146 = vld [vmem:[%s0 + $0x1f4] sm:$0xf]
  %v147 = vld [vmem:[%s0 + $0x1f8] sm:$0xf]
  %v148 = vld [vmem:[%s0 + $0x1fc] sm:$0xf]
  %v149 = vld [vmem:[%s0 + $0x200] sm:$0xf]
  %v150 = vld [vmem:[%s0 + $0x204] sm:$0xf]
  %v151 = vld [vmem:[%s0 + $0x208] sm:$0xf]
  %v152 = vld [vmem:[%s0 + $0x20c] sm:$0xf]
  %v153 = vld [vmem:[%s0 + $0x210] sm:$0xf]
  %v154 = vld [vmem:[%s0 + $0x214] sm:$0xf]
  %v155 = vld [vmem:[%s0 + $0x218] sm:$0xf]
  %v156 = vld [vmem:[%s0 + $0x21c] sm:$0xf]
  %v157 = vld [vmem:[%s0 + $0x220] sm:$0xf]
  %v158 = vld [vmem:[%s0 + $0x224] sm:$0xf]
  %v159 = vld [vmem:[%s0 + $0x228] sm:$0xf]
  %v160 = vld [vmem:[%s0 + $0x22c] sm:$0xf]
  %v161 = vld [vmem:[%s0 + $0x230] sm:$0xf]
  %v162 = vld [vmem:[%s0 + $0x234] sm:$0xf]
  %v163 = vld [vmem:[%s0 + $0x238] sm:$0xf]
  %v164 = vld [vmem:[%s0 + $0x23c] sm:$0xf]
  %v165 = vld [vmem:[%s0 + $0x240] sm:$0xf]
  %v166 = vld [vmem:[%s0 + $0x244] sm:$0xf]
  %v167 = vld [vmem:[%s0 + $0x248] sm:$0xf]
  %v168 = vld [vmem:[%s0 + $0x24c] sm:$0xf]
  %v169 = vld [vmem:[%s0 + $0x250] sm:$0xf]
  %v170 = vld [vmem:[%s0 + $0x254] sm:$0xf]
  %v171 = vld [vmem:[%s0 + $0x258] sm:$0xf]
  %v172 = vld [vmem:[%s0 + $0x25c] sm:$0xf]
  %v173 = vld [vmem:[%s0 + $0x260] sm:$0xf]
  %v174 = vld [vmem:[%s0 + $0x264] sm:$0xf]
  %v175 = vld [vmem:[%s0 + $0x268] sm:$0xf]
  %v176 = vld [vmem:[%s0 + $0x26c] sm:$0xf]
  %v177 = vld [vmem:[%s0 + $0x270] sm:$0xf]
  %v178 = vld [vmem:[%s0 + $0x274] sm:$0xf]
  %v179 = vld [vmem:[%s0 + $0x278] sm:$0xf]
  %v180 = vld [vmem:[%s0 + $0x27c] sm:$0xf]
  %v181 = vld [vmem:[%s0 + $0x280] sm:$0xf]
  %v182 = vld [vmem:[%s0 + $0x284] sm:$0xf]
  %v183 = vld [vmem:[%s0 + $0x288] sm:$0xf]
  %v184 = vld [vmem:[%s0 + $0x28c] sm:$0xf]
  %v185 = vld [vmem:[%s0 + $0x290] sm:$0xf]
  %v186 = vld [vmem:[%s0 + $0x294] sm:$0xf]
  %v187 = vld [vmem:[%s0 + $0x298] sm:$0xf]
  %v188 = vld [vmem:[%s0 + $0x29c] sm:$0xf]
  %v189 = vld [vmem:[%s0 + $0x2a0] sm:$0xf]
  %v190 = vld [vmem:[%s0 + $0x2a4] sm:$0xf]
  %v191 = vld [vmem:[%s0 + $0x2a8] sm:$0xf]
  %v192 = vld [vmem:[%s0 + $0x2ac] sm:$0xf]
  %v193 = vld [vmem:[%s0 + $0x2b0] sm:$0xf]
  %v194 = vld [vmem:[%s0 + $0x2b4] sm:$0xf]
  %v195 = vld [vmem:[%s0 + $0x2b8] sm:$0xf]
  %v196 = vld [vmem:[%s0 + $0x2bc] sm:$0xf]
  %v197 = vld [vmem:[%s0 + $0x2c0] sm:$0xf]
  %v198 = vld [vmem:[%s0 + $0x2c4] sm:$0xf]
  %v199 = vld [vmem:[%s0 + $0x2c8] sm:$0xf]
  %v200 = vld [vmem:[%s0 + $0x2cc] sm:$0xf]
  %v201 = vld [vmem:[%s0 + $0x2d0] sm:$0xf]
  %v202 = vld [vmem:[%s0 + $0x2d4] sm:$0xf]
  %v203 = vld [vmem:[%s0 + $0x2d8] sm:$0xf]
  %v204 = vld [vmem:[%s0 + $0x2dc] sm:$0xf]
  %v205 = vld [vmem:[%s0 + $0x2e0] sm:$0xf]
  %v206 = vld [vmem:[%s0 + $0x2e4] sm:$0xf]
  %v207 = vld [vmem:[%s0 + $0x2e8] sm:$0xf]
  %v208 = vld [vmem:[%s0 + $0x2ec] sm:$0xf]
  %v209 = vld [vmem:[%s0 + $0x2f0] sm:$0xf]
  %v210 = vld [vmem:[%s0 + $0x2f4] sm:$0xf]
  %v211 = vld [vmem:[%s0 + $0x2f8] sm:$0xf]
  %v212 = vld [vmem:[%s0 + $0x2fc] sm:$0xf]
  %v213 = vld [vmem:[%s0 + $0x300] sm:$0xf]
  %v214 = vld [vmem:[%s0 + $0x304] sm:$0xf]
  %v215 = vld [vmem:[%s0 + $0x308] sm:$0xf]
  %v216 = vld [vmem:[%s0 + $0x30c] sm:$0xf]
  %v217 = vld [vmem:[%s0 + $0x310] sm:$0xf]
  %v218 = vld [vmem:[%s0 + $0x314] sm:$0xf]
  %v219 = vld [vmem:[%s0 + $0x318] sm:$0xf]
  %v220 = vld [vmem:[%s0 + $0x31c] sm:$0xf]
  %v221 = vld [vmem:[%s0 + $0x320] sm:$0xf]
  %v222 = vld [vmem:[%s0 + $0x324] sm:$0xf]
  %v223 = vld [vmem:[%s0 + $0x328] sm:$0xf]
  %v224 = vld [vmem:[%s0 + $0x32c] sm:$0xf]
  %v225 = vld [vmem:[%s0 + $0x330] sm:$0xf]
  %v226 = vld [vmem:[%s0 + $0x334] sm:$0xf]
  %v227 = vld [vmem:[%s0 + $0x338] sm:$0xf]
  %v228 = vld [vmem:[%s0 + $0x33c] sm:$0xf]
  %v229 = vld [vmem:[%s0 + $0x340] sm:$0xf]
  %v230 = vld [vmem:[%s0 + $0x344] sm:$0xf]
  %v231 = vld [vmem:[%s0 + $0x348] sm:$0xf]
  %v232 = vld [vmem:[%s0 + $0x34c] sm:$0xf]
  %v233 = vld [vmem:[%s0 + $0x350] sm:$0xf]
  %v234 = vld [vmem:[%s0 + $0x354] sm:$0xf]
  %v235 = vld [vmem:[%s0 + $0x358] sm:$0xf]
  %v236 = vld [vmem:[%s0 + $0x35c] sm:$0xf]
  %v237 = vld [vmem:[%s0 + $0x360] sm:$0xf]
  %v238 = vld [vmem:[%s0 + $0x364] sm:$0xf]
  %v239 = vld [vmem:[%s0 + $0x368] sm:$0xf]
  %v240 = vld [vmem:[%s0 + $0x36c] sm:$0xf]
  %v241 = vld [vmem:[%s0 + $0x370] sm:$0xf]
  %v242 = vld [vmem:[%s0 + $0x374] sm:$0xf]
  %v243 = vld [vmem:[%s0 + $0x378] sm:$0xf]
  %v244 = vld [vmem:[%s0 + $0x37c] sm:$0xf]
  %v245 = vld [vmem:[%s0 + $0x380] sm:$0xf]
  %v246 = vld [vmem:[%s0 + $0x384] sm:$0xf]
  %v247 = vld [vmem:[%s0 + $0x388] sm:$0xf]
  %v248 = vld [vmem:[%s0 + $0x38c] sm:$0xf]
  %v249 = vld [vmem:[%s0 + $0x390] sm:$0xf]
  %v250 = vld [vmem:[%s0 + $0x394] sm:$0xf]
  %v251 = vld [vmem:[%s0 + $0x398] sm:$0xf]
  %v252 = vld [vmem:[%s0 + $0x39c] sm:$0xf]
  %v253 = vld [vmem:[%s0 + $0x3a0] sm:$0xf]
  %v254 = vld [vmem:[%s0 + $0x3a4] sm:$0xf]
  %v255 = vld [vmem:[%s0 + $0x3a8] sm:$0xf]
  %v256 = vld [vmem:[%s0 + $0x3ac] sm:$0xf]
  %v257 = vld [vmem:[%s0 + $0x3b0] sm:$0xf]
  %v258 = vld [vmem:[%s0 + $0x3b4] sm:$0xf]
  %v259 = vld [vmem:[%s0 + $0x3b8] sm:$0xf]
  %v260 = vld [vmem:[%s0 + $0x3bc] sm:$0xf]
  %v261 = vld [vmem:[%s0 + $0x3c0] sm:$0xf]
  %v262 = vld [vmem:[%s0 + $0x3c4] sm:$0xf]
  %v263 = vld [vmem:[%s0 + $0x3c8] sm:$0xf]
  %v264 = vld [vmem:[%s0 + $0x3cc] sm:$0xf]
  %v265 = vld [vmem:[%s0 + $0x3d0] sm:$0xf]
  %v266 = vld [vmem:[%s0 + $0x3d4] sm:$0xf]
  %v267 = vld [vmem:[%s0 + $0x3d8] sm:$0xf]
  %v268 = vld [vmem:[%s0 + $0x3dc] sm:$0xf]
  %v269 = vld [vmem:[%s0 + $0x3e0] sm:$0xf]
  %v270 = vld [vmem:[%s0 + $0x3e4] sm:$0xf]
  %v271 = vld [vmem:[%s0 + $0x3e8] sm:$0xf]
  %v272 = vld [vmem:[%s0 + $0x3ec] sm:$0xf]
  %v273 = vld [vmem:[%s0 + $0x3f0] sm:$0xf]
  %v274 = vld [vmem:[%s0 + $0x3f4] sm:$0xf]
  %v275 = vld [vmem:[%s0 + $0x3f8] sm:$0xf]
  %v276 = vld [vmem:[%s0 + $0x3fc] sm:$0xf]
  %v277 = vld [vmem:[%s1] sm:$0xf]
  %v278 = vld [vmem:[%s1 + $0x4] sm:$0xf]
  %v279 = vld [vmem:[%s1 + $0x8] sm:$0xf]
  %v280 = vld [vmem:[%s1 + $0xc] sm:$0xf]
  %v281 = vld [vmem:[%s2] sm:$0x1]
  %v283 = vlaneseq
  %v284 = vshrl.u32 %v283, 7
  %v285 = vsub.s32 0, %v284
  %v286 = vrot.slane %v281, %v285
  %v544 = vunpack.c.l.b16 %v21
  %v545 = vunpack.c.l.b16 %v22
  %v546 = vunpack.c.l.b16 %v23
  %v547 = vunpack.c.l.b16 %v24
  %v548 = vunpack.c.l.b16 %v25
  %v549 = vunpack.c.l.b16 %v26
  %v550 = vunpack.c.l.b16 %v27
  %v551 = vunpack.c.l.b16 %v28
  %v552 = vunpack.c.l.b16 %v29
  %v553 = vunpack.c.l.b16 %v30
  %v554 = vunpack.c.l.b16 %v31
  %v555 = vunpack.c.l.b16 %v32
  %v556 = vunpack.c.l.b16 %v33
  %v557 = vunpack.c.l.b16 %v34
  %v558 = vunpack.c.l.b16 %v35
  %v559 = vunpack.c.l.b16 %v36
  %v560 = vunpack.c.l.b16 %v37
  %v561 = vunpack.c.l.b16 %v38
  %v562 = vunpack.c.l.b16 %v39
  %v563 = vunpack.c.l.b16 %v40
  %v564 = vunpack.c.l.b16 %v41
  %v565 = vunpack.c.l.b16 %v42
  %v566 = vunpack.c.l.b16 %v43
  %v567 = vunpack.c.l.b16 %v44
  %v568 = vunpack.c.l.b16 %v45
  %v569 = vunpack.c.l.b16 %v46
  %v570 = vunpack.c.l.b16 %v47
  %v571 = vunpack.c.l.b16 %v48
  %v572 = vunpack.c.l.b16 %v49
  %v573 = vunpack.c.l.b16 %v50
  %v574 = vunpack.c.l.b16 %v51
  %v575 = vunpack.c.l.b16 %v52
  %v576 = vunpack.c.l.b16 %v53
  %v577 = vunpack.c.l.b16 %v54
  %v578 = vunpack.c.l.b16 %v55
  %v579 = vunpack.c.l.b16 %v56
  %v580 = vunpack.c.l.b16 %v57
  %v581 = vunpack.c.l.b16 %v58
  %v582 = vunpack.c.l.b16 %v59
  %v583 = vunpack.c.l.b16 %v60
  %v584 = vunpack.c.l.b16 %v61
  %v585 = vunpack.c.l.b16 %v62
  %v586 = vunpack.c.l.b16 %v63
  %v587 = vunpack.c.l.b16 %v64
  %v588 = vunpack.c.l.b16 %v65
  %v589 = vunpack.c.l.b16 %v66
  %v590 = vunpack.c.l.b16 %v67
  %v591 = vunpack.c.l.b16 %v68
  %v592 = vunpack.c.l.b16 %v69
  %v593 = vunpack.c.l.b16 %v70
  %v594 = vunpack.c.l.b16 %v71
  %v595 = vunpack.c.l.b16 %v72
  %v596 = vunpack.c.l.b16 %v73
  %v597 = vunpack.c.l.b16 %v74
  %v598 = vunpack.c.l.b16 %v75
  %v599 = vunpack.c.l.b16 %v76
  %v600 = vunpack.c.l.b16 %v77
  %v601 = vunpack.c.l.b16 %v78
  %v602 = vunpack.c.l.b16 %v79
  %v603 = vunpack.c.l.b16 %v80
  %v604 = vunpack.c.l.b16 %v81
  %v605 = vunpack.c.l.b16 %v82
  %v606 = vunpack.c.l.b16 %v83
  %v607 = vunpack.c.l.b16 %v84
  %v608 = vunpack.c.l.b16 %v85
  %v609 = vunpack.c.l.b16 %v86
  %v610 = vunpack.c.l.b16 %v87
  %v611 = vunpack.c.l.b16 %v88
  %v612 = vunpack.c.l.b16 %v89
  %v613 = vunpack.c.l.b16 %v90
  %v614 = vunpack.c.l.b16 %v91
  %v615 = vunpack.c.l.b16 %v92
  %v616 = vunpack.c.l.b16 %v93
  %v617 = vunpack.c.l.b16 %v94
  %v618 = vunpack.c.l.b16 %v95
  %v619 = vunpack.c.l.b16 %v96
  %v620 = vunpack.c.l.b16 %v97
  %v621 = vunpack.c.l.b16 %v98
  %v622 = vunpack.c.l.b16 %v99
  %v623 = vunpack.c.l.b16 %v100
  %v624 = vunpack.c.l.b16 %v101
  %v625 = vunpack.c.l.b16 %v102
  %v626 = vunpack.c.l.b16 %v103
  %v627 = vunpack.c.l.b16 %v104
  %v628 = vunpack.c.l.b16 %v105
  %v629 = vunpack.c.l.b16 %v106
  %v630 = vunpack.c.l.b16 %v107
  %v631 = vunpack.c.l.b16 %v108
  %v632 = vunpack.c.l.b16 %v109
  %v633 = vunpack.c.l.b16 %v110
  %v634 = vunpack.c.l.b16 %v111
  %v635 = vunpack.c.l.b16 %v112
  %v636 = vunpack.c.l.b16 %v113
  %v637 = vunpack.c.l.b16 %v114
  %v638 = vunpack.c.l.b16 %v115
  %v639 = vunpack.c.l.b16 %v116
  %v640 = vunpack.c.l.b16 %v117
  %v641 = vunpack.c.l.b16 %v118
  %v642 = vunpack.c.l.b16 %v119
  %v643 = vunpack.c.l.b16 %v120
  %v644 = vunpack.c.l.b16 %v121
  %v645 = vunpack.c.l.b16 %v122
  %v646 = vunpack.c.l.b16 %v123
  %v647 = vunpack.c.l.b16 %v124
  %v648 = vunpack.c.l.b16 %v125
  %v649 = vunpack.c.l.b16 %v126
  %v650 = vunpack.c.l.b16 %v127
  %v651 = vunpack.c.l.b16 %v128
  %v652 = vunpack.c.l.b16 %v129
  %v653 = vunpack.c.l.b16 %v130
  %v654 = vunpack.c.l.b16 %v131
  %v655 = vunpack.c.l.b16 %v132
  %v656 = vunpack.c.l.b16 %v133
  %v657 = vunpack.c.l.b16 %v134
  %v658 = vunpack.c.l.b16 %v135
  %v659 = vunpack.c.l.b16 %v136
  %v660 = vunpack.c.l.b16 %v137
  %v661 = vunpack.c.l.b16 %v138
  %v662 = vunpack.c.l.b16 %v139
  %v663 = vunpack.c.l.b16 %v140
  %v664 = vunpack.c.l.b16 %v141
  %v665 = vunpack.c.l.b16 %v142
  %v666 = vunpack.c.l.b16 %v143
  %v667 = vunpack.c.l.b16 %v144
  %v668 = vunpack.c.l.b16 %v145
  %v669 = vunpack.c.l.b16 %v146
  %v670 = vunpack.c.l.b16 %v147
  %v671 = vunpack.c.l.b16 %v148
  %v672 = vunpack.c.l.b16 %v149
  %v673 = vunpack.c.l.b16 %v150
  %v674 = vunpack.c.l.b16 %v151
  %v675 = vunpack.c.l.b16 %v152
  %v676 = vunpack.c.l.b16 %v153
  %v677 = vunpack.c.l.b16 %v154
  %v678 = vunpack.c.l.b16 %v155
  %v679 = vunpack.c.l.b16 %v156
  %v680 = vunpack.c.l.b16 %v157
  %v681 = vunpack.c.l.b16 %v158
  %v682 = vunpack.c.l.b16 %v159
  %v683 = vunpack.c.l.b16 %v160
  %v684 = vunpack.c.l.b16 %v161
  %v685 = vunpack.c.l.b16 %v162
  %v686 = vunpack.c.l.b16 %v163
  %v687 = vunpack.c.l.b16 %v164
  %v688 = vunpack.c.l.b16 %v165
  %v689 = vunpack.c.l.b16 %v166
  %v690 = vunpack.c.l.b16 %v167
  %v691 = vunpack.c.l.b16 %v168
  %v692 = vunpack.c.l.b16 %v169
  %v693 = vunpack.c.l.b16 %v170
  %v694 = vunpack.c.l.b16 %v171
  %v695 = vunpack.c.l.b16 %v172
  %v696 = vunpack.c.l.b16 %v173
  %v697 = vunpack.c.l.b16 %v174
  %v698 = vunpack.c.l.b16 %v175
  %v699 = vunpack.c.l.b16 %v176
  %v700 = vunpack.c.l.b16 %v177
  %v701 = vunpack.c.l.b16 %v178
  %v702 = vunpack.c.l.b16 %v179
  %v703 = vunpack.c.l.b16 %v180
  %v704 = vunpack.c.l.b16 %v181
  %v705 = vunpack.c.l.b16 %v182
  %v706 = vunpack.c.l.b16 %v183
  %v707 = vunpack.c.l.b16 %v184
  %v708 = vunpack.c.l.b16 %v185
  %v709 = vunpack.c.l.b16 %v186
  %v710 = vunpack.c.l.b16 %v187
  %v711 = vunpack.c.l.b16 %v188
  %v712 = vunpack.c.l.b16 %v189
  %v713 = vunpack.c.l.b16 %v190
  %v714 = vunpack.c.l.b16 %v191
  %v715 = vunpack.c.l.b16 %v192
  %v716 = vunpack.c.l.b16 %v193
  %v717 = vunpack.c.l.b16 %v194
  %v718 = vunpack.c.l.b16 %v195
  %v719 = vunpack.c.l.b16 %v196
  %v720 = vunpack.c.l.b16 %v197
  %v721 = vunpack.c.l.b16 %v198
  %v722 = vunpack.c.l.b16 %v199
  %v723 = vunpack.c.l.b16 %v200
  %v724 = vunpack.c.l.b16 %v201
  %v725 = vunpack.c.l.b16 %v202
  %v726 = vunpack.c.l.b16 %v203
  %v727 = vunpack.c.l.b16 %v204
  %v728 = vunpack.c.l.b16 %v205
  %v729 = vunpack.c.l.b16 %v206
  %v730 = vunpack.c.l.b16 %v207
  %v731 = vunpack.c.l.b16 %v208
  %v732 = vunpack.c.l.b16 %v209
  %v733 = vunpack.c.l.b16 %v210
  %v734 = vunpack.c.l.b16 %v211
  %v735 = vunpack.c.l.b16 %v212
  %v736 = vunpack.c.l.b16 %v213
  %v737 = vunpack.c.l.b16 %v214
  %v738 = vunpack.c.l.b16 %v215
  %v739 = vunpack.c.l.b16 %v216
  %v740 = vunpack.c.l.b16 %v217
  %v741 = vunpack.c.l.b16 %v218
  %v742 = vunpack.c.l.b16 %v219
  %v743 = vunpack.c.l.b16 %v220
  %v744 = vunpack.c.l.b16 %v221
  %v745 = vunpack.c.l.b16 %v222
  %v746 = vunpack.c.l.b16 %v223
  %v747 = vunpack.c.l.b16 %v224
  %v748 = vunpack.c.l.b16 %v225
  %v749 = vunpack.c.l.b16 %v226
  %v750 = vunpack.c.l.b16 %v227
  %v751 = vunpack.c.l.b16 %v228
  %v752 = vunpack.c.l.b16 %v229
  %v753 = vunpack.c.l.b16 %v230
  %v754 = vunpack.c.l.b16 %v231
  %v755 = vunpack.c.l.b16 %v232
  %v756 = vunpack.c.l.b16 %v233
  %v757 = vunpack.c.l.b16 %v234
  %v758 = vunpack.c.l.b16 %v235
  %v759 = vunpack.c.l.b16 %v236
  %v760 = vunpack.c.l.b16 %v237
  %v761 = vunpack.c.l.b16 %v238
  %v762 = vunpack.c.l.b16 %v239
  %v763 = vunpack.c.l.b16 %v240
  %v764 = vunpack.c.l.b16 %v241
  %v765 = vunpack.c.l.b16 %v242
  %v766 = vunpack.c.l.b16 %v243
  %v767 = vunpack.c.l.b16 %v244
  %v768 = vunpack.c.l.b16 %v245
  %v769 = vunpack.c.l.b16 %v246
  %v770 = vunpack.c.l.b16 %v247
  %v771 = vunpack.c.l.b16 %v248
  %v772 = vunpack.c.l.b16 %v249
  %v773 = vunpack.c.l.b16 %v250
  %v774 = vunpack.c.l.b16 %v251
  %v775 = vunpack.c.l.b16 %v252
  %v776 = vunpack.c.l.b16 %v253
  %v777 = vunpack.c.l.b16 %v254
  %v778 = vunpack.c.l.b16 %v255
  %v779 = vunpack.c.l.b16 %v256
  %v780 = vunpack.c.l.b16 %v257
  %v781 = vunpack.c.l.b16 %v258
  %v782 = vunpack.c.l.b16 %v259
  %v783 = vunpack.c.l.b16 %v260
  %v784 = vunpack.c.l.b16 %v261
  %v785 = vunpack.c.l.b16 %v262
  %v786 = vunpack.c.l.b16 %v263
  %v787 = vunpack.c.l.b16 %v264
  %v788 = vunpack.c.l.b16 %v265
  %v789 = vunpack.c.l.b16 %v266
  %v790 = vunpack.c.l.b16 %v267
  %v791 = vunpack.c.l.b16 %v268
  %v792 = vunpack.c.l.b16 %v269
  %v793 = vunpack.c.l.b16 %v270
  %v794 = vunpack.c.l.b16 %v271
  %v795 = vunpack.c.l.b16 %v272
  %v796 = vunpack.c.l.b16 %v273
  %v797 = vunpack.c.l.b16 %v274
  %v798 = vunpack.c.l.b16 %v275
  %v799 = vunpack.c.l.b16 %v276
  %v800 = vpack.c.b16 %v545, %v544
  %v801 = vpack.c.b16 %v547, %v546
  %v802 = vpack.c.b16 %v549, %v548
  %v803 = vpack.c.b16 %v551, %v550
  %v804 = vpack.c.b16 %v553, %v552
  %v805 = vpack.c.b16 %v555, %v554
  %v806 = vpack.c.b16 %v557, %v556
  %v807 = vpack.c.b16 %v559, %v558
  %v808 = vpack.c.b16 %v561, %v560
  %v809 = vpack.c.b16 %v563, %v562
  %v810 = vpack.c.b16 %v565, %v564
  %v811 = vpack.c.b16 %v567, %v566
  %v812 = vpack.c.b16 %v569, %v568
  %v813 = vpack.c.b16 %v571, %v570
  %v814 = vpack.c.b16 %v573, %v572
  %v815 = vpack.c.b16 %v575, %v574
  %v816 = vpack.c.b16 %v577, %v576
  %v817 = vpack.c.b16 %v579, %v578
  %v818 = vpack.c.b16 %v581, %v580
  %v819 = vpack.c.b16 %v583, %v582
  %v820 = vpack.c.b16 %v585, %v584
  %v821 = vpack.c.b16 %v587, %v586
  %v822 = vpack.c.b16 %v589, %v588
  %v823 = vpack.c.b16 %v591, %v590
  %v824 = vpack.c.b16 %v593, %v592
  %v825 = vpack.c.b16 %v595, %v594
  %v826 = vpack.c.b16 %v597, %v596
  %v827 = vpack.c.b16 %v599, %v598
  %v828 = vpack.c.b16 %v601, %v600
  %v829 = vpack.c.b16 %v603, %v602
  %v830 = vpack.c.b16 %v605, %v604
  %v831 = vpack.c.b16 %v607, %v606
  %v832 = vpack.c.b16 %v609, %v608
  %v833 = vpack.c.b16 %v611, %v610
  %v834 = vpack.c.b16 %v613, %v612
  %v835 = vpack.c.b16 %v615, %v614
  %v836 = vpack.c.b16 %v617, %v616
  %v837 = vpack.c.b16 %v619, %v618
  %v838 = vpack.c.b16 %v621, %v620
  %v839 = vpack.c.b16 %v623, %v622
  %v840 = vpack.c.b16 %v625, %v624
  %v841 = vpack.c.b16 %v627, %v626
  %v842 = vpack.c.b16 %v629, %v628
  %v843 = vpack.c.b16 %v631, %v630
  %v844 = vpack.c.b16 %v633, %v632
  %v845 = vpack.c.b16 %v635, %v634
  %v846 = vpack.c.b16 %v637, %v636
  %v847 = vpack.c.b16 %v639, %v638
  %v848 = vpack.c.b16 %v641, %v640
  %v849 = vpack.c.b16 %v643, %v642
  %v850 = vpack.c.b16 %v645, %v644
  %v851 = vpack.c.b16 %v647, %v646
  %v852 = vpack.c.b16 %v649, %v648
  %v853 = vpack.c.b16 %v651, %v650
  %v854 = vpack.c.b16 %v653, %v652
  %v855 = vpack.c.b16 %v655, %v654
  %v856 = vpack.c.b16 %v657, %v656
  %v857 = vpack.c.b16 %v659, %v658
  %v858 = vpack.c.b16 %v661, %v660
  %v859 = vpack.c.b16 %v663, %v662
  %v860 = vpack.c.b16 %v665, %v664
  %v861 = vpack.c.b16 %v667, %v666
  %v862 = vpack.c.b16 %v669, %v668
  %v863 = vpack.c.b16 %v671, %v670
  %v864 = vpack.c.b16 %v673, %v672
  %v865 = vpack.c.b16 %v675, %v674
  %v866 = vpack.c.b16 %v677, %v676
  %v867 = vpack.c.b16 %v679, %v678
  %v868 = vpack.c.b16 %v681, %v680
  %v869 = vpack.c.b16 %v683, %v682
  %v870 = vpack.c.b16 %v685, %v684
  %v871 = vpack.c.b16 %v687, %v686
  %v872 = vpack.c.b16 %v689, %v688
  %v873 = vpack.c.b16 %v691, %v690
  %v874 = vpack.c.b16 %v693, %v692
  %v875 = vpack.c.b16 %v695, %v694
  %v876 = vpack.c.b16 %v697, %v696
  %v877 = vpack.c.b16 %v699, %v698
  %v878 = vpack.c.b16 %v701, %v700
  %v879 = vpack.c.b16 %v703, %v702
  %v880 = vpack.c.b16 %v705, %v704
  %v881 = vpack.c.b16 %v707, %v706
  %v882 = vpack.c.b16 %v709, %v708
  %v883 = vpack.c.b16 %v711, %v710
  %v884 = vpack.c.b16 %v713, %v712
  %v885 = vpack.c.b16 %v715, %v714
  %v886 = vpack.c.b16 %v717, %v716
  %v887 = vpack.c.b16 %v719, %v718
  %v888 = vpack.c.b16 %v721, %v720
  %v889 = vpack.c.b16 %v723, %v722
  %v890 = vpack.c.b16 %v725, %v724
  %v891 = vpack.c.b16 %v727, %v726
  %v892 = vpack.c.b16 %v729, %v728
  %v893 = vpack.c.b16 %v731, %v730
  %v894 = vpack.c.b16 %v733, %v732
  %v895 = vpack.c.b16 %v735, %v734
  %v896 = vpack.c.b16 %v737, %v736
  %v897 = vpack.c.b16 %v739, %v738
  %v898 = vpack.c.b16 %v741, %v740
  %v899 = vpack.c.b16 %v743, %v742
  %v900 = vpack.c.b16 %v745, %v744
  %v901 = vpack.c.b16 %v747, %v746
  %v902 = vpack.c.b16 %v749, %v748
  %v903 = vpack.c.b16 %v751, %v750
  %v904 = vpack.c.b16 %v753, %v752
  %v905 = vpack.c.b16 %v755, %v754
  %v906 = vpack.c.b16 %v757, %v756
  %v907 = vpack.c.b16 %v759, %v758
  %v908 = vpack.c.b16 %v761, %v760
  %v909 = vpack.c.b16 %v763, %v762
  %v910 = vpack.c.b16 %v765, %v764
  %v911 = vpack.c.b16 %v767, %v766
  %v912 = vpack.c.b16 %v769, %v768
  %v913 = vpack.c.b16 %v771, %v770
  %v914 = vpack.c.b16 %v773, %v772
  %v915 = vpack.c.b16 %v775, %v774
  %v916 = vpack.c.b16 %v777, %v776
  %v917 = vpack.c.b16 %v779, %v778
  %v918 = vpack.c.b16 %v781, %v780
  %v919 = vpack.c.b16 %v783, %v782
  %v920 = vpack.c.b16 %v785, %v784
  %v921 = vpack.c.b16 %v787, %v786
  %v922 = vpack.c.b16 %v789, %v788
  %v923 = vpack.c.b16 %v791, %v790
  %v924 = vpack.c.b16 %v793, %v792
  %v925 = vpack.c.b16 %v795, %v794
  %v926 = vpack.c.b16 %v797, %v796
  %v927 = vpack.c.b16 %v799, %v798
  %v932 = vunpack.c.l.b16 %v277
  %v933 = vunpack.c.l.b16 %v278
  %v934 = vunpack.c.l.b16 %v279
  %v935 = vunpack.c.l.b16 %v280
  %v936 = vpack.c.b16 %v933, %v932
  %v937 = vpack.c.b16 %v935, %v934
  %vm940 = vcmask 261120
  %v942 = vsel %vm940, %v800, 0
  %v945 = vsel %vm940, %v801, 0
  %v948 = vsel %vm940, %v802, 0
  %v951 = vsel %vm940, %v803, 0
  %v954 = vsel %vm940, %v804, 0
  %v957 = vsel %vm940, %v805, 0
  %v960 = vsel %vm940, %v806, 0
  %v963 = vsel %vm940, %v807, 0
  %v966 = vsel %vm940, %v808, 0
  %v969 = vsel %vm940, %v809, 0
  %v972 = vsel %vm940, %v810, 0
  %v975 = vsel %vm940, %v811, 0
  %v978 = vsel %vm940, %v812, 0
  %v981 = vsel %vm940, %v813, 0
  %v984 = vsel %vm940, %v814, 0
  %v987 = vsel %vm940, %v815, 0
  %v990 = vsel %vm940, %v816, 0
  %v993 = vsel %vm940, %v817, 0
  %v996 = vsel %vm940, %v818, 0
  %v999 = vsel %vm940, %v819, 0
  %v1002 = vsel %vm940, %v820, 0
  %v1005 = vsel %vm940, %v821, 0
  %v1008 = vsel %vm940, %v822, 0
  %v1011 = vsel %vm940, %v823, 0
  %v1014 = vsel %vm940, %v824, 0
  %v1017 = vsel %vm940, %v825, 0
  %v1020 = vsel %vm940, %v826, 0
  %v1023 = vsel %vm940, %v827, 0
  %v1026 = vsel %vm940, %v828, 0
  %v1029 = vsel %vm940, %v829, 0
  %v1032 = vsel %vm940, %v830, 0
  %v1035 = vsel %vm940, %v831, 0
  %v1038 = vsel %vm940, %v832, 0
  %v1041 = vsel %vm940, %v833, 0
  %v1044 = vsel %vm940, %v834, 0
  %v1047 = vsel %vm940, %v835, 0
  %v1050 = vsel %vm940, %v836, 0
  %v1053 = vsel %vm940, %v837, 0
  %v1056 = vsel %vm940, %v838, 0
  %v1059 = vsel %vm940, %v839, 0
  %v1062 = vsel %vm940, %v840, 0
  %v1065 = vsel %vm940, %v841, 0
  %v1068 = vsel %vm940, %v842, 0
  %v1071 = vsel %vm940, %v843, 0
  %v1074 = vsel %vm940, %v844, 0
  %v1077 = vsel %vm940, %v845, 0
  %v1080 = vsel %vm940, %v846, 0
  %v1083 = vsel %vm940, %v847, 0
  %v1086 = vsel %vm940, %v848, 0
  %v1089 = vsel %vm940, %v849, 0
  %v1092 = vsel %vm940, %v850, 0
  %v1095 = vsel %vm940, %v851, 0
  %v1098 = vsel %vm940, %v852, 0
  %v1101 = vsel %vm940, %v853, 0
  %v1104 = vsel %vm940, %v854, 0
  %v1107 = vsel %vm940, %v855, 0
  %v1110 = vsel %vm940, %v856, 0
  %v1113 = vsel %vm940, %v857, 0
  %v1116 = vsel %vm940, %v858, 0
  %v1119 = vsel %vm940, %v859, 0
  %v1122 = vsel %vm940, %v860, 0
  %v1125 = vsel %vm940, %v861, 0
  %v1128 = vsel %vm940, %v862, 0
  %v1131 = vsel %vm940, %v863, 0
  %v1134 = vsel %vm940, %v864, 0
  %v1137 = vsel %vm940, %v865, 0
  %v1140 = vsel %vm940, %v866, 0
  %v1143 = vsel %vm940, %v867, 0
  %v1146 = vsel %vm940, %v868, 0
  %v1149 = vsel %vm940, %v869, 0
  %v1152 = vsel %vm940, %v870, 0
  %v1155 = vsel %vm940, %v871, 0
  %v1158 = vsel %vm940, %v872, 0
  %v1161 = vsel %vm940, %v873, 0
  %v1164 = vsel %vm940, %v874, 0
  %v1167 = vsel %vm940, %v875, 0
  %v1170 = vsel %vm940, %v876, 0
  %v1173 = vsel %vm940, %v877, 0
  %v1176 = vsel %vm940, %v878, 0
  %v1179 = vsel %vm940, %v879, 0
  %v1182 = vsel %vm940, %v880, 0
  %v1185 = vsel %vm940, %v881, 0
  %v1188 = vsel %vm940, %v882, 0
  %v1191 = vsel %vm940, %v883, 0
  %v1194 = vsel %vm940, %v884, 0
  %v1197 = vsel %vm940, %v885, 0
  %v1200 = vsel %vm940, %v886, 0
  %v1203 = vsel %vm940, %v887, 0
  %v1206 = vsel %vm940, %v888, 0
  %v1209 = vsel %vm940, %v889, 0
  %v1212 = vsel %vm940, %v890, 0
  %v1215 = vsel %vm940, %v891, 0
  %v1218 = vsel %vm940, %v892, 0
  %v1221 = vsel %vm940, %v893, 0
  %v1224 = vsel %vm940, %v894, 0
  %v1227 = vsel %vm940, %v895, 0
  %v1230 = vsel %vm940, %v896, 0
  %v1233 = vsel %vm940, %v897, 0
  %v1236 = vsel %vm940, %v898, 0
  %v1239 = vsel %vm940, %v899, 0
  %v1242 = vsel %vm940, %v900, 0
  %v1245 = vsel %vm940, %v901, 0
  %v1248 = vsel %vm940, %v902, 0
  %v1251 = vsel %vm940, %v903, 0
  %v1254 = vsel %vm940, %v904, 0
  %v1257 = vsel %vm940, %v905, 0
  %v1260 = vsel %vm940, %v906, 0
  %v1263 = vsel %vm940, %v907, 0
  %v1266 = vsel %vm940, %v908, 0
  %v1269 = vsel %vm940, %v909, 0
  %v1272 = vsel %vm940, %v910, 0
  %v1275 = vsel %vm940, %v911, 0
  %v1278 = vsel %vm940, %v912, 0
  %v1281 = vsel %vm940, %v913, 0
  %v1284 = vsel %vm940, %v914, 0
  %v1287 = vsel %vm940, %v915, 0
  %v1290 = vsel %vm940, %v916, 0
  %v1293 = vsel %vm940, %v917, 0
  %v1296 = vsel %vm940, %v918, 0
  %v1299 = vsel %vm940, %v919, 0
  %v1302 = vsel %vm940, %v920, 0
  %v1305 = vsel %vm940, %v921, 0
  %v1308 = vsel %vm940, %v922, 0
  %v1311 = vsel %vm940, %v923, 0
  %v1314 = vsel %vm940, %v924, 0
  %v1317 = vsel %vm940, %v925, 0
  %v1320 = vsel %vm940, %v926, 0
  %v1323 = vsel %vm940, %v927, 0
  %1325 = vmatprep.subr.bf16.mxu0 0
  %1326 = vmatpush1.bf16.msra.mxu0 %v936
  %1327 = vmatprep.subr.bf16.mxu0 0
  %1328 = vmatpush1.bf16.msra.mxu0 %v937
  %1329 = vmatprep.subr.bf16.mxu0 0
  %1330 = vmatpush1.bf16.msra.mxu0 0
  %1331 = vmatprep.subr.bf16.mxu0 0
  %1332 = vmatpush1.bf16.msra.mxu0 0
  %1333 = vmatprep.subr.bf16.mxu0 0
  %1334 = vmatpush1.bf16.msra.mxu0 0
  %1335 = vmatprep.subr.bf16.mxu0 0
  %1336 = vmatpush1.bf16.msra.mxu0 0
  %1337 = vmatprep.subr.bf16.mxu0 0
  %1338 = vmatpush1.bf16.msra.mxu0 0
  %1339 = vmatprep.subr.bf16.mxu0 0
  %1340 = vmatpush1.bf16.msra.mxu0 0
  %1341 = vmatprep.subr.bf16.mxu0 0
  %1342 = vmatpush1.bf16.msra.mxu0 0
  %1343 = vmatprep.subr.bf16.mxu0 0
  %1344 = vmatpush1.bf16.msra.mxu0 0
  %1345 = vmatprep.subr.bf16.mxu0 0
  %1346 = vmatpush1.bf16.msra.mxu0 0
  %1347 = vmatprep.subr.bf16.mxu0 0
  %1348 = vmatpush1.bf16.msra.mxu0 0
  %1349 = vmatprep.subr.bf16.mxu0 0
  %1350 = vmatpush1.bf16.msra.mxu0 0
  %1351 = vmatprep.subr.bf16.mxu0 0
  %1352 = vmatpush1.bf16.msra.mxu0 0
  %1353 = vmatprep.subr.bf16.mxu0 0
  %1354 = vmatpush1.bf16.msra.mxu0 0
  %1355 = vmatprep.subr.bf16.mxu0 0
  %1356 = vmatpush1.bf16.msra.mxu0 0
  %1357 = vmatprep.mubr.bf16.mxu0 0
  %1358 = vmatmul.mubr.bf16.gmra.mrb[0].mxu0 %v942
  %v1359 = vpop.f32.mrb[0].mxu0
  %v1360 = vadd.f32 %v286, %v1359
  %v1361 = vpop.f32.mrb[0].mxu0
  %v1362 = vpop.f32.mrb[0].mxu0
  %v1363 = vadd.f32 %v286, %v1362
  %v1364 = vpop.f32.mrb[0].mxu0
  %1365 = vmatprep.mubr.bf16.mxu0 0
  %1366 = vmatmul.mubr.bf16.gmra.mrb[0].mxu0 %v945
  %v1367 = vpop.f32.mrb[0].mxu0
  %v1368 = vadd.f32 %v286, %v1367
  %v1369 = vpop.f32.mrb[0].mxu0
  %v1370 = vpop.f32.mrb[0].mxu0
  %v1371 = vadd.f32 %v286, %v1370
  %v1372 = vpop.f32.mrb[0].mxu0
  %1373 = vmatprep.mubr.bf16.mxu0 0
  %1374 = vmatmul.mubr.bf16.gmra.mrb[0].mxu0 %v948
  %v1375 = vpop.f32.mrb[0].mxu0
  %v1376 = vadd.f32 %v286, %v1375
  %v1377 = vpop.f32.mrb[0].mxu0
  %v1378 = vpop.f32.mrb[0].mxu0
  %v1379 = vadd.f32 %v286, %v1378
  %v1380 = vpop.f32.mrb[0].mxu0
  %1381 = vmatprep.mubr.bf16.mxu0 0
  %1382 = vmatmul.mubr.bf16.gmra.mrb[0].mxu0 %v951
  %v1383 = vpop.f32.mrb[0].mxu0
  %v1384 = vadd.f32 %v286, %v1383
  %v1385 = vpop.f32.mrb[0].mxu0
  %v1386 = vpop.f32.mrb[0].mxu0
  %v1387 = vadd.f32 %v286, %v1386
  %v1388 = vpop.f32.mrb[0].mxu0
  %1389 = vmatprep.mubr.bf16.mxu0 0
  %1390 = vmatmul.mubr.bf16.gmra.mrb[0].mxu0 %v954
  %v1391 = vpop.f32.mrb[0].mxu0
  %v1392 = vadd.f32 %v286, %v1391
  %v1393 = vpop.f32.mrb[0].mxu0
  %v1394 = vpop.f32.mrb[0].mxu0
  %v1395 = vadd.f32 %v286, %v1394
  %v1396 = vpop.f32.mrb[0].mxu0
  %1397 = vmatprep.mubr.bf16.mxu0 0
  %1398 = vmatmul.mubr.bf16.gmra.mrb[0].mxu0 %v957
  %v1399 = vpop.f32.mrb[0].mxu0
  %v1400 = vadd.f32 %v286, %v1399
  %v1401 = vpop.f32.mrb[0].mxu0
  %v1402 = vpop.f32.mrb[0].mxu0
  %v1403 = vadd.f32 %v286, %v1402
  %v1404 = vpop.f32.mrb[0].mxu0
  %1405 = vmatprep.mubr.bf16.mxu0 0
  %1406 = vmatmul.mubr.bf16.gmra.mrb[0].mxu0 %v960
  %v1407 = vpop.f32.mrb[0].mxu0
  %v1408 = vadd.f32 %v286, %v1407
  %v1409 = vpop.f32.mrb[0].mxu0
  %v1410 = vpop.f32.mrb[0].mxu0
  %v1411 = vadd.f32 %v286, %v1410
  %v1412 = vpop.f32.mrb[0].mxu0
  %1413 = vmatprep.mubr.bf16.mxu0 0
  %1414 = vmatmul.mubr.bf16.gmra.mrb[0].mxu0 %v963
  %v1415 = vpop.f32.mrb[0].mxu0
  %v1416 = vadd.f32 %v286, %v1415
  %v1417 = vpop.f32.mrb[0].mxu0
  %v1418 = vpop.f32.mrb[0].mxu0
  %v1419 = vadd.f32 %v286, %v1418
  %v1420 = vpop.f32.mrb[0].mxu0
  %1421 = vmatprep.mubr.bf16.mxu0 0
  %1422 = vmatmul.mubr.bf16.gmra.mrb[0].mxu0 %v966
  %v1423 = vpop.f32.mrb[0].mxu0
  %v1424 = vadd.f32 %v286, %v1423
  %v1425 = vpop.f32.mrb[0].mxu0
  %v1426 = vpop.f32.mrb[0].mxu0
  %v1427 = vadd.f32 %v286, %v1426
  %v1428 = vpop.f32.mrb[0].mxu0
  %1429 = vmatprep.mubr.bf16.mxu0 0
  %1430 = vmatmul.mubr.bf16.gmra.mrb[0].mxu0 %v969
  %v1431 = vpop.f32.mrb[0].mxu0
  %v1432 = vadd.f32 %v286, %v1431
  %v1433 = vpop.f32.mrb[0].mxu0
  %v1434 = vpop.f32.mrb[0].mxu0
  %v1435 = vadd.f32 %v286, %v1434
  %v1436 = vpop.f32.mrb[0].mxu0
  %1437 = vmatprep.mubr.bf16.mxu0 0
  %1438 = vmatmul.mubr.bf16.gmra.mrb[0].mxu0 %v972
  %v1439 = vpop.f32.mrb[0].mxu0
  %v1440 = vadd.f32 %v286, %v1439
  %v1441 = vpop.f32.mrb[0].mxu0
  %v1442 = vpop.f32.mrb[0].mxu0
  %v1443 = vadd.f32 %v286, %v1442
  %v1444 = vpop.f32.mrb[0].mxu0
  %1445 = vmatprep.mubr.bf16.mxu0 0
  %1446 = vmatmul.mubr.bf16.gmra.mrb[0].mxu0 %v975
  %v1447 = vpop.f32.mrb[0].mxu0
  %v1448 = vadd.f32 %v286, %v1447
  %v1449 = vpop.f32.mrb[0].mxu0
  %v1450 = vpop.f32.mrb[0].mxu0
  %v1451 = vadd.f32 %v286, %v1450
  %v1452 = vpop.f32.mrb[0].mxu0
  %1453 = vmatprep.mubr.bf16.mxu0 0
  %1454 = vmatmul.mubr.bf16.gmra.mrb[0].mxu0 %v978
  %v1455 = vpop.f32.mrb[0].mxu0
  %v1456 = vadd.f32 %v286, %v1455
  %v1457 = vpop.f32.mrb[0].mxu0
  %v1458 = vpop.f32.mrb[0].mxu0
  %v1459 = vadd.f32 %v286, %v1458
  %v1460 = vpop.f32.mrb[0].mxu0
  %1461 = vmatprep.mubr.bf16.mxu0 0
  %1462 = vmatmul.mubr.bf16.gmra.mrb[0].mxu0 %v981
  %v1463 = vpop.f32.mrb[0].mxu0
  %v1464 = vadd.f32 %v286, %v1463
  %v1465 = vpop.f32.mrb[0].mxu0
  %v1466 = vpop.f32.mrb[0].mxu0
  %v1467 = vadd.f32 %v286, %v1466
  %v1468 = vpop.f32.mrb[0].mxu0
  %1469 = vmatprep.mubr.bf16.mxu0 0
  %1470 = vmatmul.mubr.bf16.gmra.mrb[0].mxu0 %v984
  %v1471 = vpop.f32.mrb[0].mxu0
  %v1472 = vadd.f32 %v286, %v1471
  %v1473 = vpop.f32.mrb[0].mxu0
  %v1474 = vpop.f32.mrb[0].mxu0
  %v1475 = vadd.f32 %v286, %v1474
  %v1476 = vpop.f32.mrb[0].mxu0
  %1477 = vmatprep.mubr.bf16.mxu0 0
  %1478 = vmatmul.mubr.bf16.gmra.mrb[0].mxu0 %v987
  %v1479 = vpop.f32.mrb[0].mxu0
  %v1480 = vadd.f32 %v286, %v1479
  %v1481 = vpop.f32.mrb[0].mxu0
  %v1482 = vpop.f32.mrb[0].mxu0
  %v1483 = vadd.f32 %v286, %v1482
  %v1484 = vpop.f32.mrb[0].mxu0
  %1485 = vmatprep.mubr.bf16.mxu0 0
  %1486 = vmatmul.mubr.bf16.gmra.mrb[0].mxu0 %v990
  %v1487 = vpop.f32.mrb[0].mxu0
  %v1488 = vadd.f32 %v286, %v1487
  %v1489 = vpop.f32.mrb[0].mxu0
  %v1490 = vpop.f32.mrb[0].mxu0
  %v1491 = vadd.f32 %v286, %v1490
  %v1492 = vpop.f32.mrb[0].mxu0
  %1493 = vmatprep.mubr.bf16.mxu0 0
  %1494 = vmatmul.mubr.bf16.gmra.mrb[0].mxu0 %v993
  %v1495 = vpop.f32.mrb[0].mxu0
  %v1496 = vadd.f32 %v286, %v1495
  %v1497 = vpop.f32.mrb[0].mxu0
  %v1498 = vpop.f32.mrb[0].mxu0
  %v1499 = vadd.f32 %v286, %v1498
  %v1500 = vpop.f32.mrb[0].mxu0
  %1501 = vmatprep.mubr.bf16.mxu0 0
  %1502 = vmatmul.mubr.bf16.gmra.mrb[0].mxu0 %v996
  %v1503 = vpop.f32.mrb[0].mxu0
  %v1504 = vadd.f32 %v286, %v1503
  %v1505 = vpop.f32.mrb[0].mxu0
  %v1506 = vpop.f32.mrb[0].mxu0
  %v1507 = vadd.f32 %v286, %v1506
  %v1508 = vpop.f32.mrb[0].mxu0
  %1509 = vmatprep.mubr.bf16.mxu0 0
  %1510 = vmatmul.mubr.bf16.gmra.mrb[0].mxu0 %v999
  %v1511 = vpop.f32.mrb[0].mxu0
  %v1512 = vadd.f32 %v286, %v1511
  %v1513 = vpop.f32.mrb[0].mxu0
  %v1514 = vpop.f32.mrb[0].mxu0
  %v1515 = vadd.f32 %v286, %v1514
  %v1516 = vpop.f32.mrb[0].mxu0
  %1517 = vmatprep.mubr.bf16.mxu0 0
  %1518 = vmatmul.mubr.bf16.gmra.mrb[0].mxu0 %v1002
  %v1519 = vpop.f32.mrb[0].mxu0
  %v1520 = vadd.f32 %v286, %v1519
  %v1521 = vpop.f32.mrb[0].mxu0
  %v1522 = vpop.f32.mrb[0].mxu0
  %v1523 = vadd.f32 %v286, %v1522
  %v1524 = vpop.f32.mrb[0].mxu0
  %1525 = vmatprep.mubr.bf16.mxu0 0
  %1526 = vmatmul.mubr.bf16.gmra.mrb[0].mxu0 %v1005
  %v1527 = vpop.f32.mrb[0].mxu0
  %v1528 = vadd.f32 %v286, %v1527
  %v1529 = vpop.f32.mrb[0].mxu0
  %v1530 = vpop.f32.mrb[0].mxu0
  %v1531 = vadd.f32 %v286, %v1530
  %v1532 = vpop.f32.mrb[0].mxu0
  %1533 = vmatprep.mubr.bf16.mxu0 0
  %1534 = vmatmul.mubr.bf16.gmra.mrb[0].mxu0 %v1008
  %v1535 = vpop.f32.mrb[0].mxu0
  %v1536 = vadd.f32 %v286, %v1535
  %v1537 = vpop.f32.mrb[0].mxu0
  %v1538 = vpop.f32.mrb[0].mxu0
  %v1539 = vadd.f32 %v286, %v1538
  %v1540 = vpop.f32.mrb[0].mxu0
  %1541 = vmatprep.mubr.bf16.mxu0 0
  %1542 = vmatmul.mubr.bf16.gmra.mrb[0].mxu0 %v1011
  %v1543 = vpop.f32.mrb[0].mxu0
  %v1544 = vadd.f32 %v286, %v1543
  %v1545 = vpop.f32.mrb[0].mxu0
  %v1546 = vpop.f32.mrb[0].mxu0
  %v1547 = vadd.f32 %v286, %v1546
  %v1548 = vpop.f32.mrb[0].mxu0
  %1549 = vmatprep.mubr.bf16.mxu0 0
  %1550 = vmatmul.mubr.bf16.gmra.mrb[0].mxu0 %v1014
  %v1551 = vpop.f32.mrb[0].mxu0
  %v1552 = vadd.f32 %v286, %v1551
  %v1553 = vpop.f32.mrb[0].mxu0
  %v1554 = vpop.f32.mrb[0].mxu0
  %v1555 = vadd.f32 %v286, %v1554
  %v1556 = vpop.f32.mrb[0].mxu0
  %1557 = vmatprep.mubr.bf16.mxu0 0
  %1558 = vmatmul.mubr.bf16.gmra.mrb[0].mxu0 %v1017
  %v1559 = vpop.f32.mrb[0].mxu0
  %v1560 = vadd.f32 %v286, %v1559
  %v1561 = vpop.f32.mrb[0].mxu0
  %v1562 = vpop.f32.mrb[0].mxu0
  %v1563 = vadd.f32 %v286, %v1562
  %v1564 = vpop.f32.mrb[0].mxu0
  %1565 = vmatprep.mubr.bf16.mxu0 0
  %1566 = vmatmul.mubr.bf16.gmra.mrb[0].mxu0 %v1020
  %v1567 = vpop.f32.mrb[0].mxu0
  %v1568 = vadd.f32 %v286, %v1567
  %v1569 = vpop.f32.mrb[0].mxu0
  %v1570 = vpop.f32.mrb[0].mxu0
  %v1571 = vadd.f32 %v286, %v1570
  %v1572 = vpop.f32.mrb[0].mxu0
  %1573 = vmatprep.mubr.bf16.mxu0 0
  %1574 = vmatmul.mubr.bf16.gmra.mrb[0].mxu0 %v1023
  %v1575 = vpop.f32.mrb[0].mxu0
  %v1576 = vadd.f32 %v286, %v1575
  %v1577 = vpop.f32.mrb[0].mxu0
  %v1578 = vpop.f32.mrb[0].mxu0
  %v1579 = vadd.f32 %v286, %v1578
  %v1580 = vpop.f32.mrb[0].mxu0
  %1581 = vmatprep.mubr.bf16.mxu0 0
  %1582 = vmatmul.mubr.bf16.gmra.mrb[0].mxu0 %v1026
  %v1583 = vpop.f32.mrb[0].mxu0
  %v1584 = vadd.f32 %v286, %v1583
  %v1585 = vpop.f32.mrb[0].mxu0
  %v1586 = vpop.f32.mrb[0].mxu0
  %v1587 = vadd.f32 %v286, %v1586
  %v1588 = vpop.f32.mrb[0].mxu0
  %1589 = vmatprep.mubr.bf16.mxu0 0
  %1590 = vmatmul.mubr.bf16.gmra.mrb[0].mxu0 %v1029
  %v1591 = vpop.f32.mrb[0].mxu0
  %v1592 = vadd.f32 %v286, %v1591
  %v1593 = vpop.f32.mrb[0].mxu0
  %v1594 = vpop.f32.mrb[0].mxu0
  %v1595 = vadd.f32 %v286, %v1594
  %v1596 = vpop.f32.mrb[0].mxu0
  %1597 = vmatprep.mubr.bf16.mxu0 0
  %1598 = vmatmul.mubr.bf16.gmra.mrb[0].mxu0 %v1032
  %v1599 = vpop.f32.mrb[0].mxu0
  %v1600 = vadd.f32 %v286, %v1599
  %v1601 = vpop.f32.mrb[0].mxu0
  %v1602 = vpop.f32.mrb[0].mxu0
  %v1603 = vadd.f32 %v286, %v1602
  %v1604 = vpop.f32.mrb[0].mxu0
  %1605 = vmatprep.mubr.bf16.mxu0 0
  %1606 = vmatmul.mubr.bf16.gmra.mrb[0].mxu0 %v1035
  %v1607 = vpop.f32.mrb[0].mxu0
  %v1608 = vadd.f32 %v286, %v1607
  %v1609 = vpop.f32.mrb[0].mxu0
  %v1610 = vpop.f32.mrb[0].mxu0
  %v1611 = vadd.f32 %v286, %v1610
  %v1612 = vpop.f32.mrb[0].mxu0
  %1613 = vmatprep.mubr.bf16.mxu0 0
  %1614 = vmatmul.mubr.bf16.gmra.mrb[0].mxu0 %v1038
  %v1615 = vpop.f32.mrb[0].mxu0
  %v1616 = vadd.f32 %v286, %v1615
  %v1617 = vpop.f32.mrb[0].mxu0
  %v1618 = vpop.f32.mrb[0].mxu0
  %v1619 = vadd.f32 %v286, %v1618
  %v1620 = vpop.f32.mrb[0].mxu0
  %1621 = vmatprep.mubr.bf16.mxu0 0
  %1622 = vmatmul.mubr.bf16.gmra.mrb[0].mxu0 %v1041
  %v1623 = vpop.f32.mrb[0].mxu0
  %v1624 = vadd.f32 %v286, %v1623
  %v1625 = vpop.f32.mrb[0].mxu0
  %v1626 = vpop.f32.mrb[0].mxu0
  %v1627 = vadd.f32 %v286, %v1626
  %v1628 = vpop.f32.mrb[0].mxu0
  %1629 = vmatprep.mubr.bf16.mxu0 0
  %1630 = vmatmul.mubr.bf16.gmra.mrb[0].mxu0 %v1044
  %v1631 = vpop.f32.mrb[0].mxu0
  %v1632 = vadd.f32 %v286, %v1631
  %v1633 = vpop.f32.mrb[0].mxu0
  %v1634 = vpop.f32.mrb[0].mxu0
  %v1635 = vadd.f32 %v286, %v1634
  %v1636 = vpop.f32.mrb[0].mxu0
  %1637 = vmatprep.mubr.bf16.mxu0 0
  %1638 = vmatmul.mubr.bf16.gmra.mrb[0].mxu0 %v1047
  %v1639 = vpop.f32.mrb[0].mxu0
  %v1640 = vadd.f32 %v286, %v1639
  %v1641 = vpop.f32.mrb[0].mxu0
  %v1642 = vpop.f32.mrb[0].mxu0
  %v1643 = vadd.f32 %v286, %v1642
  %v1644 = vpop.f32.mrb[0].mxu0
  %1645 = vmatprep.mubr.bf16.mxu0 0
  %1646 = vmatmul.mubr.bf16.gmra.mrb[0].mxu0 %v1050
  %v1647 = vpop.f32.mrb[0].mxu0
  %v1648 = vadd.f32 %v286, %v1647
  %v1649 = vpop.f32.mrb[0].mxu0
  %v1650 = vpop.f32.mrb[0].mxu0
  %v1651 = vadd.f32 %v286, %v1650
  %v1652 = vpop.f32.mrb[0].mxu0
  %1653 = vmatprep.mubr.bf16.mxu0 0
  %1654 = vmatmul.mubr.bf16.gmra.mrb[0].mxu0 %v1053
  %v1655 = vpop.f32.mrb[0].mxu0
  %v1656 = vadd.f32 %v286, %v1655
  %v1657 = vpop.f32.mrb[0].mxu0
  %v1658 = vpop.f32.mrb[0].mxu0
  %v1659 = vadd.f32 %v286, %v1658
  %v1660 = vpop.f32.mrb[0].mxu0
  %1661 = vmatprep.mubr.bf16.mxu0 0
  %1662 = vmatmul.mubr.bf16.gmra.mrb[0].mxu0 %v1056
  %v1663 = vpop.f32.mrb[0].mxu0
  %v1664 = vadd.f32 %v286, %v1663
  %v1665 = vpop.f32.mrb[0].mxu0
  %v1666 = vpop.f32.mrb[0].mxu0
  %v1667 = vadd.f32 %v286, %v1666
  %v1668 = vpop.f32.mrb[0].mxu0
  %1669 = vmatprep.mubr.bf16.mxu0 0
  %1670 = vmatmul.mubr.bf16.gmra.mrb[0].mxu0 %v1059
  %v1671 = vpop.f32.mrb[0].mxu0
  %v1672 = vadd.f32 %v286, %v1671
  %v1673 = vpop.f32.mrb[0].mxu0
  %v1674 = vpop.f32.mrb[0].mxu0
  %v1675 = vadd.f32 %v286, %v1674
  %v1676 = vpop.f32.mrb[0].mxu0
  %1677 = vmatprep.mubr.bf16.mxu0 0
  %1678 = vmatmul.mubr.bf16.gmra.mrb[0].mxu0 %v1062
  %v1679 = vpop.f32.mrb[0].mxu0
  %v1680 = vadd.f32 %v286, %v1679
  %v1681 = vpop.f32.mrb[0].mxu0
  %v1682 = vpop.f32.mrb[0].mxu0
  %v1683 = vadd.f32 %v286, %v1682
  %v1684 = vpop.f32.mrb[0].mxu0
  %1685 = vmatprep.mubr.bf16.mxu0 0
  %1686 = vmatmul.mubr.bf16.gmra.mrb[0].mxu0 %v1065
  %v1687 = vpop.f32.mrb[0].mxu0
  %v1688 = vadd.f32 %v286, %v1687
  %v1689 = vpop.f32.mrb[0].mxu0
  %v1690 = vpop.f32.mrb[0].mxu0
  %v1691 = vadd.f32 %v286, %v1690
  %v1692 = vpop.f32.mrb[0].mxu0
  %1693 = vmatprep.mubr.bf16.mxu0 0
  %1694 = vmatmul.mubr.bf16.gmra.mrb[0].mxu0 %v1068
  %v1695 = vpop.f32.mrb[0].mxu0
  %v1696 = vadd.f32 %v286, %v1695
  %v1697 = vpop.f32.mrb[0].mxu0
  %v1698 = vpop.f32.mrb[0].mxu0
  %v1699 = vadd.f32 %v286, %v1698
  %v1700 = vpop.f32.mrb[0].mxu0
  %1701 = vmatprep.mubr.bf16.mxu0 0
  %1702 = vmatmul.mubr.bf16.gmra.mrb[0].mxu0 %v1071
  %v1703 = vpop.f32.mrb[0].mxu0
  %v1704 = vadd.f32 %v286, %v1703
  %v1705 = vpop.f32.mrb[0].mxu0
  %v1706 = vpop.f32.mrb[0].mxu0
  %v1707 = vadd.f32 %v286, %v1706
  %v1708 = vpop.f32.mrb[0].mxu0
  %1709 = vmatprep.mubr.bf16.mxu0 0
  %1710 = vmatmul.mubr.bf16.gmra.mrb[0].mxu0 %v1074
  %v1711 = vpop.f32.mrb[0].mxu0
  %v1712 = vadd.f32 %v286, %v1711
  %v1713 = vpop.f32.mrb[0].mxu0
  %v1714 = vpop.f32.mrb[0].mxu0
  %v1715 = vadd.f32 %v286, %v1714
  %v1716 = vpop.f32.mrb[0].mxu0
  %1717 = vmatprep.mubr.bf16.mxu0 0
  %1718 = vmatmul.mubr.bf16.gmra.mrb[0].mxu0 %v1077
  %v1719 = vpop.f32.mrb[0].mxu0
  %v1720 = vadd.f32 %v286, %v1719
  %v1721 = vpop.f32.mrb[0].mxu0
  %v1722 = vpop.f32.mrb[0].mxu0
  %v1723 = vadd.f32 %v286, %v1722
  %v1724 = vpop.f32.mrb[0].mxu0
  %1725 = vmatprep.mubr.bf16.mxu0 0
  %1726 = vmatmul.mubr.bf16.gmra.mrb[0].mxu0 %v1080
  %v1727 = vpop.f32.mrb[0].mxu0
  %v1728 = vadd.f32 %v286, %v1727
  %v1729 = vpop.f32.mrb[0].mxu0
  %v1730 = vpop.f32.mrb[0].mxu0
  %v1731 = vadd.f32 %v286, %v1730
  %v1732 = vpop.f32.mrb[0].mxu0
  %1733 = vmatprep.mubr.bf16.mxu0 0
  %1734 = vmatmul.mubr.bf16.gmra.mrb[0].mxu0 %v1083
  %v1735 = vpop.f32.mrb[0].mxu0
  %v1736 = vadd.f32 %v286, %v1735
  %v1737 = vpop.f32.mrb[0].mxu0
  %v1738 = vpop.f32.mrb[0].mxu0
  %v1739 = vadd.f32 %v286, %v1738
  %v1740 = vpop.f32.mrb[0].mxu0
  %1741 = vmatprep.mubr.bf16.mxu0 0
  %1742 = vmatmul.mubr.bf16.gmra.mrb[0].mxu0 %v1086
  %v1743 = vpop.f32.mrb[0].mxu0
  %v1744 = vadd.f32 %v286, %v1743
  %v1745 = vpop.f32.mrb[0].mxu0
  %v1746 = vpop.f32.mrb[0].mxu0
  %v1747 = vadd.f32 %v286, %v1746
  %v1748 = vpop.f32.mrb[0].mxu0
  %1749 = vmatprep.mubr.bf16.mxu0 0
  %1750 = vmatmul.mubr.bf16.gmra.mrb[0].mxu0 %v1089
  %v1751 = vpop.f32.mrb[0].mxu0
  %v1752 = vadd.f32 %v286, %v1751
  %v1753 = vpop.f32.mrb[0].mxu0
  %v1754 = vpop.f32.mrb[0].mxu0
  %v1755 = vadd.f32 %v286, %v1754
  %v1756 = vpop.f32.mrb[0].mxu0
  %1757 = vmatprep.mubr.bf16.mxu0 0
  %1758 = vmatmul.mubr.bf16.gmra.mrb[0].mxu0 %v1092
  %v1759 = vpop.f32.mrb[0].mxu0
  %v1760 = vadd.f32 %v286, %v1759
  %v1761 = vpop.f32.mrb[0].mxu0
  %v1762 = vpop.f32.mrb[0].mxu0
  %v1763 = vadd.f32 %v286, %v1762
  %v1764 = vpop.f32.mrb[0].mxu0
  %1765 = vmatprep.mubr.bf16.mxu0 0
  %1766 = vmatmul.mubr.bf16.gmra.mrb[0].mxu0 %v1095
  %v1767 = vpop.f32.mrb[0].mxu0
  %v1768 = vadd.f32 %v286, %v1767
  %v1769 = vpop.f32.mrb[0].mxu0
  %v1770 = vpop.f32.mrb[0].mxu0
  %v1771 = vadd.f32 %v286, %v1770
  %v1772 = vpop.f32.mrb[0].mxu0
  %1773 = vmatprep.mubr.bf16.mxu0 0
  %1774 = vmatmul.mubr.bf16.gmra.mrb[0].mxu0 %v1098
  %v1775 = vpop.f32.mrb[0].mxu0
  %v1776 = vadd.f32 %v286, %v1775
  %v1777 = vpop.f32.mrb[0].mxu0
  %v1778 = vpop.f32.mrb[0].mxu0
  %v1779 = vadd.f32 %v286, %v1778
  %v1780 = vpop.f32.mrb[0].mxu0
  %1781 = vmatprep.mubr.bf16.mxu0 0
  %1782 = vmatmul.mubr.bf16.gmra.mrb[0].mxu0 %v1101
  %v1783 = vpop.f32.mrb[0].mxu0
  %v1784 = vadd.f32 %v286, %v1783
  %v1785 = vpop.f32.mrb[0].mxu0
  %v1786 = vpop.f32.mrb[0].mxu0
  %v1787 = vadd.f32 %v286, %v1786
  %v1788 = vpop.f32.mrb[0].mxu0
  %1789 = vmatprep.mubr.bf16.mxu0 0
  %1790 = vmatmul.mubr.bf16.gmra.mrb[0].mxu0 %v1104
  %v1791 = vpop.f32.mrb[0].mxu0
  %v1792 = vadd.f32 %v286, %v1791
  %v1793 = vpop.f32.mrb[0].mxu0
  %v1794 = vpop.f32.mrb[0].mxu0
  %v1795 = vadd.f32 %v286, %v1794
  %v1796 = vpop.f32.mrb[0].mxu0
  %1797 = vmatprep.mubr.bf16.mxu0 0
  %1798 = vmatmul.mubr.bf16.gmra.mrb[0].mxu0 %v1107
  %v1799 = vpop.f32.mrb[0].mxu0
  %v1800 = vadd.f32 %v286, %v1799
  %v1801 = vpop.f32.mrb[0].mxu0
  %v1802 = vpop.f32.mrb[0].mxu0
  %v1803 = vadd.f32 %v286, %v1802
  %v1804 = vpop.f32.mrb[0].mxu0
  %1805 = vmatprep.mubr.bf16.mxu0 0
  %1806 = vmatmul.mubr.bf16.gmra.mrb[0].mxu0 %v1110
  %v1807 = vpop.f32.mrb[0].mxu0
  %v1808 = vadd.f32 %v286, %v1807
  %v1809 = vpop.f32.mrb[0].mxu0
  %v1810 = vpop.f32.mrb[0].mxu0
  %v1811 = vadd.f32 %v286, %v1810
  %v1812 = vpop.f32.mrb[0].mxu0
  %1813 = vmatprep.mubr.bf16.mxu0 0
  %1814 = vmatmul.mubr.bf16.gmra.mrb[0].mxu0 %v1113
  %v1815 = vpop.f32.mrb[0].mxu0
  %v1816 = vadd.f32 %v286, %v1815
  %v1817 = vpop.f32.mrb[0].mxu0
  %v1818 = vpop.f32.mrb[0].mxu0
  %v1819 = vadd.f32 %v286, %v1818
  %v1820 = vpop.f32.mrb[0].mxu0
  %1821 = vmatprep.mubr.bf16.mxu0 0
  %1822 = vmatmul.mubr.bf16.gmra.mrb[0].mxu0 %v1116
  %v1823 = vpop.f32.mrb[0].mxu0
  %v1824 = vadd.f32 %v286, %v1823
  %v1825 = vpop.f32.mrb[0].mxu0
  %v1826 = vpop.f32.mrb[0].mxu0
  %v1827 = vadd.f32 %v286, %v1826
  %v1828 = vpop.f32.mrb[0].mxu0
  %1829 = vmatprep.mubr.bf16.mxu0 0
  %1830 = vmatmul.mubr.bf16.gmra.mrb[0].mxu0 %v1119
  %v1831 = vpop.f32.mrb[0].mxu0
  %v1832 = vadd.f32 %v286, %v1831
  %v1833 = vpop.f32.mrb[0].mxu0
  %v1834 = vpop.f32.mrb[0].mxu0
  %v1835 = vadd.f32 %v286, %v1834
  %v1836 = vpop.f32.mrb[0].mxu0
  %1837 = vmatprep.mubr.bf16.mxu0 0
  %1838 = vmatmul.mubr.bf16.gmra.mrb[0].mxu0 %v1122
  %v1839 = vpop.f32.mrb[0].mxu0
  %v1840 = vadd.f32 %v286, %v1839
  %v1841 = vpop.f32.mrb[0].mxu0
  %v1842 = vpop.f32.mrb[0].mxu0
  %v1843 = vadd.f32 %v286, %v1842
  %v1844 = vpop.f32.mrb[0].mxu0
  %1845 = vmatprep.mubr.bf16.mxu0 0
  %1846 = vmatmul.mubr.bf16.gmra.mrb[0].mxu0 %v1125
  %v1847 = vpop.f32.mrb[0].mxu0
  %v1848 = vadd.f32 %v286, %v1847
  %v1849 = vpop.f32.mrb[0].mxu0
  %v1850 = vpop.f32.mrb[0].mxu0
  %v1851 = vadd.f32 %v286, %v1850
  %v1852 = vpop.f32.mrb[0].mxu0
  %1853 = vmatprep.mubr.bf16.mxu0 0
  %1854 = vmatmul.mubr.bf16.gmra.mrb[0].mxu0 %v1128
  %v1855 = vpop.f32.mrb[0].mxu0
  %v1856 = vadd.f32 %v286, %v1855
  %v1857 = vpop.f32.mrb[0].mxu0
  %v1858 = vpop.f32.mrb[0].mxu0
  %v1859 = vadd.f32 %v286, %v1858
  %v1860 = vpop.f32.mrb[0].mxu0
  %1861 = vmatprep.mubr.bf16.mxu0 0
  %1862 = vmatmul.mubr.bf16.gmra.mrb[0].mxu0 %v1131
  %v1863 = vpop.f32.mrb[0].mxu0
  %v1864 = vadd.f32 %v286, %v1863
  %v1865 = vpop.f32.mrb[0].mxu0
  %v1866 = vpop.f32.mrb[0].mxu0
  %v1867 = vadd.f32 %v286, %v1866
  %v1868 = vpop.f32.mrb[0].mxu0
  %1869 = vmatprep.mubr.bf16.mxu0 0
  %1870 = vmatmul.mubr.bf16.gmra.mrb[0].mxu0 %v1134
  %v1871 = vpop.f32.mrb[0].mxu0
  %v1872 = vadd.f32 %v286, %v1871
  %v1873 = vpop.f32.mrb[0].mxu0
  %v1874 = vpop.f32.mrb[0].mxu0
  %v1875 = vadd.f32 %v286, %v1874
  %v1876 = vpop.f32.mrb[0].mxu0
  %1877 = vmatprep.mubr.bf16.mxu0 0
  %1878 = vmatmul.mubr.bf16.gmra.mrb[0].mxu0 %v1137
  %v1879 = vpop.f32.mrb[0].mxu0
  %v1880 = vadd.f32 %v286, %v1879
  %v1881 = vpop.f32.mrb[0].mxu0
  %v1882 = vpop.f32.mrb[0].mxu0
  %v1883 = vadd.f32 %v286, %v1882
  %v1884 = vpop.f32.mrb[0].mxu0
  %1885 = vmatprep.mubr.bf16.mxu0 0
  %1886 = vmatmul.mubr.bf16.gmra.mrb[0].mxu0 %v1140
  %v1887 = vpop.f32.mrb[0].mxu0
  %v1888 = vadd.f32 %v286, %v1887
  %v1889 = vpop.f32.mrb[0].mxu0
  %v1890 = vpop.f32.mrb[0].mxu0
  %v1891 = vadd.f32 %v286, %v1890
  %v1892 = vpop.f32.mrb[0].mxu0
  %1893 = vmatprep.mubr.bf16.mxu0 0
  %1894 = vmatmul.mubr.bf16.gmra.mrb[0].mxu0 %v1143
  %v1895 = vpop.f32.mrb[0].mxu0
  %v1896 = vadd.f32 %v286, %v1895
  %v1897 = vpop.f32.mrb[0].mxu0
  %v1898 = vpop.f32.mrb[0].mxu0
  %v1899 = vadd.f32 %v286, %v1898
  %v1900 = vpop.f32.mrb[0].mxu0
  %1901 = vmatprep.mubr.bf16.mxu0 0
  %1902 = vmatmul.mubr.bf16.gmra.mrb[0].mxu0 %v1146
  %v1903 = vpop.f32.mrb[0].mxu0
  %v1904 = vadd.f32 %v286, %v1903
  %v1905 = vpop.f32.mrb[0].mxu0
  %v1906 = vpop.f32.mrb[0].mxu0
  %v1907 = vadd.f32 %v286, %v1906
  %v1908 = vpop.f32.mrb[0].mxu0
  %1909 = vmatprep.mubr.bf16.mxu0 0
  %1910 = vmatmul.mubr.bf16.gmra.mrb[0].mxu0 %v1149
  %v1911 = vpop.f32.mrb[0].mxu0
  %v1912 = vadd.f32 %v286, %v1911
  %v1913 = vpop.f32.mrb[0].mxu0
  %v1914 = vpop.f32.mrb[0].mxu0
  %v1915 = vadd.f32 %v286, %v1914
  %v1916 = vpop.f32.mrb[0].mxu0
  %1917 = vmatprep.mubr.bf16.mxu0 0
  %1918 = vmatmul.mubr.bf16.gmra.mrb[0].mxu0 %v1152
  %v1919 = vpop.f32.mrb[0].mxu0
  %v1920 = vadd.f32 %v286, %v1919
  %v1921 = vpop.f32.mrb[0].mxu0
  %v1922 = vpop.f32.mrb[0].mxu0
  %v1923 = vadd.f32 %v286, %v1922
  %v1924 = vpop.f32.mrb[0].mxu0
  %1925 = vmatprep.mubr.bf16.mxu0 0
  %1926 = vmatmul.mubr.bf16.gmra.mrb[0].mxu0 %v1155
  %v1927 = vpop.f32.mrb[0].mxu0
  %v1928 = vadd.f32 %v286, %v1927
  %v1929 = vpop.f32.mrb[0].mxu0
  %v1930 = vpop.f32.mrb[0].mxu0
  %v1931 = vadd.f32 %v286, %v1930
  %v1932 = vpop.f32.mrb[0].mxu0
  %1933 = vmatprep.mubr.bf16.mxu0 0
  %1934 = vmatmul.mubr.bf16.gmra.mrb[0].mxu0 %v1158
  %v1935 = vpop.f32.mrb[0].mxu0
  %v1936 = vadd.f32 %v286, %v1935
  %v1937 = vpop.f32.mrb[0].mxu0
  %v1938 = vpop.f32.mrb[0].mxu0
  %v1939 = vadd.f32 %v286, %v1938
  %v1940 = vpop.f32.mrb[0].mxu0
  %1941 = vmatprep.mubr.bf16.mxu0 0
  %1942 = vmatmul.mubr.bf16.gmra.mrb[0].mxu0 %v1161
  %v1943 = vpop.f32.mrb[0].mxu0
  %v1944 = vadd.f32 %v286, %v1943
  %v1945 = vpop.f32.mrb[0].mxu0
  %v1946 = vpop.f32.mrb[0].mxu0
  %v1947 = vadd.f32 %v286, %v1946
  %v1948 = vpop.f32.mrb[0].mxu0
  %1949 = vmatprep.mubr.bf16.mxu0 0
  %1950 = vmatmul.mubr.bf16.gmra.mrb[0].mxu0 %v1164
  %v1951 = vpop.f32.mrb[0].mxu0
  %v1952 = vadd.f32 %v286, %v1951
  %v1953 = vpop.f32.mrb[0].mxu0
  %v1954 = vpop.f32.mrb[0].mxu0
  %v1955 = vadd.f32 %v286, %v1954
  %v1956 = vpop.f32.mrb[0].mxu0
  %1957 = vmatprep.mubr.bf16.mxu0 0
  %1958 = vmatmul.mubr.bf16.gmra.mrb[0].mxu0 %v1167
  %v1959 = vpop.f32.mrb[0].mxu0
  %v1960 = vadd.f32 %v286, %v1959
  %v1961 = vpop.f32.mrb[0].mxu0
  %v1962 = vpop.f32.mrb[0].mxu0
  %v1963 = vadd.f32 %v286, %v1962
  %v1964 = vpop.f32.mrb[0].mxu0
  %1965 = vmatprep.mubr.bf16.mxu0 0
  %1966 = vmatmul.mubr.bf16.gmra.mrb[0].mxu0 %v1170
  %v1967 = vpop.f32.mrb[0].mxu0
  %v1968 = vadd.f32 %v286, %v1967
  %v1969 = vpop.f32.mrb[0].mxu0
  %v1970 = vpop.f32.mrb[0].mxu0
  %v1971 = vadd.f32 %v286, %v1970
  %v1972 = vpop.f32.mrb[0].mxu0
  %1973 = vmatprep.mubr.bf16.mxu0 0
  %1974 = vmatmul.mubr.bf16.gmra.mrb[0].mxu0 %v1173
  %v1975 = vpop.f32.mrb[0].mxu0
  %v1976 = vadd.f32 %v286, %v1975
  %v1977 = vpop.f32.mrb[0].mxu0
  %v1978 = vpop.f32.mrb[0].mxu0
  %v1979 = vadd.f32 %v286, %v1978
  %v1980 = vpop.f32.mrb[0].mxu0
  %1981 = vmatprep.mubr.bf16.mxu0 0
  %1982 = vmatmul.mubr.bf16.gmra.mrb[0].mxu0 %v1176
  %v1983 = vpop.f32.mrb[0].mxu0
  %v1984 = vadd.f32 %v286, %v1983
  %v1985 = vpop.f32.mrb[0].mxu0
  %v1986 = vpop.f32.mrb[0].mxu0
  %v1987 = vadd.f32 %v286, %v1986
  %v1988 = vpop.f32.mrb[0].mxu0
  %1989 = vmatprep.mubr.bf16.mxu0 0
  %1990 = vmatmul.mubr.bf16.gmra.mrb[0].mxu0 %v1179
  %v1991 = vpop.f32.mrb[0].mxu0
  %v1992 = vadd.f32 %v286, %v1991
  %v1993 = vpop.f32.mrb[0].mxu0
  %v1994 = vpop.f32.mrb[0].mxu0
  %v1995 = vadd.f32 %v286, %v1994
  %v1996 = vpop.f32.mrb[0].mxu0
  %1997 = vmatprep.mubr.bf16.mxu0 0
  %1998 = vmatmul.mubr.bf16.gmra.mrb[0].mxu0 %v1182
  %v1999 = vpop.f32.mrb[0].mxu0
  %v2000 = vadd.f32 %v286, %v1999
  %v2001 = vpop.f32.mrb[0].mxu0
  %v2002 = vpop.f32.mrb[0].mxu0
  %v2003 = vadd.f32 %v286, %v2002
  %v2004 = vpop.f32.mrb[0].mxu0
  %2005 = vmatprep.mubr.bf16.mxu0 0
  %2006 = vmatmul.mubr.bf16.gmra.mrb[0].mxu0 %v1185
  %v2007 = vpop.f32.mrb[0].mxu0
  %v2008 = vadd.f32 %v286, %v2007
  %v2009 = vpop.f32.mrb[0].mxu0
  %v2010 = vpop.f32.mrb[0].mxu0
  %v2011 = vadd.f32 %v286, %v2010
  %v2012 = vpop.f32.mrb[0].mxu0
  %2013 = vmatprep.mubr.bf16.mxu0 0
  %2014 = vmatmul.mubr.bf16.gmra.mrb[0].mxu0 %v1188
  %v2015 = vpop.f32.mrb[0].mxu0
  %v2016 = vadd.f32 %v286, %v2015
  %v2017 = vpop.f32.mrb[0].mxu0
  %v2018 = vpop.f32.mrb[0].mxu0
  %v2019 = vadd.f32 %v286, %v2018
  %v2020 = vpop.f32.mrb[0].mxu0
  %2021 = vmatprep.mubr.bf16.mxu0 0
  %2022 = vmatmul.mubr.bf16.gmra.mrb[0].mxu0 %v1191
  %v2023 = vpop.f32.mrb[0].mxu0
  %v2024 = vadd.f32 %v286, %v2023
  %v2025 = vpop.f32.mrb[0].mxu0
  %v2026 = vpop.f32.mrb[0].mxu0
  %v2027 = vadd.f32 %v286, %v2026
  %v2028 = vpop.f32.mrb[0].mxu0
  %2029 = vmatprep.mubr.bf16.mxu0 0
  %2030 = vmatmul.mubr.bf16.gmra.mrb[0].mxu0 %v1194
  %v2031 = vpop.f32.mrb[0].mxu0
  %v2032 = vadd.f32 %v286, %v2031
  %v2033 = vpop.f32.mrb[0].mxu0
  %v2034 = vpop.f32.mrb[0].mxu0
  %v2035 = vadd.f32 %v286, %v2034
  %v2036 = vpop.f32.mrb[0].mxu0
  %2037 = vmatprep.mubr.bf16.mxu0 0
  %2038 = vmatmul.mubr.bf16.gmra.mrb[0].mxu0 %v1197
  %v2039 = vpop.f32.mrb[0].mxu0
  %v2040 = vadd.f32 %v286, %v2039
  %v2041 = vpop.f32.mrb[0].mxu0
  %v2042 = vpop.f32.mrb[0].mxu0
  %v2043 = vadd.f32 %v286, %v2042
  %v2044 = vpop.f32.mrb[0].mxu0
  %2045 = vmatprep.mubr.bf16.mxu0 0
  %2046 = vmatmul.mubr.bf16.gmra.mrb[0].mxu0 %v1200
  %v2047 = vpop.f32.mrb[0].mxu0
  %v2048 = vadd.f32 %v286, %v2047
  %v2049 = vpop.f32.mrb[0].mxu0
  %v2050 = vpop.f32.mrb[0].mxu0
  %v2051 = vadd.f32 %v286, %v2050
  %v2052 = vpop.f32.mrb[0].mxu0
  %2053 = vmatprep.mubr.bf16.mxu0 0
  %2054 = vmatmul.mubr.bf16.gmra.mrb[0].mxu0 %v1203
  %v2055 = vpop.f32.mrb[0].mxu0
  %v2056 = vadd.f32 %v286, %v2055
  %v2057 = vpop.f32.mrb[0].mxu0
  %v2058 = vpop.f32.mrb[0].mxu0
  %v2059 = vadd.f32 %v286, %v2058
  %v2060 = vpop.f32.mrb[0].mxu0
  %2061 = vmatprep.mubr.bf16.mxu0 0
  %2062 = vmatmul.mubr.bf16.gmra.mrb[0].mxu0 %v1206
  %v2063 = vpop.f32.mrb[0].mxu0
  %v2064 = vadd.f32 %v286, %v2063
  %v2065 = vpop.f32.mrb[0].mxu0
  %v2066 = vpop.f32.mrb[0].mxu0
  %v2067 = vadd.f32 %v286, %v2066
  %v2068 = vpop.f32.mrb[0].mxu0
  %2069 = vmatprep.mubr.bf16.mxu0 0
  %2070 = vmatmul.mubr.bf16.gmra.mrb[0].mxu0 %v1209
  %v2071 = vpop.f32.mrb[0].mxu0
  %v2072 = vadd.f32 %v286, %v2071
  %v2073 = vpop.f32.mrb[0].mxu0
  %v2074 = vpop.f32.mrb[0].mxu0
  %v2075 = vadd.f32 %v286, %v2074
  %v2076 = vpop.f32.mrb[0].mxu0
  %2077 = vmatprep.mubr.bf16.mxu0 0
  %2078 = vmatmul.mubr.bf16.gmra.mrb[0].mxu0 %v1212
  %v2079 = vpop.f32.mrb[0].mxu0
  %v2080 = vadd.f32 %v286, %v2079
  %v2081 = vpop.f32.mrb[0].mxu0
  %v2082 = vpop.f32.mrb[0].mxu0
  %v2083 = vadd.f32 %v286, %v2082
  %v2084 = vpop.f32.mrb[0].mxu0
  %2085 = vmatprep.mubr.bf16.mxu0 0
  %2086 = vmatmul.mubr.bf16.gmra.mrb[0].mxu0 %v1215
  %v2087 = vpop.f32.mrb[0].mxu0
  %v2088 = vadd.f32 %v286, %v2087
  %v2089 = vpop.f32.mrb[0].mxu0
  %v2090 = vpop.f32.mrb[0].mxu0
  %v2091 = vadd.f32 %v286, %v2090
  %v2092 = vpop.f32.mrb[0].mxu0
  %2093 = vmatprep.mubr.bf16.mxu0 0
  %2094 = vmatmul.mubr.bf16.gmra.mrb[0].mxu0 %v1218
  %v2095 = vpop.f32.mrb[0].mxu0
  %v2096 = vadd.f32 %v286, %v2095
  %v2097 = vpop.f32.mrb[0].mxu0
  %v2098 = vpop.f32.mrb[0].mxu0
  %v2099 = vadd.f32 %v286, %v2098
  %v2100 = vpop.f32.mrb[0].mxu0
  %2101 = vmatprep.mubr.bf16.mxu0 0
  %2102 = vmatmul.mubr.bf16.gmra.mrb[0].mxu0 %v1221
  %v2103 = vpop.f32.mrb[0].mxu0
  %v2104 = vadd.f32 %v286, %v2103
  %v2105 = vpop.f32.mrb[0].mxu0
  %v2106 = vpop.f32.mrb[0].mxu0
  %v2107 = vadd.f32 %v286, %v2106
  %v2108 = vpop.f32.mrb[0].mxu0
  %2109 = vmatprep.mubr.bf16.mxu0 0
  %2110 = vmatmul.mubr.bf16.gmra.mrb[0].mxu0 %v1224
  %v2111 = vpop.f32.mrb[0].mxu0
  %v2112 = vadd.f32 %v286, %v2111
  %v2113 = vpop.f32.mrb[0].mxu0
  %v2114 = vpop.f32.mrb[0].mxu0
  %v2115 = vadd.f32 %v286, %v2114
  %v2116 = vpop.f32.mrb[0].mxu0
  %2117 = vmatprep.mubr.bf16.mxu0 0
  %2118 = vmatmul.mubr.bf16.gmra.mrb[0].mxu0 %v1227
  %v2119 = vpop.f32.mrb[0].mxu0
  %v2120 = vadd.f32 %v286, %v2119
  %v2121 = vpop.f32.mrb[0].mxu0
  %v2122 = vpop.f32.mrb[0].mxu0
  %v2123 = vadd.f32 %v286, %v2122
  %v2124 = vpop.f32.mrb[0].mxu0
  %2125 = vmatprep.mubr.bf16.mxu0 0
  %2126 = vmatmul.mubr.bf16.gmra.mrb[0].mxu0 %v1230
  %v2127 = vpop.f32.mrb[0].mxu0
  %v2128 = vadd.f32 %v286, %v2127
  %v2129 = vpop.f32.mrb[0].mxu0
  %v2130 = vpop.f32.mrb[0].mxu0
  %v2131 = vadd.f32 %v286, %v2130
  %v2132 = vpop.f32.mrb[0].mxu0
  %2133 = vmatprep.mubr.bf16.mxu0 0
  %2134 = vmatmul.mubr.bf16.gmra.mrb[0].mxu0 %v1233
  %v2135 = vpop.f32.mrb[0].mxu0
  %v2136 = vadd.f32 %v286, %v2135
  %v2137 = vpop.f32.mrb[0].mxu0
  %v2138 = vpop.f32.mrb[0].mxu0
  %v2139 = vadd.f32 %v286, %v2138
  %v2140 = vpop.f32.mrb[0].mxu0
  %2141 = vmatprep.mubr.bf16.mxu0 0
  %2142 = vmatmul.mubr.bf16.gmra.mrb[0].mxu0 %v1236
  %v2143 = vpop.f32.mrb[0].mxu0
  %v2144 = vadd.f32 %v286, %v2143
  %v2145 = vpop.f32.mrb[0].mxu0
  %v2146 = vpop.f32.mrb[0].mxu0
  %v2147 = vadd.f32 %v286, %v2146
  %v2148 = vpop.f32.mrb[0].mxu0
  %2149 = vmatprep.mubr.bf16.mxu0 0
  %2150 = vmatmul.mubr.bf16.gmra.mrb[0].mxu0 %v1239
  %v2151 = vpop.f32.mrb[0].mxu0
  %v2152 = vadd.f32 %v286, %v2151
  %v2153 = vpop.f32.mrb[0].mxu0
  %v2154 = vpop.f32.mrb[0].mxu0
  %v2155 = vadd.f32 %v286, %v2154
  %v2156 = vpop.f32.mrb[0].mxu0
  %2157 = vmatprep.mubr.bf16.mxu0 0
  %2158 = vmatmul.mubr.bf16.gmra.mrb[0].mxu0 %v1242
  %v2159 = vpop.f32.mrb[0].mxu0
  %v2160 = vadd.f32 %v286, %v2159
  %v2161 = vpop.f32.mrb[0].mxu0
  %v2162 = vpop.f32.mrb[0].mxu0
  %v2163 = vadd.f32 %v286, %v2162
  %v2164 = vpop.f32.mrb[0].mxu0
  %2165 = vmatprep.mubr.bf16.mxu0 0
  %2166 = vmatmul.mubr.bf16.gmra.mrb[0].mxu0 %v1245
  %v2167 = vpop.f32.mrb[0].mxu0
  %v2168 = vadd.f32 %v286, %v2167
  %v2169 = vpop.f32.mrb[0].mxu0
  %v2170 = vpop.f32.mrb[0].mxu0
  %v2171 = vadd.f32 %v286, %v2170
  %v2172 = vpop.f32.mrb[0].mxu0
  %2173 = vmatprep.mubr.bf16.mxu0 0
  %2174 = vmatmul.mubr.bf16.gmra.mrb[0].mxu0 %v1248
  %v2175 = vpop.f32.mrb[0].mxu0
  %v2176 = vadd.f32 %v286, %v2175
  %v2177 = vpop.f32.mrb[0].mxu0
  %v2178 = vpop.f32.mrb[0].mxu0
  %v2179 = vadd.f32 %v286, %v2178
  %v2180 = vpop.f32.mrb[0].mxu0
  %2181 = vmatprep.mubr.bf16.mxu0 0
  %2182 = vmatmul.mubr.bf16.gmra.mrb[0].mxu0 %v1251
  %v2183 = vpop.f32.mrb[0].mxu0
  %v2184 = vadd.f32 %v286, %v2183
  %v2185 = vpop.f32.mrb[0].mxu0
  %v2186 = vpop.f32.mrb[0].mxu0
  %v2187 = vadd.f32 %v286, %v2186
  %v2188 = vpop.f32.mrb[0].mxu0
  %2189 = vmatprep.mubr.bf16.mxu0 0
  %2190 = vmatmul.mubr.bf16.gmra.mrb[0].mxu0 %v1254
  %v2191 = vpop.f32.mrb[0].mxu0
  %v2192 = vadd.f32 %v286, %v2191
  %v2193 = vpop.f32.mrb[0].mxu0
  %v2194 = vpop.f32.mrb[0].mxu0
  %v2195 = vadd.f32 %v286, %v2194
  %v2196 = vpop.f32.mrb[0].mxu0
  %2197 = vmatprep.mubr.bf16.mxu0 0
  %2198 = vmatmul.mubr.bf16.gmra.mrb[0].mxu0 %v1257
  %v2199 = vpop.f32.mrb[0].mxu0
  %v2200 = vadd.f32 %v286, %v2199
  %v2201 = vpop.f32.mrb[0].mxu0
  %v2202 = vpop.f32.mrb[0].mxu0
  %v2203 = vadd.f32 %v286, %v2202
  %v2204 = vpop.f32.mrb[0].mxu0
  %2205 = vmatprep.mubr.bf16.mxu0 0
  %2206 = vmatmul.mubr.bf16.gmra.mrb[0].mxu0 %v1260
  %v2207 = vpop.f32.mrb[0].mxu0
  %v2208 = vadd.f32 %v286, %v2207
  %v2209 = vpop.f32.mrb[0].mxu0
  %v2210 = vpop.f32.mrb[0].mxu0
  %v2211 = vadd.f32 %v286, %v2210
  %v2212 = vpop.f32.mrb[0].mxu0
  %2213 = vmatprep.mubr.bf16.mxu0 0
  %2214 = vmatmul.mubr.bf16.gmra.mrb[0].mxu0 %v1263
  %v2215 = vpop.f32.mrb[0].mxu0
  %v2216 = vadd.f32 %v286, %v2215
  %v2217 = vpop.f32.mrb[0].mxu0
  %v2218 = vpop.f32.mrb[0].mxu0
  %v2219 = vadd.f32 %v286, %v2218
  %v2220 = vpop.f32.mrb[0].mxu0
  %2221 = vmatprep.mubr.bf16.mxu0 0
  %2222 = vmatmul.mubr.bf16.gmra.mrb[0].mxu0 %v1266
  %v2223 = vpop.f32.mrb[0].mxu0
  %v2224 = vadd.f32 %v286, %v2223
  %v2225 = vpop.f32.mrb[0].mxu0
  %v2226 = vpop.f32.mrb[0].mxu0
  %v2227 = vadd.f32 %v286, %v2226
  %v2228 = vpop.f32.mrb[0].mxu0
  %2229 = vmatprep.mubr.bf16.mxu0 0
  %2230 = vmatmul.mubr.bf16.gmra.mrb[0].mxu0 %v1269
  %v2231 = vpop.f32.mrb[0].mxu0
  %v2232 = vadd.f32 %v286, %v2231
  %v2233 = vpop.f32.mrb[0].mxu0
  %v2234 = vpop.f32.mrb[0].mxu0
  %v2235 = vadd.f32 %v286, %v2234
  %v2236 = vpop.f32.mrb[0].mxu0
  %2237 = vmatprep.mubr.bf16.mxu0 0
  %2238 = vmatmul.mubr.bf16.gmra.mrb[0].mxu0 %v1272
  %v2239 = vpop.f32.mrb[0].mxu0
  %v2240 = vadd.f32 %v286, %v2239
  %v2241 = vpop.f32.mrb[0].mxu0
  %v2242 = vpop.f32.mrb[0].mxu0
  %v2243 = vadd.f32 %v286, %v2242
  %v2244 = vpop.f32.mrb[0].mxu0
  %2245 = vmatprep.mubr.bf16.mxu0 0
  %2246 = vmatmul.mubr.bf16.gmra.mrb[0].mxu0 %v1275
  %v2247 = vpop.f32.mrb[0].mxu0
  %v2248 = vadd.f32 %v286, %v2247
  %v2249 = vpop.f32.mrb[0].mxu0
  %v2250 = vpop.f32.mrb[0].mxu0
  %v2251 = vadd.f32 %v286, %v2250
  %v2252 = vpop.f32.mrb[0].mxu0
  %2253 = vmatprep.mubr.bf16.mxu0 0
  %2254 = vmatmul.mubr.bf16.gmra.mrb[0].mxu0 %v1278
  %v2255 = vpop.f32.mrb[0].mxu0
  %v2256 = vadd.f32 %v286, %v2255
  %v2257 = vpop.f32.mrb[0].mxu0
  %v2258 = vpop.f32.mrb[0].mxu0
  %v2259 = vadd.f32 %v286, %v2258
  %v2260 = vpop.f32.mrb[0].mxu0
  %2261 = vmatprep.mubr.bf16.mxu0 0
  %2262 = vmatmul.mubr.bf16.gmra.mrb[0].mxu0 %v1281
  %v2263 = vpop.f32.mrb[0].mxu0
  %v2264 = vadd.f32 %v286, %v2263
  %v2265 = vpop.f32.mrb[0].mxu0
  %v2266 = vpop.f32.mrb[0].mxu0
  %v2267 = vadd.f32 %v286, %v2266
  %v2268 = vpop.f32.mrb[0].mxu0
  %2269 = vmatprep.mubr.bf16.mxu0 0
  %2270 = vmatmul.mubr.bf16.gmra.mrb[0].mxu0 %v1284
  %v2271 = vpop.f32.mrb[0].mxu0
  %v2272 = vadd.f32 %v286, %v2271
  %v2273 = vpop.f32.mrb[0].mxu0
  %v2274 = vpop.f32.mrb[0].mxu0
  %v2275 = vadd.f32 %v286, %v2274
  %v2276 = vpop.f32.mrb[0].mxu0
  %2277 = vmatprep.mubr.bf16.mxu0 0
  %2278 = vmatmul.mubr.bf16.gmra.mrb[0].mxu0 %v1287
  %v2279 = vpop.f32.mrb[0].mxu0
  %v2280 = vadd.f32 %v286, %v2279
  %v2281 = vpop.f32.mrb[0].mxu0
  %v2282 = vpop.f32.mrb[0].mxu0
  %v2283 = vadd.f32 %v286, %v2282
  %v2284 = vpop.f32.mrb[0].mxu0
  %2285 = vmatprep.mubr.bf16.mxu0 0
  %2286 = vmatmul.mubr.bf16.gmra.mrb[0].mxu0 %v1290
  %v2287 = vpop.f32.mrb[0].mxu0
  %v2288 = vadd.f32 %v286, %v2287
  %v2289 = vpop.f32.mrb[0].mxu0
  %v2290 = vpop.f32.mrb[0].mxu0
  %v2291 = vadd.f32 %v286, %v2290
  %v2292 = vpop.f32.mrb[0].mxu0
  %2293 = vmatprep.mubr.bf16.mxu0 0
  %2294 = vmatmul.mubr.bf16.gmra.mrb[0].mxu0 %v1293
  %v2295 = vpop.f32.mrb[0].mxu0
  %v2296 = vadd.f32 %v286, %v2295
  %v2297 = vpop.f32.mrb[0].mxu0
  %v2298 = vpop.f32.mrb[0].mxu0
  %v2299 = vadd.f32 %v286, %v2298
  %v2300 = vpop.f32.mrb[0].mxu0
  %2301 = vmatprep.mubr.bf16.mxu0 0
  %2302 = vmatmul.mubr.bf16.gmra.mrb[0].mxu0 %v1296
  %v2303 = vpop.f32.mrb[0].mxu0
  %v2304 = vadd.f32 %v286, %v2303
  %v2305 = vpop.f32.mrb[0].mxu0
  %v2306 = vpop.f32.mrb[0].mxu0
  %v2307 = vadd.f32 %v286, %v2306
  %v2308 = vpop.f32.mrb[0].mxu0
  %2309 = vmatprep.mubr.bf16.mxu0 0
  %2310 = vmatmul.mubr.bf16.gmra.mrb[0].mxu0 %v1299
  %v2311 = vpop.f32.mrb[0].mxu0
  %v2312 = vadd.f32 %v286, %v2311
  %v2313 = vpop.f32.mrb[0].mxu0
  %v2314 = vpop.f32.mrb[0].mxu0
  %v2315 = vadd.f32 %v286, %v2314
  %v2316 = vpop.f32.mrb[0].mxu0
  %2317 = vmatprep.mubr.bf16.mxu0 0
  %2318 = vmatmul.mubr.bf16.gmra.mrb[0].mxu0 %v1302
  %v2319 = vpop.f32.mrb[0].mxu0
  %v2320 = vadd.f32 %v286, %v2319
  %v2321 = vpop.f32.mrb[0].mxu0
  %v2322 = vpop.f32.mrb[0].mxu0
  %v2323 = vadd.f32 %v286, %v2322
  %v2324 = vpop.f32.mrb[0].mxu0
  %2325 = vmatprep.mubr.bf16.mxu0 0
  %2326 = vmatmul.mubr.bf16.gmra.mrb[0].mxu0 %v1305
  %v2327 = vpop.f32.mrb[0].mxu0
  %v2328 = vadd.f32 %v286, %v2327
  %v2329 = vpop.f32.mrb[0].mxu0
  %v2330 = vpop.f32.mrb[0].mxu0
  %v2331 = vadd.f32 %v286, %v2330
  %v2332 = vpop.f32.mrb[0].mxu0
  %2333 = vmatprep.mubr.bf16.mxu0 0
  %2334 = vmatmul.mubr.bf16.gmra.mrb[0].mxu0 %v1308
  %v2335 = vpop.f32.mrb[0].mxu0
  %v2336 = vadd.f32 %v286, %v2335
  %v2337 = vpop.f32.mrb[0].mxu0
  %v2338 = vpop.f32.mrb[0].mxu0
  %v2339 = vadd.f32 %v286, %v2338
  %v2340 = vpop.f32.mrb[0].mxu0
  %2341 = vmatprep.mubr.bf16.mxu0 0
  %2342 = vmatmul.mubr.bf16.gmra.mrb[0].mxu0 %v1311
  %v2343 = vpop.f32.mrb[0].mxu0
  %v2344 = vadd.f32 %v286, %v2343
  %v2345 = vpop.f32.mrb[0].mxu0
  %v2346 = vpop.f32.mrb[0].mxu0
  %v2347 = vadd.f32 %v286, %v2346
  %v2348 = vpop.f32.mrb[0].mxu0
  %2349 = vmatprep.mubr.bf16.mxu0 0
  %2350 = vmatmul.mubr.bf16.gmra.mrb[0].mxu0 %v1314
  %v2351 = vpop.f32.mrb[0].mxu0
  %v2352 = vadd.f32 %v286, %v2351
  %v2353 = vpop.f32.mrb[0].mxu0
  %v2354 = vpop.f32.mrb[0].mxu0
  %v2355 = vadd.f32 %v286, %v2354
  %v2356 = vpop.f32.mrb[0].mxu0
  %2357 = vmatprep.mubr.bf16.mxu0 0
  %2358 = vmatmul.mubr.bf16.gmra.mrb[0].mxu0 %v1317
  %v2359 = vpop.f32.mrb[0].mxu0
  %v2360 = vadd.f32 %v286, %v2359
  %v2361 = vpop.f32.mrb[0].mxu0
  %v2362 = vpop.f32.mrb[0].mxu0
  %v2363 = vadd.f32 %v286, %v2362
  %v2364 = vpop.f32.mrb[0].mxu0
  %2365 = vmatprep.mubr.bf16.mxu0 0
  %2366 = vmatmul.mubr.bf16.gmra.mrb[0].mxu0 %v1320
  %v2367 = vpop.f32.mrb[0].mxu0
  %v2368 = vadd.f32 %v286, %v2367
  %v2369 = vpop.f32.mrb[0].mxu0
  %v2370 = vpop.f32.mrb[0].mxu0
  %v2371 = vadd.f32 %v286, %v2370
  %v2372 = vpop.f32.mrb[0].mxu0
  %2373 = vmatprep.mubr.bf16.mxu0 0
  %2374 = vmatmul.mubr.bf16.gmra.mrb[0].mxu0 %v1323
  %v2375 = vpop.f32.mrb[0].mxu0
  %v2376 = vadd.f32 %v286, %v2375
  %v2377 = vpop.f32.mrb[0].mxu0
  %v2378 = vpop.f32.mrb[0].mxu0
  %v2379 = vadd.f32 %v286, %v2378
  %v2380 = vpop.f32.mrb[0].mxu0
  %2381 = vdwg.mxu0
  %vm2382 = vcmask 130048
  %v2383 = vsel %vm2382, %v1360, 0.0
  %v2384 = vsel %vm2382, %v1363, 0.0
  %v2385 = vadd.f32 %v2383, %v2384
  %v2386 = vsel %vm2382, %v1368, 0.0
  %v2387 = vadd.f32 %v2385, %v2386
  %v2388 = vsel %vm2382, %v1371, 0.0
  %v2389 = vadd.f32 %v2387, %v2388
  %v2390 = vsel %vm2382, %v1376, 0.0
  %v2391 = vadd.f32 %v2389, %v2390
  %v2392 = vsel %vm2382, %v1379, 0.0
  %v2393 = vadd.f32 %v2391, %v2392
  %v2394 = vsel %vm2382, %v1384, 0.0
  %v2395 = vadd.f32 %v2393, %v2394
  %v2396 = vsel %vm2382, %v1387, 0.0
  %v2397 = vadd.f32 %v2395, %v2396
  %v2398 = vsel %vm2382, %v1392, 0.0
  %v2399 = vadd.f32 %v2397, %v2398
  %v2400 = vsel %vm2382, %v1395, 0.0
  %v2401 = vadd.f32 %v2399, %v2400
  %v2402 = vsel %vm2382, %v1400, 0.0
  %v2403 = vadd.f32 %v2401, %v2402
  %v2404 = vsel %vm2382, %v1403, 0.0
  %v2405 = vadd.f32 %v2403, %v2404
  %v2406 = vsel %vm2382, %v1408, 0.0
  %v2407 = vadd.f32 %v2405, %v2406
  %v2408 = vsel %vm2382, %v1411, 0.0
  %v2409 = vadd.f32 %v2407, %v2408
  %v2410 = vsel %vm2382, %v1416, 0.0
  %v2411 = vadd.f32 %v2409, %v2410
  %v2412 = vsel %vm2382, %v1419, 0.0
  %v2413 = vadd.f32 %v2411, %v2412
  %v2414 = vsel %vm2382, %v1424, 0.0
  %v2415 = vadd.f32 %v2413, %v2414
  %v2416 = vsel %vm2382, %v1427, 0.0
  %v2417 = vadd.f32 %v2415, %v2416
  %v2418 = vsel %vm2382, %v1432, 0.0
  %v2419 = vadd.f32 %v2417, %v2418
  %v2420 = vsel %vm2382, %v1435, 0.0
  %v2421 = vadd.f32 %v2419, %v2420
  %v2422 = vsel %vm2382, %v1440, 0.0
  %v2423 = vadd.f32 %v2421, %v2422
  %v2424 = vsel %vm2382, %v1443, 0.0
  %v2425 = vadd.f32 %v2423, %v2424
  %v2426 = vsel %vm2382, %v1448, 0.0
  %v2427 = vadd.f32 %v2425, %v2426
  %v2428 = vsel %vm2382, %v1451, 0.0
  %v2429 = vadd.f32 %v2427, %v2428
  %v2430 = vsel %vm2382, %v1456, 0.0
  %v2431 = vadd.f32 %v2429, %v2430
  %v2432 = vsel %vm2382, %v1459, 0.0
  %v2433 = vadd.f32 %v2431, %v2432
  %v2434 = vsel %vm2382, %v1464, 0.0
  %v2435 = vadd.f32 %v2433, %v2434
  %v2436 = vsel %vm2382, %v1467, 0.0
  %v2437 = vadd.f32 %v2435, %v2436
  %v2438 = vsel %vm2382, %v1472, 0.0
  %v2439 = vadd.f32 %v2437, %v2438
  %v2440 = vsel %vm2382, %v1475, 0.0
  %v2441 = vadd.f32 %v2439, %v2440
  %v2442 = vsel %vm2382, %v1480, 0.0
  %v2443 = vadd.f32 %v2441, %v2442
  %v2444 = vsel %vm2382, %v1483, 0.0
  %v2445 = vadd.f32 %v2443, %v2444
  %v2446 = vsel %vm2382, %v1488, 0.0
  %v2447 = vadd.f32 %v2445, %v2446
  %v2448 = vsel %vm2382, %v1491, 0.0
  %v2449 = vadd.f32 %v2447, %v2448
  %v2450 = vsel %vm2382, %v1496, 0.0
  %v2451 = vadd.f32 %v2449, %v2450
  %v2452 = vsel %vm2382, %v1499, 0.0
  %v2453 = vadd.f32 %v2451, %v2452
  %v2454 = vsel %vm2382, %v1504, 0.0
  %v2455 = vadd.f32 %v2453, %v2454
  %v2456 = vsel %vm2382, %v1507, 0.0
  %v2457 = vadd.f32 %v2455, %v2456
  %v2458 = vsel %vm2382, %v1512, 0.0
  %v2459 = vadd.f32 %v2457, %v2458
  %v2460 = vsel %vm2382, %v1515, 0.0
  %v2461 = vadd.f32 %v2459, %v2460
  %v2462 = vsel %vm2382, %v1520, 0.0
  %v2463 = vadd.f32 %v2461, %v2462
  %v2464 = vsel %vm2382, %v1523, 0.0
  %v2465 = vadd.f32 %v2463, %v2464
  %v2466 = vsel %vm2382, %v1528, 0.0
  %v2467 = vadd.f32 %v2465, %v2466
  %v2468 = vsel %vm2382, %v1531, 0.0
  %v2469 = vadd.f32 %v2467, %v2468
  %v2470 = vsel %vm2382, %v1536, 0.0
  %v2471 = vadd.f32 %v2469, %v2470
  %v2472 = vsel %vm2382, %v1539, 0.0
  %v2473 = vadd.f32 %v2471, %v2472
  %v2474 = vsel %vm2382, %v1544, 0.0
  %v2475 = vadd.f32 %v2473, %v2474
  %v2476 = vsel %vm2382, %v1547, 0.0
  %v2477 = vadd.f32 %v2475, %v2476
  %v2478 = vsel %vm2382, %v1552, 0.0
  %v2479 = vadd.f32 %v2477, %v2478
  %v2480 = vsel %vm2382, %v1555, 0.0
  %v2481 = vadd.f32 %v2479, %v2480
  %v2482 = vsel %vm2382, %v1560, 0.0
  %v2483 = vadd.f32 %v2481, %v2482
  %v2484 = vsel %vm2382, %v1563, 0.0
  %v2485 = vadd.f32 %v2483, %v2484
  %v2486 = vsel %vm2382, %v1568, 0.0
  %v2487 = vadd.f32 %v2485, %v2486
  %v2488 = vsel %vm2382, %v1571, 0.0
  %v2489 = vadd.f32 %v2487, %v2488
  %v2490 = vsel %vm2382, %v1576, 0.0
  %v2491 = vadd.f32 %v2489, %v2490
  %v2492 = vsel %vm2382, %v1579, 0.0
  %v2493 = vadd.f32 %v2491, %v2492
  %v2494 = vsel %vm2382, %v1584, 0.0
  %v2495 = vadd.f32 %v2493, %v2494
  %v2496 = vsel %vm2382, %v1587, 0.0
  %v2497 = vadd.f32 %v2495, %v2496
  %v2498 = vsel %vm2382, %v1592, 0.0
  %v2499 = vadd.f32 %v2497, %v2498
  %v2500 = vsel %vm2382, %v1595, 0.0
  %v2501 = vadd.f32 %v2499, %v2500
  %v2502 = vsel %vm2382, %v1600, 0.0
  %v2503 = vadd.f32 %v2501, %v2502
  %v2504 = vsel %vm2382, %v1603, 0.0
  %v2505 = vadd.f32 %v2503, %v2504
  %v2506 = vsel %vm2382, %v1608, 0.0
  %v2507 = vadd.f32 %v2505, %v2506
  %v2508 = vsel %vm2382, %v1611, 0.0
  %v2509 = vadd.f32 %v2507, %v2508
  %v2510 = vsel %vm2382, %v1616, 0.0
  %v2511 = vadd.f32 %v2509, %v2510
  %v2512 = vsel %vm2382, %v1619, 0.0
  %v2513 = vadd.f32 %v2511, %v2512
  %v2514 = vsel %vm2382, %v1624, 0.0
  %v2515 = vadd.f32 %v2513, %v2514
  %v2516 = vsel %vm2382, %v1627, 0.0
  %v2517 = vadd.f32 %v2515, %v2516
  %v2518 = vsel %vm2382, %v1632, 0.0
  %v2519 = vadd.f32 %v2517, %v2518
  %v2520 = vsel %vm2382, %v1635, 0.0
  %v2521 = vadd.f32 %v2519, %v2520
  %v2522 = vsel %vm2382, %v1640, 0.0
  %v2523 = vadd.f32 %v2521, %v2522
  %v2524 = vsel %vm2382, %v1643, 0.0
  %v2525 = vadd.f32 %v2523, %v2524
  %v2526 = vsel %vm2382, %v1648, 0.0
  %v2527 = vadd.f32 %v2525, %v2526
  %v2528 = vsel %vm2382, %v1651, 0.0
  %v2529 = vadd.f32 %v2527, %v2528
  %v2530 = vsel %vm2382, %v1656, 0.0
  %v2531 = vadd.f32 %v2529, %v2530
  %v2532 = vsel %vm2382, %v1659, 0.0
  %v2533 = vadd.f32 %v2531, %v2532
  %v2534 = vsel %vm2382, %v1664, 0.0
  %v2535 = vadd.f32 %v2533, %v2534
  %v2536 = vsel %vm2382, %v1667, 0.0
  %v2537 = vadd.f32 %v2535, %v2536
  %v2538 = vsel %vm2382, %v1672, 0.0
  %v2539 = vadd.f32 %v2537, %v2538
  %v2540 = vsel %vm2382, %v1675, 0.0
  %v2541 = vadd.f32 %v2539, %v2540
  %v2542 = vsel %vm2382, %v1680, 0.0
  %v2543 = vadd.f32 %v2541, %v2542
  %v2544 = vsel %vm2382, %v1683, 0.0
  %v2545 = vadd.f32 %v2543, %v2544
  %v2546 = vsel %vm2382, %v1688, 0.0
  %v2547 = vadd.f32 %v2545, %v2546
  %v2548 = vsel %vm2382, %v1691, 0.0
  %v2549 = vadd.f32 %v2547, %v2548
  %v2550 = vsel %vm2382, %v1696, 0.0
  %v2551 = vadd.f32 %v2549, %v2550
  %v2552 = vsel %vm2382, %v1699, 0.0
  %v2553 = vadd.f32 %v2551, %v2552
  %v2554 = vsel %vm2382, %v1704, 0.0
  %v2555 = vadd.f32 %v2553, %v2554
  %v2556 = vsel %vm2382, %v1707, 0.0
  %v2557 = vadd.f32 %v2555, %v2556
  %v2558 = vsel %vm2382, %v1712, 0.0
  %v2559 = vadd.f32 %v2557, %v2558
  %v2560 = vsel %vm2382, %v1715, 0.0
  %v2561 = vadd.f32 %v2559, %v2560
  %v2562 = vsel %vm2382, %v1720, 0.0
  %v2563 = vadd.f32 %v2561, %v2562
  %v2564 = vsel %vm2382, %v1723, 0.0
  %v2565 = vadd.f32 %v2563, %v2564
  %v2566 = vsel %vm2382, %v1728, 0.0
  %v2567 = vadd.f32 %v2565, %v2566
  %v2568 = vsel %vm2382, %v1731, 0.0
  %v2569 = vadd.f32 %v2567, %v2568
  %v2570 = vsel %vm2382, %v1736, 0.0
  %v2571 = vadd.f32 %v2569, %v2570
  %v2572 = vsel %vm2382, %v1739, 0.0
  %v2573 = vadd.f32 %v2571, %v2572
  %v2574 = vsel %vm2382, %v1744, 0.0
  %v2575 = vadd.f32 %v2573, %v2574
  %v2576 = vsel %vm2382, %v1747, 0.0
  %v2577 = vadd.f32 %v2575, %v2576
  %v2578 = vsel %vm2382, %v1752, 0.0
  %v2579 = vadd.f32 %v2577, %v2578
  %v2580 = vsel %vm2382, %v1755, 0.0
  %v2581 = vadd.f32 %v2579, %v2580
  %v2582 = vsel %vm2382, %v1760, 0.0
  %v2583 = vadd.f32 %v2581, %v2582
  %v2584 = vsel %vm2382, %v1763, 0.0
  %v2585 = vadd.f32 %v2583, %v2584
  %v2586 = vsel %vm2382, %v1768, 0.0
  %v2587 = vadd.f32 %v2585, %v2586
  %v2588 = vsel %vm2382, %v1771, 0.0
  %v2589 = vadd.f32 %v2587, %v2588
  %v2590 = vsel %vm2382, %v1776, 0.0
  %v2591 = vadd.f32 %v2589, %v2590
  %v2592 = vsel %vm2382, %v1779, 0.0
  %v2593 = vadd.f32 %v2591, %v2592
  %v2594 = vsel %vm2382, %v1784, 0.0
  %v2595 = vadd.f32 %v2593, %v2594
  %v2596 = vsel %vm2382, %v1787, 0.0
  %v2597 = vadd.f32 %v2595, %v2596
  %v2598 = vsel %vm2382, %v1792, 0.0
  %v2599 = vadd.f32 %v2597, %v2598
  %v2600 = vsel %vm2382, %v1795, 0.0
  %v2601 = vadd.f32 %v2599, %v2600
  %v2602 = vsel %vm2382, %v1800, 0.0
  %v2603 = vadd.f32 %v2601, %v2602
  %v2604 = vsel %vm2382, %v1803, 0.0
  %v2605 = vadd.f32 %v2603, %v2604
  %v2606 = vsel %vm2382, %v1808, 0.0
  %v2607 = vadd.f32 %v2605, %v2606
  %v2608 = vsel %vm2382, %v1811, 0.0
  %v2609 = vadd.f32 %v2607, %v2608
  %v2610 = vsel %vm2382, %v1816, 0.0
  %v2611 = vadd.f32 %v2609, %v2610
  %v2612 = vsel %vm2382, %v1819, 0.0
  %v2613 = vadd.f32 %v2611, %v2612
  %v2614 = vsel %vm2382, %v1824, 0.0
  %v2615 = vadd.f32 %v2613, %v2614
  %v2616 = vsel %vm2382, %v1827, 0.0
  %v2617 = vadd.f32 %v2615, %v2616
  %v2618 = vsel %vm2382, %v1832, 0.0
  %v2619 = vadd.f32 %v2617, %v2618
  %v2620 = vsel %vm2382, %v1835, 0.0
  %v2621 = vadd.f32 %v2619, %v2620
  %v2622 = vsel %vm2382, %v1840, 0.0
  %v2623 = vadd.f32 %v2621, %v2622
  %v2624 = vsel %vm2382, %v1843, 0.0
  %v2625 = vadd.f32 %v2623, %v2624
  %v2626 = vsel %vm2382, %v1848, 0.0
  %v2627 = vadd.f32 %v2625, %v2626
  %v2628 = vsel %vm2382, %v1851, 0.0
  %v2629 = vadd.f32 %v2627, %v2628
  %v2630 = vsel %vm2382, %v1856, 0.0
  %v2631 = vadd.f32 %v2629, %v2630
  %v2632 = vsel %vm2382, %v1859, 0.0
  %v2633 = vadd.f32 %v2631, %v2632
  %v2634 = vsel %vm2382, %v1864, 0.0
  %v2635 = vadd.f32 %v2633, %v2634
  %v2636 = vsel %vm2382, %v1867, 0.0
  %v2637 = vadd.f32 %v2635, %v2636
  %v2638 = vsel %vm2382, %v1872, 0.0
  %v2639 = vadd.f32 %v2637, %v2638
  %v2640 = vsel %vm2382, %v1875, 0.0
  %v2641 = vadd.f32 %v2639, %v2640
  %v2642 = vsel %vm2382, %v1880, 0.0
  %v2643 = vadd.f32 %v2641, %v2642
  %v2644 = vsel %vm2382, %v1883, 0.0
  %v2645 = vadd.f32 %v2643, %v2644
  %v2646 = vsel %vm2382, %v1888, 0.0
  %v2647 = vadd.f32 %v2645, %v2646
  %v2648 = vsel %vm2382, %v1891, 0.0
  %v2649 = vadd.f32 %v2647, %v2648
  %v2650 = vsel %vm2382, %v1896, 0.0
  %v2651 = vadd.f32 %v2649, %v2650
  %v2652 = vsel %vm2382, %v1899, 0.0
  %v2653 = vadd.f32 %v2651, %v2652
  %v2654 = vsel %vm2382, %v1904, 0.0
  %v2655 = vadd.f32 %v2653, %v2654
  %v2656 = vsel %vm2382, %v1907, 0.0
  %v2657 = vadd.f32 %v2655, %v2656
  %v2658 = vsel %vm2382, %v1912, 0.0
  %v2659 = vadd.f32 %v2657, %v2658
  %v2660 = vsel %vm2382, %v1915, 0.0
  %v2661 = vadd.f32 %v2659, %v2660
  %v2662 = vsel %vm2382, %v1920, 0.0
  %v2663 = vadd.f32 %v2661, %v2662
  %v2664 = vsel %vm2382, %v1923, 0.0
  %v2665 = vadd.f32 %v2663, %v2664
  %v2666 = vsel %vm2382, %v1928, 0.0
  %v2667 = vadd.f32 %v2665, %v2666
  %v2668 = vsel %vm2382, %v1931, 0.0
  %v2669 = vadd.f32 %v2667, %v2668
  %v2670 = vsel %vm2382, %v1936, 0.0
  %v2671 = vadd.f32 %v2669, %v2670
  %v2672 = vsel %vm2382, %v1939, 0.0
  %v2673 = vadd.f32 %v2671, %v2672
  %v2674 = vsel %vm2382, %v1944, 0.0
  %v2675 = vadd.f32 %v2673, %v2674
  %v2676 = vsel %vm2382, %v1947, 0.0
  %v2677 = vadd.f32 %v2675, %v2676
  %v2678 = vsel %vm2382, %v1952, 0.0
  %v2679 = vadd.f32 %v2677, %v2678
  %v2680 = vsel %vm2382, %v1955, 0.0
  %v2681 = vadd.f32 %v2679, %v2680
  %v2682 = vsel %vm2382, %v1960, 0.0
  %v2683 = vadd.f32 %v2681, %v2682
  %v2684 = vsel %vm2382, %v1963, 0.0
  %v2685 = vadd.f32 %v2683, %v2684
  %v2686 = vsel %vm2382, %v1968, 0.0
  %v2687 = vadd.f32 %v2685, %v2686
  %v2688 = vsel %vm2382, %v1971, 0.0
  %v2689 = vadd.f32 %v2687, %v2688
  %v2690 = vsel %vm2382, %v1976, 0.0
  %v2691 = vadd.f32 %v2689, %v2690
  %v2692 = vsel %vm2382, %v1979, 0.0
  %v2693 = vadd.f32 %v2691, %v2692
  %v2694 = vsel %vm2382, %v1984, 0.0
  %v2695 = vadd.f32 %v2693, %v2694
  %v2696 = vsel %vm2382, %v1987, 0.0
  %v2697 = vadd.f32 %v2695, %v2696
  %v2698 = vsel %vm2382, %v1992, 0.0
  %v2699 = vadd.f32 %v2697, %v2698
  %v2700 = vsel %vm2382, %v1995, 0.0
  %v2701 = vadd.f32 %v2699, %v2700
  %v2702 = vsel %vm2382, %v2000, 0.0
  %v2703 = vadd.f32 %v2701, %v2702
  %v2704 = vsel %vm2382, %v2003, 0.0
  %v2705 = vadd.f32 %v2703, %v2704
  %v2706 = vsel %vm2382, %v2008, 0.0
  %v2707 = vadd.f32 %v2705, %v2706
  %v2708 = vsel %vm2382, %v2011, 0.0
  %v2709 = vadd.f32 %v2707, %v2708
  %v2710 = vsel %vm2382, %v2016, 0.0
  %v2711 = vadd.f32 %v2709, %v2710
  %v2712 = vsel %vm2382, %v2019, 0.0
  %v2713 = vadd.f32 %v2711, %v2712
  %v2714 = vsel %vm2382, %v2024, 0.0
  %v2715 = vadd.f32 %v2713, %v2714
  %v2716 = vsel %vm2382, %v2027, 0.0
  %v2717 = vadd.f32 %v2715, %v2716
  %v2718 = vsel %vm2382, %v2032, 0.0
  %v2719 = vadd.f32 %v2717, %v2718
  %v2720 = vsel %vm2382, %v2035, 0.0
  %v2721 = vadd.f32 %v2719, %v2720
  %v2722 = vsel %vm2382, %v2040, 0.0
  %v2723 = vadd.f32 %v2721, %v2722
  %v2724 = vsel %vm2382, %v2043, 0.0
  %v2725 = vadd.f32 %v2723, %v2724
  %v2726 = vsel %vm2382, %v2048, 0.0
  %v2727 = vadd.f32 %v2725, %v2726
  %v2728 = vsel %vm2382, %v2051, 0.0
  %v2729 = vadd.f32 %v2727, %v2728
  %v2730 = vsel %vm2382, %v2056, 0.0
  %v2731 = vadd.f32 %v2729, %v2730
  %v2732 = vsel %vm2382, %v2059, 0.0
  %v2733 = vadd.f32 %v2731, %v2732
  %v2734 = vsel %vm2382, %v2064, 0.0
  %v2735 = vadd.f32 %v2733, %v2734
  %v2736 = vsel %vm2382, %v2067, 0.0
  %v2737 = vadd.f32 %v2735, %v2736
  %v2738 = vsel %vm2382, %v2072, 0.0
  %v2739 = vadd.f32 %v2737, %v2738
  %v2740 = vsel %vm2382, %v2075, 0.0
  %v2741 = vadd.f32 %v2739, %v2740
  %v2742 = vsel %vm2382, %v2080, 0.0
  %v2743 = vadd.f32 %v2741, %v2742
  %v2744 = vsel %vm2382, %v2083, 0.0
  %v2745 = vadd.f32 %v2743, %v2744
  %v2746 = vsel %vm2382, %v2088, 0.0
  %v2747 = vadd.f32 %v2745, %v2746
  %v2748 = vsel %vm2382, %v2091, 0.0
  %v2749 = vadd.f32 %v2747, %v2748
  %v2750 = vsel %vm2382, %v2096, 0.0
  %v2751 = vadd.f32 %v2749, %v2750
  %v2752 = vsel %vm2382, %v2099, 0.0
  %v2753 = vadd.f32 %v2751, %v2752
  %v2754 = vsel %vm2382, %v2104, 0.0
  %v2755 = vadd.f32 %v2753, %v2754
  %v2756 = vsel %vm2382, %v2107, 0.0
  %v2757 = vadd.f32 %v2755, %v2756
  %v2758 = vsel %vm2382, %v2112, 0.0
  %v2759 = vadd.f32 %v2757, %v2758
  %v2760 = vsel %vm2382, %v2115, 0.0
  %v2761 = vadd.f32 %v2759, %v2760
  %v2762 = vsel %vm2382, %v2120, 0.0
  %v2763 = vadd.f32 %v2761, %v2762
  %v2764 = vsel %vm2382, %v2123, 0.0
  %v2765 = vadd.f32 %v2763, %v2764
  %v2766 = vsel %vm2382, %v2128, 0.0
  %v2767 = vadd.f32 %v2765, %v2766
  %v2768 = vsel %vm2382, %v2131, 0.0
  %v2769 = vadd.f32 %v2767, %v2768
  %v2770 = vsel %vm2382, %v2136, 0.0
  %v2771 = vadd.f32 %v2769, %v2770
  %v2772 = vsel %vm2382, %v2139, 0.0
  %v2773 = vadd.f32 %v2771, %v2772
  %v2774 = vsel %vm2382, %v2144, 0.0
  %v2775 = vadd.f32 %v2773, %v2774
  %v2776 = vsel %vm2382, %v2147, 0.0
  %v2777 = vadd.f32 %v2775, %v2776
  %v2778 = vsel %vm2382, %v2152, 0.0
  %v2779 = vadd.f32 %v2777, %v2778
  %v2780 = vsel %vm2382, %v2155, 0.0
  %v2781 = vadd.f32 %v2779, %v2780
  %v2782 = vsel %vm2382, %v2160, 0.0
  %v2783 = vadd.f32 %v2781, %v2782
  %v2784 = vsel %vm2382, %v2163, 0.0
  %v2785 = vadd.f32 %v2783, %v2784
  %v2786 = vsel %vm2382, %v2168, 0.0
  %v2787 = vadd.f32 %v2785, %v2786
  %v2788 = vsel %vm2382, %v2171, 0.0
  %v2789 = vadd.f32 %v2787, %v2788
  %v2790 = vsel %vm2382, %v2176, 0.0
  %v2791 = vadd.f32 %v2789, %v2790
  %v2792 = vsel %vm2382, %v2179, 0.0
  %v2793 = vadd.f32 %v2791, %v2792
  %v2794 = vsel %vm2382, %v2184, 0.0
  %v2795 = vadd.f32 %v2793, %v2794
  %v2796 = vsel %vm2382, %v2187, 0.0
  %v2797 = vadd.f32 %v2795, %v2796
  %v2798 = vsel %vm2382, %v2192, 0.0
  %v2799 = vadd.f32 %v2797, %v2798
  %v2800 = vsel %vm2382, %v2195, 0.0
  %v2801 = vadd.f32 %v2799, %v2800
  %v2802 = vsel %vm2382, %v2200, 0.0
  %v2803 = vadd.f32 %v2801, %v2802
  %v2804 = vsel %vm2382, %v2203, 0.0
  %v2805 = vadd.f32 %v2803, %v2804
  %v2806 = vsel %vm2382, %v2208, 0.0
  %v2807 = vadd.f32 %v2805, %v2806
  %v2808 = vsel %vm2382, %v2211, 0.0
  %v2809 = vadd.f32 %v2807, %v2808
  %v2810 = vsel %vm2382, %v2216, 0.0
  %v2811 = vadd.f32 %v2809, %v2810
  %v2812 = vsel %vm2382, %v2219, 0.0
  %v2813 = vadd.f32 %v2811, %v2812
  %v2814 = vsel %vm2382, %v2224, 0.0
  %v2815 = vadd.f32 %v2813, %v2814
  %v2816 = vsel %vm2382, %v2227, 0.0
  %v2817 = vadd.f32 %v2815, %v2816
  %v2818 = vsel %vm2382, %v2232, 0.0
  %v2819 = vadd.f32 %v2817, %v2818
  %v2820 = vsel %vm2382, %v2235, 0.0
  %v2821 = vadd.f32 %v2819, %v2820
  %v2822 = vsel %vm2382, %v2240, 0.0
  %v2823 = vadd.f32 %v2821, %v2822
  %v2824 = vsel %vm2382, %v2243, 0.0
  %v2825 = vadd.f32 %v2823, %v2824
  %v2826 = vsel %vm2382, %v2248, 0.0
  %v2827 = vadd.f32 %v2825, %v2826
  %v2828 = vsel %vm2382, %v2251, 0.0
  %v2829 = vadd.f32 %v2827, %v2828
  %v2830 = vsel %vm2382, %v2256, 0.0
  %v2831 = vadd.f32 %v2829, %v2830
  %v2832 = vsel %vm2382, %v2259, 0.0
  %v2833 = vadd.f32 %v2831, %v2832
  %v2834 = vsel %vm2382, %v2264, 0.0
  %v2835 = vadd.f32 %v2833, %v2834
  %v2836 = vsel %vm2382, %v2267, 0.0
  %v2837 = vadd.f32 %v2835, %v2836
  %v2838 = vsel %vm2382, %v2272, 0.0
  %v2839 = vadd.f32 %v2837, %v2838
  %v2840 = vsel %vm2382, %v2275, 0.0
  %v2841 = vadd.f32 %v2839, %v2840
  %v2842 = vsel %vm2382, %v2280, 0.0
  %v2843 = vadd.f32 %v2841, %v2842
  %v2844 = vsel %vm2382, %v2283, 0.0
  %v2845 = vadd.f32 %v2843, %v2844
  %v2846 = vsel %vm2382, %v2288, 0.0
  %v2847 = vadd.f32 %v2845, %v2846
  %v2848 = vsel %vm2382, %v2291, 0.0
  %v2849 = vadd.f32 %v2847, %v2848
  %v2850 = vsel %vm2382, %v2296, 0.0
  %v2851 = vadd.f32 %v2849, %v2850
  %v2852 = vsel %vm2382, %v2299, 0.0
  %v2853 = vadd.f32 %v2851, %v2852
  %v2854 = vsel %vm2382, %v2304, 0.0
  %v2855 = vadd.f32 %v2853, %v2854
  %v2856 = vsel %vm2382, %v2307, 0.0
  %v2857 = vadd.f32 %v2855, %v2856
  %v2858 = vsel %vm2382, %v2312, 0.0
  %v2859 = vadd.f32 %v2857, %v2858
  %v2860 = vsel %vm2382, %v2315, 0.0
  %v2861 = vadd.f32 %v2859, %v2860
  %v2862 = vsel %vm2382, %v2320, 0.0
  %v2863 = vadd.f32 %v2861, %v2862
  %v2864 = vsel %vm2382, %v2323, 0.0
  %v2865 = vadd.f32 %v2863, %v2864
  %v2866 = vsel %vm2382, %v2328, 0.0
  %v2867 = vadd.f32 %v2865, %v2866
  %v2868 = vsel %vm2382, %v2331, 0.0
  %v2869 = vadd.f32 %v2867, %v2868
  %v2870 = vsel %vm2382, %v2336, 0.0
  %v2871 = vadd.f32 %v2869, %v2870
  %v2872 = vsel %vm2382, %v2339, 0.0
  %v2873 = vadd.f32 %v2871, %v2872
  %v2874 = vsel %vm2382, %v2344, 0.0
  %v2875 = vadd.f32 %v2873, %v2874
  %v2876 = vsel %vm2382, %v2347, 0.0
  %v2877 = vadd.f32 %v2875, %v2876
  %v2878 = vsel %vm2382, %v2352, 0.0
  %v2879 = vadd.f32 %v2877, %v2878
  %v2880 = vsel %vm2382, %v2355, 0.0
  %v2881 = vadd.f32 %v2879, %v2880
  %v2882 = vsel %vm2382, %v2360, 0.0
  %v2883 = vadd.f32 %v2881, %v2882
  %v2884 = vsel %vm2382, %v2363, 0.0
  %v2885 = vadd.f32 %v2883, %v2884
  %v2886 = vsel %vm2382, %v2368, 0.0
  %v2887 = vadd.f32 %v2885, %v2886
  %v2888 = vsel %vm2382, %v2371, 0.0
  %v2889 = vadd.f32 %v2887, %v2888
  %v2890 = vsel %vm2382, %v2376, 0.0
  %v2891 = vadd.f32 %v2889, %v2890
  %v2892 = vsel %vm2382, %v2379, 0.0
  %v2893 = vadd.f32 %v2891, %v2892
  %v2894 = vrot.slane %v2893, 4
  %v2895 = vadd.f32 %v2893, %v2894
  %v2896 = vrot.slane %v2895, 2
  %v2897 = vadd.f32 %v2895, %v2896
  %v2898 = vrot.slane %v2897, 1
  %v2899 = vadd.f32 %v2897, %v2898
  %v2900 = vmul.f32 %v2899, 0.00048828125
  %v2901 = vsub.f32 %v1360, %v2900
  %v2902 = vsub.f32 %v1363, %v2900
  %v2903 = vsub.f32 %v1368, %v2900
  %v2904 = vsub.f32 %v1371, %v2900
  %v2905 = vsub.f32 %v1376, %v2900
  %v2906 = vsub.f32 %v1379, %v2900
  %v2907 = vsub.f32 %v1384, %v2900
  %v2908 = vsub.f32 %v1387, %v2900
  %v2909 = vsub.f32 %v1392, %v2900
  %v2910 = vsub.f32 %v1395, %v2900
  %v2911 = vsub.f32 %v1400, %v2900
  %v2912 = vsub.f32 %v1403, %v2900
  %v2913 = vsub.f32 %v1408, %v2900
  %v2914 = vsub.f32 %v1411, %v2900
  %v2915 = vsub.f32 %v1416, %v2900
  %v2916 = vsub.f32 %v1419, %v2900
  %v2917 = vsub.f32 %v1424, %v2900
  %v2918 = vsub.f32 %v1427, %v2900
  %v2919 = vsub.f32 %v1432, %v2900
  %v2920 = vsub.f32 %v1435, %v2900
  %v2921 = vsub.f32 %v1440, %v2900
  %v2922 = vsub.f32 %v1443, %v2900
  %v2923 = vsub.f32 %v1448, %v2900
  %v2924 = vsub.f32 %v1451, %v2900
  %v2925 = vsub.f32 %v1456, %v2900
  %v2926 = vsub.f32 %v1459, %v2900
  %v2927 = vsub.f32 %v1464, %v2900
  %v2928 = vsub.f32 %v1467, %v2900
  %v2929 = vsub.f32 %v1472, %v2900
  %v2930 = vsub.f32 %v1475, %v2900
  %v2931 = vsub.f32 %v1480, %v2900
  %v2932 = vsub.f32 %v1483, %v2900
  %v2933 = vsub.f32 %v1488, %v2900
  %v2934 = vsub.f32 %v1491, %v2900
  %v2935 = vsub.f32 %v1496, %v2900
  %v2936 = vsub.f32 %v1499, %v2900
  %v2937 = vsub.f32 %v1504, %v2900
  %v2938 = vsub.f32 %v1507, %v2900
  %v2939 = vsub.f32 %v1512, %v2900
  %v2940 = vsub.f32 %v1515, %v2900
  %v2941 = vsub.f32 %v1520, %v2900
  %v2942 = vsub.f32 %v1523, %v2900
  %v2943 = vsub.f32 %v1528, %v2900
  %v2944 = vsub.f32 %v1531, %v2900
  %v2945 = vsub.f32 %v1536, %v2900
  %v2946 = vsub.f32 %v1539, %v2900
  %v2947 = vsub.f32 %v1544, %v2900
  %v2948 = vsub.f32 %v1547, %v2900
  %v2949 = vsub.f32 %v1552, %v2900
  %v2950 = vsub.f32 %v1555, %v2900
  %v2951 = vsub.f32 %v1560, %v2900
  %v2952 = vsub.f32 %v1563, %v2900
  %v2953 = vsub.f32 %v1568, %v2900
  %v2954 = vsub.f32 %v1571, %v2900
  %v2955 = vsub.f32 %v1576, %v2900
  %v2956 = vsub.f32 %v1579, %v2900
  %v2957 = vsub.f32 %v1584, %v2900
  %v2958 = vsub.f32 %v1587, %v2900
  %v2959 = vsub.f32 %v1592, %v2900
  %v2960 = vsub.f32 %v1595, %v2900
  %v2961 = vsub.f32 %v1600, %v2900
  %v2962 = vsub.f32 %v1603, %v2900
  %v2963 = vsub.f32 %v1608, %v2900
  %v2964 = vsub.f32 %v1611, %v2900
  %v2965 = vsub.f32 %v1616, %v2900
  %v2966 = vsub.f32 %v1619, %v2900
  %v2967 = vsub.f32 %v1624, %v2900
  %v2968 = vsub.f32 %v1627, %v2900
  %v2969 = vsub.f32 %v1632, %v2900
  %v2970 = vsub.f32 %v1635, %v2900
  %v2971 = vsub.f32 %v1640, %v2900
  %v2972 = vsub.f32 %v1643, %v2900
  %v2973 = vsub.f32 %v1648, %v2900
  %v2974 = vsub.f32 %v1651, %v2900
  %v2975 = vsub.f32 %v1656, %v2900
  %v2976 = vsub.f32 %v1659, %v2900
  %v2977 = vsub.f32 %v1664, %v2900
  %v2978 = vsub.f32 %v1667, %v2900
  %v2979 = vsub.f32 %v1672, %v2900
  %v2980 = vsub.f32 %v1675, %v2900
  %v2981 = vsub.f32 %v1680, %v2900
  %v2982 = vsub.f32 %v1683, %v2900
  %v2983 = vsub.f32 %v1688, %v2900
  %v2984 = vsub.f32 %v1691, %v2900
  %v2985 = vsub.f32 %v1696, %v2900
  %v2986 = vsub.f32 %v1699, %v2900
  %v2987 = vsub.f32 %v1704, %v2900
  %v2988 = vsub.f32 %v1707, %v2900
  %v2989 = vsub.f32 %v1712, %v2900
  %v2990 = vsub.f32 %v1715, %v2900
  %v2991 = vsub.f32 %v1720, %v2900
  %v2992 = vsub.f32 %v1723, %v2900
  %v2993 = vsub.f32 %v1728, %v2900
  %v2994 = vsub.f32 %v1731, %v2900
  %v2995 = vsub.f32 %v1736, %v2900
  %v2996 = vsub.f32 %v1739, %v2900
  %v2997 = vsub.f32 %v1744, %v2900
  %v2998 = vsub.f32 %v1747, %v2900
  %v2999 = vsub.f32 %v1752, %v2900
  %v3000 = vsub.f32 %v1755, %v2900
  %v3001 = vsub.f32 %v1760, %v2900
  %v3002 = vsub.f32 %v1763, %v2900
  %v3003 = vsub.f32 %v1768, %v2900
  %v3004 = vsub.f32 %v1771, %v2900
  %v3005 = vsub.f32 %v1776, %v2900
  %v3006 = vsub.f32 %v1779, %v2900
  %v3007 = vsub.f32 %v1784, %v2900
  %v3008 = vsub.f32 %v1787, %v2900
  %v3009 = vsub.f32 %v1792, %v2900
  %v3010 = vsub.f32 %v1795, %v2900
  %v3011 = vsub.f32 %v1800, %v2900
  %v3012 = vsub.f32 %v1803, %v2900
  %v3013 = vsub.f32 %v1808, %v2900
  %v3014 = vsub.f32 %v1811, %v2900
  %v3015 = vsub.f32 %v1816, %v2900
  %v3016 = vsub.f32 %v1819, %v2900
  %v3017 = vsub.f32 %v1824, %v2900
  %v3018 = vsub.f32 %v1827, %v2900
  %v3019 = vsub.f32 %v1832, %v2900
  %v3020 = vsub.f32 %v1835, %v2900
  %v3021 = vsub.f32 %v1840, %v2900
  %v3022 = vsub.f32 %v1843, %v2900
  %v3023 = vsub.f32 %v1848, %v2900
  %v3024 = vsub.f32 %v1851, %v2900
  %v3025 = vsub.f32 %v1856, %v2900
  %v3026 = vsub.f32 %v1859, %v2900
  %v3027 = vsub.f32 %v1864, %v2900
  %v3028 = vsub.f32 %v1867, %v2900
  %v3029 = vsub.f32 %v1872, %v2900
  %v3030 = vsub.f32 %v1875, %v2900
  %v3031 = vsub.f32 %v1880, %v2900
  %v3032 = vsub.f32 %v1883, %v2900
  %v3033 = vsub.f32 %v1888, %v2900
  %v3034 = vsub.f32 %v1891, %v2900
  %v3035 = vsub.f32 %v1896, %v2900
  %v3036 = vsub.f32 %v1899, %v2900
  %v3037 = vsub.f32 %v1904, %v2900
  %v3038 = vsub.f32 %v1907, %v2900
  %v3039 = vsub.f32 %v1912, %v2900
  %v3040 = vsub.f32 %v1915, %v2900
  %v3041 = vsub.f32 %v1920, %v2900
  %v3042 = vsub.f32 %v1923, %v2900
  %v3043 = vsub.f32 %v1928, %v2900
  %v3044 = vsub.f32 %v1931, %v2900
  %v3045 = vsub.f32 %v1936, %v2900
  %v3046 = vsub.f32 %v1939, %v2900
  %v3047 = vsub.f32 %v1944, %v2900
  %v3048 = vsub.f32 %v1947, %v2900
  %v3049 = vsub.f32 %v1952, %v2900
  %v3050 = vsub.f32 %v1955, %v2900
  %v3051 = vsub.f32 %v1960, %v2900
  %v3052 = vsub.f32 %v1963, %v2900
  %v3053 = vsub.f32 %v1968, %v2900
  %v3054 = vsub.f32 %v1971, %v2900
  %v3055 = vsub.f32 %v1976, %v2900
  %v3056 = vsub.f32 %v1979, %v2900
  %v3057 = vsub.f32 %v1984, %v2900
  %v3058 = vsub.f32 %v1987, %v2900
  %v3059 = vsub.f32 %v1992, %v2900
  %v3060 = vsub.f32 %v1995, %v2900
  %v3061 = vsub.f32 %v2000, %v2900
  %v3062 = vsub.f32 %v2003, %v2900
  %v3063 = vsub.f32 %v2008, %v2900
  %v3064 = vsub.f32 %v2011, %v2900
  %v3065 = vsub.f32 %v2016, %v2900
  %v3066 = vsub.f32 %v2019, %v2900
  %v3067 = vsub.f32 %v2024, %v2900
  %v3068 = vsub.f32 %v2027, %v2900
  %v3069 = vsub.f32 %v2032, %v2900
  %v3070 = vsub.f32 %v2035, %v2900
  %v3071 = vsub.f32 %v2040, %v2900
  %v3072 = vsub.f32 %v2043, %v2900
  %v3073 = vsub.f32 %v2048, %v2900
  %v3074 = vsub.f32 %v2051, %v2900
  %v3075 = vsub.f32 %v2056, %v2900
  %v3076 = vsub.f32 %v2059, %v2900
  %v3077 = vsub.f32 %v2064, %v2900
  %v3078 = vsub.f32 %v2067, %v2900
  %v3079 = vsub.f32 %v2072, %v2900
  %v3080 = vsub.f32 %v2075, %v2900
  %v3081 = vsub.f32 %v2080, %v2900
  %v3082 = vsub.f32 %v2083, %v2900
  %v3083 = vsub.f32 %v2088, %v2900
  %v3084 = vsub.f32 %v2091, %v2900
  %v3085 = vsub.f32 %v2096, %v2900
  %v3086 = vsub.f32 %v2099, %v2900
  %v3087 = vsub.f32 %v2104, %v2900
  %v3088 = vsub.f32 %v2107, %v2900
  %v3089 = vsub.f32 %v2112, %v2900
  %v3090 = vsub.f32 %v2115, %v2900
  %v3091 = vsub.f32 %v2120, %v2900
  %v3092 = vsub.f32 %v2123, %v2900
  %v3093 = vsub.f32 %v2128, %v2900
  %v3094 = vsub.f32 %v2131, %v2900
  %v3095 = vsub.f32 %v2136, %v2900
  %v3096 = vsub.f32 %v2139, %v2900
  %v3097 = vsub.f32 %v2144, %v2900
  %v3098 = vsub.f32 %v2147, %v2900
  %v3099 = vsub.f32 %v2152, %v2900
  %v3100 = vsub.f32 %v2155, %v2900
  %v3101 = vsub.f32 %v2160, %v2900
  %v3102 = vsub.f32 %v2163, %v2900
  %v3103 = vsub.f32 %v2168, %v2900
  %v3104 = vsub.f32 %v2171, %v2900
  %v3105 = vsub.f32 %v2176, %v2900
  %v3106 = vsub.f32 %v2179, %v2900
  %v3107 = vsub.f32 %v2184, %v2900
  %v3108 = vsub.f32 %v2187, %v2900
  %v3109 = vsub.f32 %v2192, %v2900
  %v3110 = vsub.f32 %v2195, %v2900
  %v3111 = vsub.f32 %v2200, %v2900
  %v3112 = vsub.f32 %v2203, %v2900
  %v3113 = vsub.f32 %v2208, %v2900
  %v3114 = vsub.f32 %v2211, %v2900
  %v3115 = vsub.f32 %v2216, %v2900
  %v3116 = vsub.f32 %v2219, %v2900
  %v3117 = vsub.f32 %v2224, %v2900
  %v3118 = vsub.f32 %v2227, %v2900
  %v3119 = vsub.f32 %v2232, %v2900
  %v3120 = vsub.f32 %v2235, %v2900
  %v3121 = vsub.f32 %v2240, %v2900
  %v3122 = vsub.f32 %v2243, %v2900
  %v3123 = vsub.f32 %v2248, %v2900
  %v3124 = vsub.f32 %v2251, %v2900
  %v3125 = vsub.f32 %v2256, %v2900
  %v3126 = vsub.f32 %v2259, %v2900
  %v3127 = vsub.f32 %v2264, %v2900
  %v3128 = vsub.f32 %v2267, %v2900
  %v3129 = vsub.f32 %v2272, %v2900
  %v3130 = vsub.f32 %v2275, %v2900
  %v3131 = vsub.f32 %v2280, %v2900
  %v3132 = vsub.f32 %v2283, %v2900
  %v3133 = vsub.f32 %v2288, %v2900
  %v3134 = vsub.f32 %v2291, %v2900
  %v3135 = vsub.f32 %v2296, %v2900
  %v3136 = vsub.f32 %v2299, %v2900
  %v3137 = vsub.f32 %v2304, %v2900
  %v3138 = vsub.f32 %v2307, %v2900
  %v3139 = vsub.f32 %v2312, %v2900
  %v3140 = vsub.f32 %v2315, %v2900
  %v3141 = vsub.f32 %v2320, %v2900
  %v3142 = vsub.f32 %v2323, %v2900
  %v3143 = vsub.f32 %v2328, %v2900
  %v3144 = vsub.f32 %v2331, %v2900
  %v3145 = vsub.f32 %v2336, %v2900
  %v3146 = vsub.f32 %v2339, %v2900
  %v3147 = vsub.f32 %v2344, %v2900
  %v3148 = vsub.f32 %v2347, %v2900
  %v3149 = vsub.f32 %v2352, %v2900
  %v3150 = vsub.f32 %v2355, %v2900
  %v3151 = vsub.f32 %v2360, %v2900
  %v3152 = vsub.f32 %v2363, %v2900
  %v3153 = vsub.f32 %v2368, %v2900
  %v3154 = vsub.f32 %v2371, %v2900
  %v3155 = vsub.f32 %v2376, %v2900
  %v3156 = vsub.f32 %v2379, %v2900
  %v3157 = vmul.f32 %v2901, %v2901
  %v3158 = vmul.f32 %v2902, %v2902
  %v3159 = vmul.f32 %v2903, %v2903
  %v3160 = vmul.f32 %v2904, %v2904
  %v3161 = vmul.f32 %v2905, %v2905
  %v3162 = vmul.f32 %v2906, %v2906
  %v3163 = vmul.f32 %v2907, %v2907
  %v3164 = vmul.f32 %v2908, %v2908
  %v3165 = vmul.f32 %v2909, %v2909
  %v3166 = vmul.f32 %v2910, %v2910
  %v3167 = vmul.f32 %v2911, %v2911
  %v3168 = vmul.f32 %v2912, %v2912
  %v3169 = vmul.f32 %v2913, %v2913
  %v3170 = vmul.f32 %v2914, %v2914
  %v3171 = vmul.f32 %v2915, %v2915
  %v3172 = vmul.f32 %v2916, %v2916
  %v3173 = vmul.f32 %v2917, %v2917
  %v3174 = vmul.f32 %v2918, %v2918
  %v3175 = vmul.f32 %v2919, %v2919
  %v3176 = vmul.f32 %v2920, %v2920
  %v3177 = vmul.f32 %v2921, %v2921
  %v3178 = vmul.f32 %v2922, %v2922
  %v3179 = vmul.f32 %v2923, %v2923
  %v3180 = vmul.f32 %v2924, %v2924
  %v3181 = vmul.f32 %v2925, %v2925
  %v3182 = vmul.f32 %v2926, %v2926
  %v3183 = vmul.f32 %v2927, %v2927
  %v3184 = vmul.f32 %v2928, %v2928
  %v3185 = vmul.f32 %v2929, %v2929
  %v3186 = vmul.f32 %v2930, %v2930
  %v3187 = vmul.f32 %v2931, %v2931
  %v3188 = vmul.f32 %v2932, %v2932
  %v3189 = vmul.f32 %v2933, %v2933
  %v3190 = vmul.f32 %v2934, %v2934
  %v3191 = vmul.f32 %v2935, %v2935
  %v3192 = vmul.f32 %v2936, %v2936
  %v3193 = vmul.f32 %v2937, %v2937
  %v3194 = vmul.f32 %v2938, %v2938
  %v3195 = vmul.f32 %v2939, %v2939
  %v3196 = vmul.f32 %v2940, %v2940
  %v3197 = vmul.f32 %v2941, %v2941
  %v3198 = vmul.f32 %v2942, %v2942
  %v3199 = vmul.f32 %v2943, %v2943
  %v3200 = vmul.f32 %v2944, %v2944
  %v3201 = vmul.f32 %v2945, %v2945
  %v3202 = vmul.f32 %v2946, %v2946
  %v3203 = vmul.f32 %v2947, %v2947
  %v3204 = vmul.f32 %v2948, %v2948
  %v3205 = vmul.f32 %v2949, %v2949
  %v3206 = vmul.f32 %v2950, %v2950
  %v3207 = vmul.f32 %v2951, %v2951
  %v3208 = vmul.f32 %v2952, %v2952
  %v3209 = vmul.f32 %v2953, %v2953
  %v3210 = vmul.f32 %v2954, %v2954
  %v3211 = vmul.f32 %v2955, %v2955
  %v3212 = vmul.f32 %v2956, %v2956
  %v3213 = vmul.f32 %v2957, %v2957
  %v3214 = vmul.f32 %v2958, %v2958
  %v3215 = vmul.f32 %v2959, %v2959
  %v3216 = vmul.f32 %v2960, %v2960
  %v3217 = vmul.f32 %v2961, %v2961
  %v3218 = vmul.f32 %v2962, %v2962
  %v3219 = vmul.f32 %v2963, %v2963
  %v3220 = vmul.f32 %v2964, %v2964
  %v3221 = vmul.f32 %v2965, %v2965
  %v3222 = vmul.f32 %v2966, %v2966
  %v3223 = vmul.f32 %v2967, %v2967
  %v3224 = vmul.f32 %v2968, %v2968
  %v3225 = vmul.f32 %v2969, %v2969
  %v3226 = vmul.f32 %v2970, %v2970
  %v3227 = vmul.f32 %v2971, %v2971
  %v3228 = vmul.f32 %v2972, %v2972
  %v3229 = vmul.f32 %v2973, %v2973
  %v3230 = vmul.f32 %v2974, %v2974
  %v3231 = vmul.f32 %v2975, %v2975
  %v3232 = vmul.f32 %v2976, %v2976
  %v3233 = vmul.f32 %v2977, %v2977
  %v3234 = vmul.f32 %v2978, %v2978
  %v3235 = vmul.f32 %v2979, %v2979
  %v3236 = vmul.f32 %v2980, %v2980
  %v3237 = vmul.f32 %v2981, %v2981
  %v3238 = vmul.f32 %v2982, %v2982
  %v3239 = vmul.f32 %v2983, %v2983
  %v3240 = vmul.f32 %v2984, %v2984
  %v3241 = vmul.f32 %v2985, %v2985
  %v3242 = vmul.f32 %v2986, %v2986
  %v3243 = vmul.f32 %v2987, %v2987
  %v3244 = vmul.f32 %v2988, %v2988
  %v3245 = vmul.f32 %v2989, %v2989
  %v3246 = vmul.f32 %v2990, %v2990
  %v3247 = vmul.f32 %v2991, %v2991
  %v3248 = vmul.f32 %v2992, %v2992
  %v3249 = vmul.f32 %v2993, %v2993
  %v3250 = vmul.f32 %v2994, %v2994
  %v3251 = vmul.f32 %v2995, %v2995
  %v3252 = vmul.f32 %v2996, %v2996
  %v3253 = vmul.f32 %v2997, %v2997
  %v3254 = vmul.f32 %v2998, %v2998
  %v3255 = vmul.f32 %v2999, %v2999
  %v3256 = vmul.f32 %v3000, %v3000
  %v3257 = vmul.f32 %v3001, %v3001
  %v3258 = vmul.f32 %v3002, %v3002
  %v3259 = vmul.f32 %v3003, %v3003
  %v3260 = vmul.f32 %v3004, %v3004
  %v3261 = vmul.f32 %v3005, %v3005
  %v3262 = vmul.f32 %v3006, %v3006
  %v3263 = vmul.f32 %v3007, %v3007
  %v3264 = vmul.f32 %v3008, %v3008
  %v3265 = vmul.f32 %v3009, %v3009
  %v3266 = vmul.f32 %v3010, %v3010
  %v3267 = vmul.f32 %v3011, %v3011
  %v3268 = vmul.f32 %v3012, %v3012
  %v3269 = vmul.f32 %v3013, %v3013
  %v3270 = vmul.f32 %v3014, %v3014
  %v3271 = vmul.f32 %v3015, %v3015
  %v3272 = vmul.f32 %v3016, %v3016
  %v3273 = vmul.f32 %v3017, %v3017
  %v3274 = vmul.f32 %v3018, %v3018
  %v3275 = vmul.f32 %v3019, %v3019
  %v3276 = vmul.f32 %v3020, %v3020
  %v3277 = vmul.f32 %v3021, %v3021
  %v3278 = vmul.f32 %v3022, %v3022
  %v3279 = vmul.f32 %v3023, %v3023
  %v3280 = vmul.f32 %v3024, %v3024
  %v3281 = vmul.f32 %v3025, %v3025
  %v3282 = vmul.f32 %v3026, %v3026
  %v3283 = vmul.f32 %v3027, %v3027
  %v3284 = vmul.f32 %v3028, %v3028
  %v3285 = vmul.f32 %v3029, %v3029
  %v3286 = vmul.f32 %v3030, %v3030
  %v3287 = vmul.f32 %v3031, %v3031
  %v3288 = vmul.f32 %v3032, %v3032
  %v3289 = vmul.f32 %v3033, %v3033
  %v3290 = vmul.f32 %v3034, %v3034
  %v3291 = vmul.f32 %v3035, %v3035
  %v3292 = vmul.f32 %v3036, %v3036
  %v3293 = vmul.f32 %v3037, %v3037
  %v3294 = vmul.f32 %v3038, %v3038
  %v3295 = vmul.f32 %v3039, %v3039
  %v3296 = vmul.f32 %v3040, %v3040
  %v3297 = vmul.f32 %v3041, %v3041
  %v3298 = vmul.f32 %v3042, %v3042
  %v3299 = vmul.f32 %v3043, %v3043
  %v3300 = vmul.f32 %v3044, %v3044
  %v3301 = vmul.f32 %v3045, %v3045
  %v3302 = vmul.f32 %v3046, %v3046
  %v3303 = vmul.f32 %v3047, %v3047
  %v3304 = vmul.f32 %v3048, %v3048
  %v3305 = vmul.f32 %v3049, %v3049
  %v3306 = vmul.f32 %v3050, %v3050
  %v3307 = vmul.f32 %v3051, %v3051
  %v3308 = vmul.f32 %v3052, %v3052
  %v3309 = vmul.f32 %v3053, %v3053
  %v3310 = vmul.f32 %v3054, %v3054
  %v3311 = vmul.f32 %v3055, %v3055
  %v3312 = vmul.f32 %v3056, %v3056
  %v3313 = vmul.f32 %v3057, %v3057
  %v3314 = vmul.f32 %v3058, %v3058
  %v3315 = vmul.f32 %v3059, %v3059
  %v3316 = vmul.f32 %v3060, %v3060
  %v3317 = vmul.f32 %v3061, %v3061
  %v3318 = vmul.f32 %v3062, %v3062
  %v3319 = vmul.f32 %v3063, %v3063
  %v3320 = vmul.f32 %v3064, %v3064
  %v3321 = vmul.f32 %v3065, %v3065
  %v3322 = vmul.f32 %v3066, %v3066
  %v3323 = vmul.f32 %v3067, %v3067
  %v3324 = vmul.f32 %v3068, %v3068
  %v3325 = vmul.f32 %v3069, %v3069
  %v3326 = vmul.f32 %v3070, %v3070
  %v3327 = vmul.f32 %v3071, %v3071
  %v3328 = vmul.f32 %v3072, %v3072
  %v3329 = vmul.f32 %v3073, %v3073
  %v3330 = vmul.f32 %v3074, %v3074
  %v3331 = vmul.f32 %v3075, %v3075
  %v3332 = vmul.f32 %v3076, %v3076
  %v3333 = vmul.f32 %v3077, %v3077
  %v3334 = vmul.f32 %v3078, %v3078
  %v3335 = vmul.f32 %v3079, %v3079
  %v3336 = vmul.f32 %v3080, %v3080
  %v3337 = vmul.f32 %v3081, %v3081
  %v3338 = vmul.f32 %v3082, %v3082
  %v3339 = vmul.f32 %v3083, %v3083
  %v3340 = vmul.f32 %v3084, %v3084
  %v3341 = vmul.f32 %v3085, %v3085
  %v3342 = vmul.f32 %v3086, %v3086
  %v3343 = vmul.f32 %v3087, %v3087
  %v3344 = vmul.f32 %v3088, %v3088
  %v3345 = vmul.f32 %v3089, %v3089
  %v3346 = vmul.f32 %v3090, %v3090
  %v3347 = vmul.f32 %v3091, %v3091
  %v3348 = vmul.f32 %v3092, %v3092
  %v3349 = vmul.f32 %v3093, %v3093
  %v3350 = vmul.f32 %v3094, %v3094
  %v3351 = vmul.f32 %v3095, %v3095
  %v3352 = vmul.f32 %v3096, %v3096
  %v3353 = vmul.f32 %v3097, %v3097
  %v3354 = vmul.f32 %v3098, %v3098
  %v3355 = vmul.f32 %v3099, %v3099
  %v3356 = vmul.f32 %v3100, %v3100
  %v3357 = vmul.f32 %v3101, %v3101
  %v3358 = vmul.f32 %v3102, %v3102
  %v3359 = vmul.f32 %v3103, %v3103
  %v3360 = vmul.f32 %v3104, %v3104
  %v3361 = vmul.f32 %v3105, %v3105
  %v3362 = vmul.f32 %v3106, %v3106
  %v3363 = vmul.f32 %v3107, %v3107
  %v3364 = vmul.f32 %v3108, %v3108
  %v3365 = vmul.f32 %v3109, %v3109
  %v3366 = vmul.f32 %v3110, %v3110
  %v3367 = vmul.f32 %v3111, %v3111
  %v3368 = vmul.f32 %v3112, %v3112
  %v3369 = vmul.f32 %v3113, %v3113
  %v3370 = vmul.f32 %v3114, %v3114
  %v3371 = vmul.f32 %v3115, %v3115
  %v3372 = vmul.f32 %v3116, %v3116
  %v3373 = vmul.f32 %v3117, %v3117
  %v3374 = vmul.f32 %v3118, %v3118
  %v3375 = vmul.f32 %v3119, %v3119
  %v3376 = vmul.f32 %v3120, %v3120
  %v3377 = vmul.f32 %v3121, %v3121
  %v3378 = vmul.f32 %v3122, %v3122
  %v3379 = vmul.f32 %v3123, %v3123
  %v3380 = vmul.f32 %v3124, %v3124
  %v3381 = vmul.f32 %v3125, %v3125
  %v3382 = vmul.f32 %v3126, %v3126
  %v3383 = vmul.f32 %v3127, %v3127
  %v3384 = vmul.f32 %v3128, %v3128
  %v3385 = vmul.f32 %v3129, %v3129
  %v3386 = vmul.f32 %v3130, %v3130
  %v3387 = vmul.f32 %v3131, %v3131
  %v3388 = vmul.f32 %v3132, %v3132
  %v3389 = vmul.f32 %v3133, %v3133
  %v3390 = vmul.f32 %v3134, %v3134
  %v3391 = vmul.f32 %v3135, %v3135
  %v3392 = vmul.f32 %v3136, %v3136
  %v3393 = vmul.f32 %v3137, %v3137
  %v3394 = vmul.f32 %v3138, %v3138
  %v3395 = vmul.f32 %v3139, %v3139
  %v3396 = vmul.f32 %v3140, %v3140
  %v3397 = vmul.f32 %v3141, %v3141
  %v3398 = vmul.f32 %v3142, %v3142
  %v3399 = vmul.f32 %v3143, %v3143
  %v3400 = vmul.f32 %v3144, %v3144
  %v3401 = vmul.f32 %v3145, %v3145
  %v3402 = vmul.f32 %v3146, %v3146
  %v3403 = vmul.f32 %v3147, %v3147
  %v3404 = vmul.f32 %v3148, %v3148
  %v3405 = vmul.f32 %v3149, %v3149
  %v3406 = vmul.f32 %v3150, %v3150
  %v3407 = vmul.f32 %v3151, %v3151
  %v3408 = vmul.f32 %v3152, %v3152
  %v3409 = vmul.f32 %v3153, %v3153
  %v3410 = vmul.f32 %v3154, %v3154
  %v3411 = vmul.f32 %v3155, %v3155
  %v3412 = vmul.f32 %v3156, %v3156
  %v3413 = vsel %vm2382, %v3157, 0.0
  %v3414 = vsel %vm2382, %v3158, 0.0
  %v3415 = vadd.f32 %v3413, %v3414
  %v3416 = vsel %vm2382, %v3159, 0.0
  %v3417 = vadd.f32 %v3415, %v3416
  %v3418 = vsel %vm2382, %v3160, 0.0
  %v3419 = vadd.f32 %v3417, %v3418
  %v3420 = vsel %vm2382, %v3161, 0.0
  %v3421 = vadd.f32 %v3419, %v3420
  %v3422 = vsel %vm2382, %v3162, 0.0
  %v3423 = vadd.f32 %v3421, %v3422
  %v3424 = vsel %vm2382, %v3163, 0.0
  %v3425 = vadd.f32 %v3423, %v3424
  %v3426 = vsel %vm2382, %v3164, 0.0
  %v3427 = vadd.f32 %v3425, %v3426
  %v3428 = vsel %vm2382, %v3165, 0.0
  %v3429 = vadd.f32 %v3427, %v3428
  %v3430 = vsel %vm2382, %v3166, 0.0
  %v3431 = vadd.f32 %v3429, %v3430
  %v3432 = vsel %vm2382, %v3167, 0.0
  %v3433 = vadd.f32 %v3431, %v3432
  %v3434 = vsel %vm2382, %v3168, 0.0
  %v3435 = vadd.f32 %v3433, %v3434
  %v3436 = vsel %vm2382, %v3169, 0.0
  %v3437 = vadd.f32 %v3435, %v3436
  %v3438 = vsel %vm2382, %v3170, 0.0
  %v3439 = vadd.f32 %v3437, %v3438
  %v3440 = vsel %vm2382, %v3171, 0.0
  %v3441 = vadd.f32 %v3439, %v3440
  %v3442 = vsel %vm2382, %v3172, 0.0
  %v3443 = vadd.f32 %v3441, %v3442
  %v3444 = vsel %vm2382, %v3173, 0.0
  %v3445 = vadd.f32 %v3443, %v3444
  %v3446 = vsel %vm2382, %v3174, 0.0
  %v3447 = vadd.f32 %v3445, %v3446
  %v3448 = vsel %vm2382, %v3175, 0.0
  %v3449 = vadd.f32 %v3447, %v3448
  %v3450 = vsel %vm2382, %v3176, 0.0
  %v3451 = vadd.f32 %v3449, %v3450
  %v3452 = vsel %vm2382, %v3177, 0.0
  %v3453 = vadd.f32 %v3451, %v3452
  %v3454 = vsel %vm2382, %v3178, 0.0
  %v3455 = vadd.f32 %v3453, %v3454
  %v3456 = vsel %vm2382, %v3179, 0.0
  %v3457 = vadd.f32 %v3455, %v3456
  %v3458 = vsel %vm2382, %v3180, 0.0
  %v3459 = vadd.f32 %v3457, %v3458
  %v3460 = vsel %vm2382, %v3181, 0.0
  %v3461 = vadd.f32 %v3459, %v3460
  %v3462 = vsel %vm2382, %v3182, 0.0
  %v3463 = vadd.f32 %v3461, %v3462
  %v3464 = vsel %vm2382, %v3183, 0.0
  %v3465 = vadd.f32 %v3463, %v3464
  %v3466 = vsel %vm2382, %v3184, 0.0
  %v3467 = vadd.f32 %v3465, %v3466
  %v3468 = vsel %vm2382, %v3185, 0.0
  %v3469 = vadd.f32 %v3467, %v3468
  %v3470 = vsel %vm2382, %v3186, 0.0
  %v3471 = vadd.f32 %v3469, %v3470
  %v3472 = vsel %vm2382, %v3187, 0.0
  %v3473 = vadd.f32 %v3471, %v3472
  %v3474 = vsel %vm2382, %v3188, 0.0
  %v3475 = vadd.f32 %v3473, %v3474
  %v3476 = vsel %vm2382, %v3189, 0.0
  %v3477 = vadd.f32 %v3475, %v3476
  %v3478 = vsel %vm2382, %v3190, 0.0
  %v3479 = vadd.f32 %v3477, %v3478
  %v3480 = vsel %vm2382, %v3191, 0.0
  %v3481 = vadd.f32 %v3479, %v3480
  %v3482 = vsel %vm2382, %v3192, 0.0
  %v3483 = vadd.f32 %v3481, %v3482
  %v3484 = vsel %vm2382, %v3193, 0.0
  %v3485 = vadd.f32 %v3483, %v3484
  %v3486 = vsel %vm2382, %v3194, 0.0
  %v3487 = vadd.f32 %v3485, %v3486
  %v3488 = vsel %vm2382, %v3195, 0.0
  %v3489 = vadd.f32 %v3487, %v3488
  %v3490 = vsel %vm2382, %v3196, 0.0
  %v3491 = vadd.f32 %v3489, %v3490
  %v3492 = vsel %vm2382, %v3197, 0.0
  %v3493 = vadd.f32 %v3491, %v3492
  %v3494 = vsel %vm2382, %v3198, 0.0
  %v3495 = vadd.f32 %v3493, %v3494
  %v3496 = vsel %vm2382, %v3199, 0.0
  %v3497 = vadd.f32 %v3495, %v3496
  %v3498 = vsel %vm2382, %v3200, 0.0
  %v3499 = vadd.f32 %v3497, %v3498
  %v3500 = vsel %vm2382, %v3201, 0.0
  %v3501 = vadd.f32 %v3499, %v3500
  %v3502 = vsel %vm2382, %v3202, 0.0
  %v3503 = vadd.f32 %v3501, %v3502
  %v3504 = vsel %vm2382, %v3203, 0.0
  %v3505 = vadd.f32 %v3503, %v3504
  %v3506 = vsel %vm2382, %v3204, 0.0
  %v3507 = vadd.f32 %v3505, %v3506
  %v3508 = vsel %vm2382, %v3205, 0.0
  %v3509 = vadd.f32 %v3507, %v3508
  %v3510 = vsel %vm2382, %v3206, 0.0
  %v3511 = vadd.f32 %v3509, %v3510
  %v3512 = vsel %vm2382, %v3207, 0.0
  %v3513 = vadd.f32 %v3511, %v3512
  %v3514 = vsel %vm2382, %v3208, 0.0
  %v3515 = vadd.f32 %v3513, %v3514
  %v3516 = vsel %vm2382, %v3209, 0.0
  %v3517 = vadd.f32 %v3515, %v3516
  %v3518 = vsel %vm2382, %v3210, 0.0
  %v3519 = vadd.f32 %v3517, %v3518
  %v3520 = vsel %vm2382, %v3211, 0.0
  %v3521 = vadd.f32 %v3519, %v3520
  %v3522 = vsel %vm2382, %v3212, 0.0
  %v3523 = vadd.f32 %v3521, %v3522
  %v3524 = vsel %vm2382, %v3213, 0.0
  %v3525 = vadd.f32 %v3523, %v3524
  %v3526 = vsel %vm2382, %v3214, 0.0
  %v3527 = vadd.f32 %v3525, %v3526
  %v3528 = vsel %vm2382, %v3215, 0.0
  %v3529 = vadd.f32 %v3527, %v3528
  %v3530 = vsel %vm2382, %v3216, 0.0
  %v3531 = vadd.f32 %v3529, %v3530
  %v3532 = vsel %vm2382, %v3217, 0.0
  %v3533 = vadd.f32 %v3531, %v3532
  %v3534 = vsel %vm2382, %v3218, 0.0
  %v3535 = vadd.f32 %v3533, %v3534
  %v3536 = vsel %vm2382, %v3219, 0.0
  %v3537 = vadd.f32 %v3535, %v3536
  %v3538 = vsel %vm2382, %v3220, 0.0
  %v3539 = vadd.f32 %v3537, %v3538
  %v3540 = vsel %vm2382, %v3221, 0.0
  %v3541 = vadd.f32 %v3539, %v3540
  %v3542 = vsel %vm2382, %v3222, 0.0
  %v3543 = vadd.f32 %v3541, %v3542
  %v3544 = vsel %vm2382, %v3223, 0.0
  %v3545 = vadd.f32 %v3543, %v3544
  %v3546 = vsel %vm2382, %v3224, 0.0
  %v3547 = vadd.f32 %v3545, %v3546
  %v3548 = vsel %vm2382, %v3225, 0.0
  %v3549 = vadd.f32 %v3547, %v3548
  %v3550 = vsel %vm2382, %v3226, 0.0
  %v3551 = vadd.f32 %v3549, %v3550
  %v3552 = vsel %vm2382, %v3227, 0.0
  %v3553 = vadd.f32 %v3551, %v3552
  %v3554 = vsel %vm2382, %v3228, 0.0
  %v3555 = vadd.f32 %v3553, %v3554
  %v3556 = vsel %vm2382, %v3229, 0.0
  %v3557 = vadd.f32 %v3555, %v3556
  %v3558 = vsel %vm2382, %v3230, 0.0
  %v3559 = vadd.f32 %v3557, %v3558
  %v3560 = vsel %vm2382, %v3231, 0.0
  %v3561 = vadd.f32 %v3559, %v3560
  %v3562 = vsel %vm2382, %v3232, 0.0
  %v3563 = vadd.f32 %v3561, %v3562
  %v3564 = vsel %vm2382, %v3233, 0.0
  %v3565 = vadd.f32 %v3563, %v3564
  %v3566 = vsel %vm2382, %v3234, 0.0
  %v3567 = vadd.f32 %v3565, %v3566
  %v3568 = vsel %vm2382, %v3235, 0.0
  %v3569 = vadd.f32 %v3567, %v3568
  %v3570 = vsel %vm2382, %v3236, 0.0
  %v3571 = vadd.f32 %v3569, %v3570
  %v3572 = vsel %vm2382, %v3237, 0.0
  %v3573 = vadd.f32 %v3571, %v3572
  %v3574 = vsel %vm2382, %v3238, 0.0
  %v3575 = vadd.f32 %v3573, %v3574
  %v3576 = vsel %vm2382, %v3239, 0.0
  %v3577 = vadd.f32 %v3575, %v3576
  %v3578 = vsel %vm2382, %v3240, 0.0
  %v3579 = vadd.f32 %v3577, %v3578
  %v3580 = vsel %vm2382, %v3241, 0.0
  %v3581 = vadd.f32 %v3579, %v3580
  %v3582 = vsel %vm2382, %v3242, 0.0
  %v3583 = vadd.f32 %v3581, %v3582
  %v3584 = vsel %vm2382, %v3243, 0.0
  %v3585 = vadd.f32 %v3583, %v3584
  %v3586 = vsel %vm2382, %v3244, 0.0
  %v3587 = vadd.f32 %v3585, %v3586
  %v3588 = vsel %vm2382, %v3245, 0.0
  %v3589 = vadd.f32 %v3587, %v3588
  %v3590 = vsel %vm2382, %v3246, 0.0
  %v3591 = vadd.f32 %v3589, %v3590
  %v3592 = vsel %vm2382, %v3247, 0.0
  %v3593 = vadd.f32 %v3591, %v3592
  %v3594 = vsel %vm2382, %v3248, 0.0
  %v3595 = vadd.f32 %v3593, %v3594
  %v3596 = vsel %vm2382, %v3249, 0.0
  %v3597 = vadd.f32 %v3595, %v3596
  %v3598 = vsel %vm2382, %v3250, 0.0
  %v3599 = vadd.f32 %v3597, %v3598
  %v3600 = vsel %vm2382, %v3251, 0.0
  %v3601 = vadd.f32 %v3599, %v3600
  %v3602 = vsel %vm2382, %v3252, 0.0
  %v3603 = vadd.f32 %v3601, %v3602
  %v3604 = vsel %vm2382, %v3253, 0.0
  %v3605 = vadd.f32 %v3603, %v3604
  %v3606 = vsel %vm2382, %v3254, 0.0
  %v3607 = vadd.f32 %v3605, %v3606
  %v3608 = vsel %vm2382, %v3255, 0.0
  %v3609 = vadd.f32 %v3607, %v3608
  %v3610 = vsel %vm2382, %v3256, 0.0
  %v3611 = vadd.f32 %v3609, %v3610
  %v3612 = vsel %vm2382, %v3257, 0.0
  %v3613 = vadd.f32 %v3611, %v3612
  %v3614 = vsel %vm2382, %v3258, 0.0
  %v3615 = vadd.f32 %v3613, %v3614
  %v3616 = vsel %vm2382, %v3259, 0.0
  %v3617 = vadd.f32 %v3615, %v3616
  %v3618 = vsel %vm2382, %v3260, 0.0
  %v3619 = vadd.f32 %v3617, %v3618
  %v3620 = vsel %vm2382, %v3261, 0.0
  %v3621 = vadd.f32 %v3619, %v3620
  %v3622 = vsel %vm2382, %v3262, 0.0
  %v3623 = vadd.f32 %v3621, %v3622
  %v3624 = vsel %vm2382, %v3263, 0.0
  %v3625 = vadd.f32 %v3623, %v3624
  %v3626 = vsel %vm2382, %v3264, 0.0
  %v3627 = vadd.f32 %v3625, %v3626
  %v3628 = vsel %vm2382, %v3265, 0.0
  %v3629 = vadd.f32 %v3627, %v3628
  %v3630 = vsel %vm2382, %v3266, 0.0
  %v3631 = vadd.f32 %v3629, %v3630
  %v3632 = vsel %vm2382, %v3267, 0.0
  %v3633 = vadd.f32 %v3631, %v3632
  %v3634 = vsel %vm2382, %v3268, 0.0
  %v3635 = vadd.f32 %v3633, %v3634
  %v3636 = vsel %vm2382, %v3269, 0.0
  %v3637 = vadd.f32 %v3635, %v3636
  %v3638 = vsel %vm2382, %v3270, 0.0
  %v3639 = vadd.f32 %v3637, %v3638
  %v3640 = vsel %vm2382, %v3271, 0.0
  %v3641 = vadd.f32 %v3639, %v3640
  %v3642 = vsel %vm2382, %v3272, 0.0
  %v3643 = vadd.f32 %v3641, %v3642
  %v3644 = vsel %vm2382, %v3273, 0.0
  %v3645 = vadd.f32 %v3643, %v3644
  %v3646 = vsel %vm2382, %v3274, 0.0
  %v3647 = vadd.f32 %v3645, %v3646
  %v3648 = vsel %vm2382, %v3275, 0.0
  %v3649 = vadd.f32 %v3647, %v3648
  %v3650 = vsel %vm2382, %v3276, 0.0
  %v3651 = vadd.f32 %v3649, %v3650
  %v3652 = vsel %vm2382, %v3277, 0.0
  %v3653 = vadd.f32 %v3651, %v3652
  %v3654 = vsel %vm2382, %v3278, 0.0
  %v3655 = vadd.f32 %v3653, %v3654
  %v3656 = vsel %vm2382, %v3279, 0.0
  %v3657 = vadd.f32 %v3655, %v3656
  %v3658 = vsel %vm2382, %v3280, 0.0
  %v3659 = vadd.f32 %v3657, %v3658
  %v3660 = vsel %vm2382, %v3281, 0.0
  %v3661 = vadd.f32 %v3659, %v3660
  %v3662 = vsel %vm2382, %v3282, 0.0
  %v3663 = vadd.f32 %v3661, %v3662
  %v3664 = vsel %vm2382, %v3283, 0.0
  %v3665 = vadd.f32 %v3663, %v3664
  %v3666 = vsel %vm2382, %v3284, 0.0
  %v3667 = vadd.f32 %v3665, %v3666
  %v3668 = vsel %vm2382, %v3285, 0.0
  %v3669 = vadd.f32 %v3667, %v3668
  %v3670 = vsel %vm2382, %v3286, 0.0
  %v3671 = vadd.f32 %v3669, %v3670
  %v3672 = vsel %vm2382, %v3287, 0.0
  %v3673 = vadd.f32 %v3671, %v3672
  %v3674 = vsel %vm2382, %v3288, 0.0
  %v3675 = vadd.f32 %v3673, %v3674
  %v3676 = vsel %vm2382, %v3289, 0.0
  %v3677 = vadd.f32 %v3675, %v3676
  %v3678 = vsel %vm2382, %v3290, 0.0
  %v3679 = vadd.f32 %v3677, %v3678
  %v3680 = vsel %vm2382, %v3291, 0.0
  %v3681 = vadd.f32 %v3679, %v3680
  %v3682 = vsel %vm2382, %v3292, 0.0
  %v3683 = vadd.f32 %v3681, %v3682
  %v3684 = vsel %vm2382, %v3293, 0.0
  %v3685 = vadd.f32 %v3683, %v3684
  %v3686 = vsel %vm2382, %v3294, 0.0
  %v3687 = vadd.f32 %v3685, %v3686
  %v3688 = vsel %vm2382, %v3295, 0.0
  %v3689 = vadd.f32 %v3687, %v3688
  %v3690 = vsel %vm2382, %v3296, 0.0
  %v3691 = vadd.f32 %v3689, %v3690
  %v3692 = vsel %vm2382, %v3297, 0.0
  %v3693 = vadd.f32 %v3691, %v3692
  %v3694 = vsel %vm2382, %v3298, 0.0
  %v3695 = vadd.f32 %v3693, %v3694
  %v3696 = vsel %vm2382, %v3299, 0.0
  %v3697 = vadd.f32 %v3695, %v3696
  %v3698 = vsel %vm2382, %v3300, 0.0
  %v3699 = vadd.f32 %v3697, %v3698
  %v3700 = vsel %vm2382, %v3301, 0.0
  %v3701 = vadd.f32 %v3699, %v3700
  %v3702 = vsel %vm2382, %v3302, 0.0
  %v3703 = vadd.f32 %v3701, %v3702
  %v3704 = vsel %vm2382, %v3303, 0.0
  %v3705 = vadd.f32 %v3703, %v3704
  %v3706 = vsel %vm2382, %v3304, 0.0
  %v3707 = vadd.f32 %v3705, %v3706
  %v3708 = vsel %vm2382, %v3305, 0.0
  %v3709 = vadd.f32 %v3707, %v3708
  %v3710 = vsel %vm2382, %v3306, 0.0
  %v3711 = vadd.f32 %v3709, %v3710
  %v3712 = vsel %vm2382, %v3307, 0.0
  %v3713 = vadd.f32 %v3711, %v3712
  %v3714 = vsel %vm2382, %v3308, 0.0
  %v3715 = vadd.f32 %v3713, %v3714
  %v3716 = vsel %vm2382, %v3309, 0.0
  %v3717 = vadd.f32 %v3715, %v3716
  %v3718 = vsel %vm2382, %v3310, 0.0
  %v3719 = vadd.f32 %v3717, %v3718
  %v3720 = vsel %vm2382, %v3311, 0.0
  %v3721 = vadd.f32 %v3719, %v3720
  %v3722 = vsel %vm2382, %v3312, 0.0
  %v3723 = vadd.f32 %v3721, %v3722
  %v3724 = vsel %vm2382, %v3313, 0.0
  %v3725 = vadd.f32 %v3723, %v3724
  %v3726 = vsel %vm2382, %v3314, 0.0
  %v3727 = vadd.f32 %v3725, %v3726
  %v3728 = vsel %vm2382, %v3315, 0.0
  %v3729 = vadd.f32 %v3727, %v3728
  %v3730 = vsel %vm2382, %v3316, 0.0
  %v3731 = vadd.f32 %v3729, %v3730
  %v3732 = vsel %vm2382, %v3317, 0.0
  %v3733 = vadd.f32 %v3731, %v3732
  %v3734 = vsel %vm2382, %v3318, 0.0
  %v3735 = vadd.f32 %v3733, %v3734
  %v3736 = vsel %vm2382, %v3319, 0.0
  %v3737 = vadd.f32 %v3735, %v3736
  %v3738 = vsel %vm2382, %v3320, 0.0
  %v3739 = vadd.f32 %v3737, %v3738
  %v3740 = vsel %vm2382, %v3321, 0.0
  %v3741 = vadd.f32 %v3739, %v3740
  %v3742 = vsel %vm2382, %v3322, 0.0
  %v3743 = vadd.f32 %v3741, %v3742
  %v3744 = vsel %vm2382, %v3323, 0.0
  %v3745 = vadd.f32 %v3743, %v3744
  %v3746 = vsel %vm2382, %v3324, 0.0
  %v3747 = vadd.f32 %v3745, %v3746
  %v3748 = vsel %vm2382, %v3325, 0.0
  %v3749 = vadd.f32 %v3747, %v3748
  %v3750 = vsel %vm2382, %v3326, 0.0
  %v3751 = vadd.f32 %v3749, %v3750
  %v3752 = vsel %vm2382, %v3327, 0.0
  %v3753 = vadd.f32 %v3751, %v3752
  %v3754 = vsel %vm2382, %v3328, 0.0
  %v3755 = vadd.f32 %v3753, %v3754
  %v3756 = vsel %vm2382, %v3329, 0.0
  %v3757 = vadd.f32 %v3755, %v3756
  %v3758 = vsel %vm2382, %v3330, 0.0
  %v3759 = vadd.f32 %v3757, %v3758
  %v3760 = vsel %vm2382, %v3331, 0.0
  %v3761 = vadd.f32 %v3759, %v3760
  %v3762 = vsel %vm2382, %v3332, 0.0
  %v3763 = vadd.f32 %v3761, %v3762
  %v3764 = vsel %vm2382, %v3333, 0.0
  %v3765 = vadd.f32 %v3763, %v3764
  %v3766 = vsel %vm2382, %v3334, 0.0
  %v3767 = vadd.f32 %v3765, %v3766
  %v3768 = vsel %vm2382, %v3335, 0.0
  %v3769 = vadd.f32 %v3767, %v3768
  %v3770 = vsel %vm2382, %v3336, 0.0
  %v3771 = vadd.f32 %v3769, %v3770
  %v3772 = vsel %vm2382, %v3337, 0.0
  %v3773 = vadd.f32 %v3771, %v3772
  %v3774 = vsel %vm2382, %v3338, 0.0
  %v3775 = vadd.f32 %v3773, %v3774
  %v3776 = vsel %vm2382, %v3339, 0.0
  %v3777 = vadd.f32 %v3775, %v3776
  %v3778 = vsel %vm2382, %v3340, 0.0
  %v3779 = vadd.f32 %v3777, %v3778
  %v3780 = vsel %vm2382, %v3341, 0.0
  %v3781 = vadd.f32 %v3779, %v3780
  %v3782 = vsel %vm2382, %v3342, 0.0
  %v3783 = vadd.f32 %v3781, %v3782
  %v3784 = vsel %vm2382, %v3343, 0.0
  %v3785 = vadd.f32 %v3783, %v3784
  %v3786 = vsel %vm2382, %v3344, 0.0
  %v3787 = vadd.f32 %v3785, %v3786
  %v3788 = vsel %vm2382, %v3345, 0.0
  %v3789 = vadd.f32 %v3787, %v3788
  %v3790 = vsel %vm2382, %v3346, 0.0
  %v3791 = vadd.f32 %v3789, %v3790
  %v3792 = vsel %vm2382, %v3347, 0.0
  %v3793 = vadd.f32 %v3791, %v3792
  %v3794 = vsel %vm2382, %v3348, 0.0
  %v3795 = vadd.f32 %v3793, %v3794
  %v3796 = vsel %vm2382, %v3349, 0.0
  %v3797 = vadd.f32 %v3795, %v3796
  %v3798 = vsel %vm2382, %v3350, 0.0
  %v3799 = vadd.f32 %v3797, %v3798
  %v3800 = vsel %vm2382, %v3351, 0.0
  %v3801 = vadd.f32 %v3799, %v3800
  %v3802 = vsel %vm2382, %v3352, 0.0
  %v3803 = vadd.f32 %v3801, %v3802
  %v3804 = vsel %vm2382, %v3353, 0.0
  %v3805 = vadd.f32 %v3803, %v3804
  %v3806 = vsel %vm2382, %v3354, 0.0
  %v3807 = vadd.f32 %v3805, %v3806
  %v3808 = vsel %vm2382, %v3355, 0.0
  %v3809 = vadd.f32 %v3807, %v3808
  %v3810 = vsel %vm2382, %v3356, 0.0
  %v3811 = vadd.f32 %v3809, %v3810
  %v3812 = vsel %vm2382, %v3357, 0.0
  %v3813 = vadd.f32 %v3811, %v3812
  %v3814 = vsel %vm2382, %v3358, 0.0
  %v3815 = vadd.f32 %v3813, %v3814
  %v3816 = vsel %vm2382, %v3359, 0.0
  %v3817 = vadd.f32 %v3815, %v3816
  %v3818 = vsel %vm2382, %v3360, 0.0
  %v3819 = vadd.f32 %v3817, %v3818
  %v3820 = vsel %vm2382, %v3361, 0.0
  %v3821 = vadd.f32 %v3819, %v3820
  %v3822 = vsel %vm2382, %v3362, 0.0
  %v3823 = vadd.f32 %v3821, %v3822
  %v3824 = vsel %vm2382, %v3363, 0.0
  %v3825 = vadd.f32 %v3823, %v3824
  %v3826 = vsel %vm2382, %v3364, 0.0
  %v3827 = vadd.f32 %v3825, %v3826
  %v3828 = vsel %vm2382, %v3365, 0.0
  %v3829 = vadd.f32 %v3827, %v3828
  %v3830 = vsel %vm2382, %v3366, 0.0
  %v3831 = vadd.f32 %v3829, %v3830
  %v3832 = vsel %vm2382, %v3367, 0.0
  %v3833 = vadd.f32 %v3831, %v3832
  %v3834 = vsel %vm2382, %v3368, 0.0
  %v3835 = vadd.f32 %v3833, %v3834
  %v3836 = vsel %vm2382, %v3369, 0.0
  %v3837 = vadd.f32 %v3835, %v3836
  %v3838 = vsel %vm2382, %v3370, 0.0
  %v3839 = vadd.f32 %v3837, %v3838
  %v3840 = vsel %vm2382, %v3371, 0.0
  %v3841 = vadd.f32 %v3839, %v3840
  %v3842 = vsel %vm2382, %v3372, 0.0
  %v3843 = vadd.f32 %v3841, %v3842
  %v3844 = vsel %vm2382, %v3373, 0.0
  %v3845 = vadd.f32 %v3843, %v3844
  %v3846 = vsel %vm2382, %v3374, 0.0
  %v3847 = vadd.f32 %v3845, %v3846
  %v3848 = vsel %vm2382, %v3375, 0.0
  %v3849 = vadd.f32 %v3847, %v3848
  %v3850 = vsel %vm2382, %v3376, 0.0
  %v3851 = vadd.f32 %v3849, %v3850
  %v3852 = vsel %vm2382, %v3377, 0.0
  %v3853 = vadd.f32 %v3851, %v3852
  %v3854 = vsel %vm2382, %v3378, 0.0
  %v3855 = vadd.f32 %v3853, %v3854
  %v3856 = vsel %vm2382, %v3379, 0.0
  %v3857 = vadd.f32 %v3855, %v3856
  %v3858 = vsel %vm2382, %v3380, 0.0
  %v3859 = vadd.f32 %v3857, %v3858
  %v3860 = vsel %vm2382, %v3381, 0.0
  %v3861 = vadd.f32 %v3859, %v3860
  %v3862 = vsel %vm2382, %v3382, 0.0
  %v3863 = vadd.f32 %v3861, %v3862
  %v3864 = vsel %vm2382, %v3383, 0.0
  %v3865 = vadd.f32 %v3863, %v3864
  %v3866 = vsel %vm2382, %v3384, 0.0
  %v3867 = vadd.f32 %v3865, %v3866
  %v3868 = vsel %vm2382, %v3385, 0.0
  %v3869 = vadd.f32 %v3867, %v3868
  %v3870 = vsel %vm2382, %v3386, 0.0
  %v3871 = vadd.f32 %v3869, %v3870
  %v3872 = vsel %vm2382, %v3387, 0.0
  %v3873 = vadd.f32 %v3871, %v3872
  %v3874 = vsel %vm2382, %v3388, 0.0
  %v3875 = vadd.f32 %v3873, %v3874
  %v3876 = vsel %vm2382, %v3389, 0.0
  %v3877 = vadd.f32 %v3875, %v3876
  %v3878 = vsel %vm2382, %v3390, 0.0
  %v3879 = vadd.f32 %v3877, %v3878
  %v3880 = vsel %vm2382, %v3391, 0.0
  %v3881 = vadd.f32 %v3879, %v3880
  %v3882 = vsel %vm2382, %v3392, 0.0
  %v3883 = vadd.f32 %v3881, %v3882
  %v3884 = vsel %vm2382, %v3393, 0.0
  %v3885 = vadd.f32 %v3883, %v3884
  %v3886 = vsel %vm2382, %v3394, 0.0
  %v3887 = vadd.f32 %v3885, %v3886
  %v3888 = vsel %vm2382, %v3395, 0.0
  %v3889 = vadd.f32 %v3887, %v3888
  %v3890 = vsel %vm2382, %v3396, 0.0
  %v3891 = vadd.f32 %v3889, %v3890
  %v3892 = vsel %vm2382, %v3397, 0.0
  %v3893 = vadd.f32 %v3891, %v3892
  %v3894 = vsel %vm2382, %v3398, 0.0
  %v3895 = vadd.f32 %v3893, %v3894
  %v3896 = vsel %vm2382, %v3399, 0.0
  %v3897 = vadd.f32 %v3895, %v3896
  %v3898 = vsel %vm2382, %v3400, 0.0
  %v3899 = vadd.f32 %v3897, %v3898
  %v3900 = vsel %vm2382, %v3401, 0.0
  %v3901 = vadd.f32 %v3899, %v3900
  %v3902 = vsel %vm2382, %v3402, 0.0
  %v3903 = vadd.f32 %v3901, %v3902
  %v3904 = vsel %vm2382, %v3403, 0.0
  %v3905 = vadd.f32 %v3903, %v3904
  %v3906 = vsel %vm2382, %v3404, 0.0
  %v3907 = vadd.f32 %v3905, %v3906
  %v3908 = vsel %vm2382, %v3405, 0.0
  %v3909 = vadd.f32 %v3907, %v3908
  %v3910 = vsel %vm2382, %v3406, 0.0
  %v3911 = vadd.f32 %v3909, %v3910
  %v3912 = vsel %vm2382, %v3407, 0.0
  %v3913 = vadd.f32 %v3911, %v3912
  %v3914 = vsel %vm2382, %v3408, 0.0
  %v3915 = vadd.f32 %v3913, %v3914
  %v3916 = vsel %vm2382, %v3409, 0.0
  %v3917 = vadd.f32 %v3915, %v3916
  %v3918 = vsel %vm2382, %v3410, 0.0
  %v3919 = vadd.f32 %v3917, %v3918
  %v3920 = vsel %vm2382, %v3411, 0.0
  %v3921 = vadd.f32 %v3919, %v3920
  %v3922 = vsel %vm2382, %v3412, 0.0
  %v3923 = vadd.f32 %v3921, %v3922
  %v3924 = vrot.slane %v3923, 4
  %v3925 = vadd.f32 %v3923, %v3924
  %v3926 = vrot.slane %v3925, 2
  %v3927 = vadd.f32 %v3925, %v3926
  %v3928 = vrot.slane %v3927, 1
  %v3929 = vadd.f32 %v3927, %v3928
  %v3930 = vmul.f32 %v3929, 0.00048828125
  %v3931 = vld [vmem:[%s3] sm:$0x1]
  %v3932 = vadd.f32 %v3930, 1e-05
  %v3933 = vrsqrt.pop %v3932
  %v3934 = vmul.f32 %v3931, %v3933
  %v3936 = vlaneseq
  %v3937 = vshrl.u32 %v3936, 7
  %v3938 = vsub.s32 0, %v3937
  %v3939 = vrot.slane %v3934, %v3938
  %v3941 = vmul.f32 %v2901, %v3939
  %v3942 = vmul.f32 %v2902, %v3939
  %v3943 = vmul.f32 %v2903, %v3939
  %v3944 = vmul.f32 %v2904, %v3939
  %v3945 = vmul.f32 %v2905, %v3939
  %v3946 = vmul.f32 %v2906, %v3939
  %v3947 = vmul.f32 %v2907, %v3939
  %v3948 = vmul.f32 %v2908, %v3939
  %v3949 = vmul.f32 %v2909, %v3939
  %v3950 = vmul.f32 %v2910, %v3939
  %v3951 = vmul.f32 %v2911, %v3939
  %v3952 = vmul.f32 %v2912, %v3939
  %v3953 = vmul.f32 %v2913, %v3939
  %v3954 = vmul.f32 %v2914, %v3939
  %v3955 = vmul.f32 %v2915, %v3939
  %v3956 = vmul.f32 %v2916, %v3939
  %v3957 = vmul.f32 %v2917, %v3939
  %v3958 = vmul.f32 %v2918, %v3939
  %v3959 = vmul.f32 %v2919, %v3939
  %v3960 = vmul.f32 %v2920, %v3939
  %v3961 = vmul.f32 %v2921, %v3939
  %v3962 = vmul.f32 %v2922, %v3939
  %v3963 = vmul.f32 %v2923, %v3939
  %v3964 = vmul.f32 %v2924, %v3939
  %v3965 = vmul.f32 %v2925, %v3939
  %v3966 = vmul.f32 %v2926, %v3939
  %v3967 = vmul.f32 %v2927, %v3939
  %v3968 = vmul.f32 %v2928, %v3939
  %v3969 = vmul.f32 %v2929, %v3939
  %v3970 = vmul.f32 %v2930, %v3939
  %v3971 = vmul.f32 %v2931, %v3939
  %v3972 = vmul.f32 %v2932, %v3939
  %v3973 = vmul.f32 %v2933, %v3939
  %v3974 = vmul.f32 %v2934, %v3939
  %v3975 = vmul.f32 %v2935, %v3939
  %v3976 = vmul.f32 %v2936, %v3939
  %v3977 = vmul.f32 %v2937, %v3939
  %v3978 = vmul.f32 %v2938, %v3939
  %v3979 = vmul.f32 %v2939, %v3939
  %v3980 = vmul.f32 %v2940, %v3939
  %v3981 = vmul.f32 %v2941, %v3939
  %v3982 = vmul.f32 %v2942, %v3939
  %v3983 = vmul.f32 %v2943, %v3939
  %v3984 = vmul.f32 %v2944, %v3939
  %v3985 = vmul.f32 %v2945, %v3939
  %v3986 = vmul.f32 %v2946, %v3939
  %v3987 = vmul.f32 %v2947, %v3939
  %v3988 = vmul.f32 %v2948, %v3939
  %v3989 = vmul.f32 %v2949, %v3939
  %v3990 = vmul.f32 %v2950, %v3939
  %v3991 = vmul.f32 %v2951, %v3939
  %v3992 = vmul.f32 %v2952, %v3939
  %v3993 = vmul.f32 %v2953, %v3939
  %v3994 = vmul.f32 %v2954, %v3939
  %v3995 = vmul.f32 %v2955, %v3939
  %v3996 = vmul.f32 %v2956, %v3939
  %v3997 = vmul.f32 %v2957, %v3939
  %v3998 = vmul.f32 %v2958, %v3939
  %v3999 = vmul.f32 %v2959, %v3939
  %v4000 = vmul.f32 %v2960, %v3939
  %v4001 = vmul.f32 %v2961, %v3939
  %v4002 = vmul.f32 %v2962, %v3939
  %v4003 = vmul.f32 %v2963, %v3939
  %v4004 = vmul.f32 %v2964, %v3939
  %v4005 = vmul.f32 %v2965, %v3939
  %v4006 = vmul.f32 %v2966, %v3939
  %v4007 = vmul.f32 %v2967, %v3939
  %v4008 = vmul.f32 %v2968, %v3939
  %v4009 = vmul.f32 %v2969, %v3939
  %v4010 = vmul.f32 %v2970, %v3939
  %v4011 = vmul.f32 %v2971, %v3939
  %v4012 = vmul.f32 %v2972, %v3939
  %v4013 = vmul.f32 %v2973, %v3939
  %v4014 = vmul.f32 %v2974, %v3939
  %v4015 = vmul.f32 %v2975, %v3939
  %v4016 = vmul.f32 %v2976, %v3939
  %v4017 = vmul.f32 %v2977, %v3939
  %v4018 = vmul.f32 %v2978, %v3939
  %v4019 = vmul.f32 %v2979, %v3939
  %v4020 = vmul.f32 %v2980, %v3939
  %v4021 = vmul.f32 %v2981, %v3939
  %v4022 = vmul.f32 %v2982, %v3939
  %v4023 = vmul.f32 %v2983, %v3939
  %v4024 = vmul.f32 %v2984, %v3939
  %v4025 = vmul.f32 %v2985, %v3939
  %v4026 = vmul.f32 %v2986, %v3939
  %v4027 = vmul.f32 %v2987, %v3939
  %v4028 = vmul.f32 %v2988, %v3939
  %v4029 = vmul.f32 %v2989, %v3939
  %v4030 = vmul.f32 %v2990, %v3939
  %v4031 = vmul.f32 %v2991, %v3939
  %v4032 = vmul.f32 %v2992, %v3939
  %v4033 = vmul.f32 %v2993, %v3939
  %v4034 = vmul.f32 %v2994, %v3939
  %v4035 = vmul.f32 %v2995, %v3939
  %v4036 = vmul.f32 %v2996, %v3939
  %v4037 = vmul.f32 %v2997, %v3939
  %v4038 = vmul.f32 %v2998, %v3939
  %v4039 = vmul.f32 %v2999, %v3939
  %v4040 = vmul.f32 %v3000, %v3939
  %v4041 = vmul.f32 %v3001, %v3939
  %v4042 = vmul.f32 %v3002, %v3939
  %v4043 = vmul.f32 %v3003, %v3939
  %v4044 = vmul.f32 %v3004, %v3939
  %v4045 = vmul.f32 %v3005, %v3939
  %v4046 = vmul.f32 %v3006, %v3939
  %v4047 = vmul.f32 %v3007, %v3939
  %v4048 = vmul.f32 %v3008, %v3939
  %v4049 = vmul.f32 %v3009, %v3939
  %v4050 = vmul.f32 %v3010, %v3939
  %v4051 = vmul.f32 %v3011, %v3939
  %v4052 = vmul.f32 %v3012, %v3939
  %v4053 = vmul.f32 %v3013, %v3939
  %v4054 = vmul.f32 %v3014, %v3939
  %v4055 = vmul.f32 %v3015, %v3939
  %v4056 = vmul.f32 %v3016, %v3939
  %v4057 = vmul.f32 %v3017, %v3939
  %v4058 = vmul.f32 %v3018, %v3939
  %v4059 = vmul.f32 %v3019, %v3939
  %v4060 = vmul.f32 %v3020, %v3939
  %v4061 = vmul.f32 %v3021, %v3939
  %v4062 = vmul.f32 %v3022, %v3939
  %v4063 = vmul.f32 %v3023, %v3939
  %v4064 = vmul.f32 %v3024, %v3939
  %v4065 = vmul.f32 %v3025, %v3939
  %v4066 = vmul.f32 %v3026, %v3939
  %v4067 = vmul.f32 %v3027, %v3939
  %v4068 = vmul.f32 %v3028, %v3939
  %v4069 = vmul.f32 %v3029, %v3939
  %v4070 = vmul.f32 %v3030, %v3939
  %v4071 = vmul.f32 %v3031, %v3939
  %v4072 = vmul.f32 %v3032, %v3939
  %v4073 = vmul.f32 %v3033, %v3939
  %v4074 = vmul.f32 %v3034, %v3939
  %v4075 = vmul.f32 %v3035, %v3939
  %v4076 = vmul.f32 %v3036, %v3939
  %v4077 = vmul.f32 %v3037, %v3939
  %v4078 = vmul.f32 %v3038, %v3939
  %v4079 = vmul.f32 %v3039, %v3939
  %v4080 = vmul.f32 %v3040, %v3939
  %v4081 = vmul.f32 %v3041, %v3939
  %v4082 = vmul.f32 %v3042, %v3939
  %v4083 = vmul.f32 %v3043, %v3939
  %v4084 = vmul.f32 %v3044, %v3939
  %v4085 = vmul.f32 %v3045, %v3939
  %v4086 = vmul.f32 %v3046, %v3939
  %v4087 = vmul.f32 %v3047, %v3939
  %v4088 = vmul.f32 %v3048, %v3939
  %v4089 = vmul.f32 %v3049, %v3939
  %v4090 = vmul.f32 %v3050, %v3939
  %v4091 = vmul.f32 %v3051, %v3939
  %v4092 = vmul.f32 %v3052, %v3939
  %v4093 = vmul.f32 %v3053, %v3939
  %v4094 = vmul.f32 %v3054, %v3939
  %v4095 = vmul.f32 %v3055, %v3939
  %v4096 = vmul.f32 %v3056, %v3939
  %v4097 = vmul.f32 %v3057, %v3939
  %v4098 = vmul.f32 %v3058, %v3939
  %v4099 = vmul.f32 %v3059, %v3939
  %v4100 = vmul.f32 %v3060, %v3939
  %v4101 = vmul.f32 %v3061, %v3939
  %v4102 = vmul.f32 %v3062, %v3939
  %v4103 = vmul.f32 %v3063, %v3939
  %v4104 = vmul.f32 %v3064, %v3939
  %v4105 = vmul.f32 %v3065, %v3939
  %v4106 = vmul.f32 %v3066, %v3939
  %v4107 = vmul.f32 %v3067, %v3939
  %v4108 = vmul.f32 %v3068, %v3939
  %v4109 = vmul.f32 %v3069, %v3939
  %v4110 = vmul.f32 %v3070, %v3939
  %v4111 = vmul.f32 %v3071, %v3939
  %v4112 = vmul.f32 %v3072, %v3939
  %v4113 = vmul.f32 %v3073, %v3939
  %v4114 = vmul.f32 %v3074, %v3939
  %v4115 = vmul.f32 %v3075, %v3939
  %v4116 = vmul.f32 %v3076, %v3939
  %v4117 = vmul.f32 %v3077, %v3939
  %v4118 = vmul.f32 %v3078, %v3939
  %v4119 = vmul.f32 %v3079, %v3939
  %v4120 = vmul.f32 %v3080, %v3939
  %v4121 = vmul.f32 %v3081, %v3939
  %v4122 = vmul.f32 %v3082, %v3939
  %v4123 = vmul.f32 %v3083, %v3939
  %v4124 = vmul.f32 %v3084, %v3939
  %v4125 = vmul.f32 %v3085, %v3939
  %v4126 = vmul.f32 %v3086, %v3939
  %v4127 = vmul.f32 %v3087, %v3939
  %v4128 = vmul.f32 %v3088, %v3939
  %v4129 = vmul.f32 %v3089, %v3939
  %v4130 = vmul.f32 %v3090, %v3939
  %v4131 = vmul.f32 %v3091, %v3939
  %v4132 = vmul.f32 %v3092, %v3939
  %v4133 = vmul.f32 %v3093, %v3939
  %v4134 = vmul.f32 %v3094, %v3939
  %v4135 = vmul.f32 %v3095, %v3939
  %v4136 = vmul.f32 %v3096, %v3939
  %v4137 = vmul.f32 %v3097, %v3939
  %v4138 = vmul.f32 %v3098, %v3939
  %v4139 = vmul.f32 %v3099, %v3939
  %v4140 = vmul.f32 %v3100, %v3939
  %v4141 = vmul.f32 %v3101, %v3939
  %v4142 = vmul.f32 %v3102, %v3939
  %v4143 = vmul.f32 %v3103, %v3939
  %v4144 = vmul.f32 %v3104, %v3939
  %v4145 = vmul.f32 %v3105, %v3939
  %v4146 = vmul.f32 %v3106, %v3939
  %v4147 = vmul.f32 %v3107, %v3939
  %v4148 = vmul.f32 %v3108, %v3939
  %v4149 = vmul.f32 %v3109, %v3939
  %v4150 = vmul.f32 %v3110, %v3939
  %v4151 = vmul.f32 %v3111, %v3939
  %v4152 = vmul.f32 %v3112, %v3939
  %v4153 = vmul.f32 %v3113, %v3939
  %v4154 = vmul.f32 %v3114, %v3939
  %v4155 = vmul.f32 %v3115, %v3939
  %v4156 = vmul.f32 %v3116, %v3939
  %v4157 = vmul.f32 %v3117, %v3939
  %v4158 = vmul.f32 %v3118, %v3939
  %v4159 = vmul.f32 %v3119, %v3939
  %v4160 = vmul.f32 %v3120, %v3939
  %v4161 = vmul.f32 %v3121, %v3939
  %v4162 = vmul.f32 %v3122, %v3939
  %v4163 = vmul.f32 %v3123, %v3939
  %v4164 = vmul.f32 %v3124, %v3939
  %v4165 = vmul.f32 %v3125, %v3939
  %v4166 = vmul.f32 %v3126, %v3939
  %v4167 = vmul.f32 %v3127, %v3939
  %v4168 = vmul.f32 %v3128, %v3939
  %v4169 = vmul.f32 %v3129, %v3939
  %v4170 = vmul.f32 %v3130, %v3939
  %v4171 = vmul.f32 %v3131, %v3939
  %v4172 = vmul.f32 %v3132, %v3939
  %v4173 = vmul.f32 %v3133, %v3939
  %v4174 = vmul.f32 %v3134, %v3939
  %v4175 = vmul.f32 %v3135, %v3939
  %v4176 = vmul.f32 %v3136, %v3939
  %v4177 = vmul.f32 %v3137, %v3939
  %v4178 = vmul.f32 %v3138, %v3939
  %v4179 = vmul.f32 %v3139, %v3939
  %v4180 = vmul.f32 %v3140, %v3939
  %v4181 = vmul.f32 %v3141, %v3939
  %v4182 = vmul.f32 %v3142, %v3939
  %v4183 = vmul.f32 %v3143, %v3939
  %v4184 = vmul.f32 %v3144, %v3939
  %v4185 = vmul.f32 %v3145, %v3939
  %v4186 = vmul.f32 %v3146, %v3939
  %v4187 = vmul.f32 %v3147, %v3939
  %v4188 = vmul.f32 %v3148, %v3939
  %v4189 = vmul.f32 %v3149, %v3939
  %v4190 = vmul.f32 %v3150, %v3939
  %v4191 = vmul.f32 %v3151, %v3939
  %v4192 = vmul.f32 %v3152, %v3939
  %v4193 = vmul.f32 %v3153, %v3939
  %v4194 = vmul.f32 %v3154, %v3939
  %v4195 = vmul.f32 %v3155, %v3939
  %v4196 = vmul.f32 %v3156, %v3939
  %v4197 = vld [vmem:[%s4] sm:$0x1]
  %v4199 = vlaneseq
  %v4200 = vshrl.u32 %v4199, 7
  %v4201 = vsub.s32 0, %v4200
  %v4202 = vrot.slane %v4197, %v4201
  %v4204 = vadd.f32 %v3941, %v4202
  %v4205 = vadd.f32 %v3942, %v4202
  %v4206 = vadd.f32 %v3943, %v4202
  %v4207 = vadd.f32 %v3944, %v4202
  %v4208 = vadd.f32 %v3945, %v4202
  %v4209 = vadd.f32 %v3946, %v4202
  %v4210 = vadd.f32 %v3947, %v4202
  %v4211 = vadd.f32 %v3948, %v4202
  %v4212 = vadd.f32 %v3949, %v4202
  %v4213 = vadd.f32 %v3950, %v4202
  %v4214 = vadd.f32 %v3951, %v4202
  %v4215 = vadd.f32 %v3952, %v4202
  %v4216 = vadd.f32 %v3953, %v4202
  %v4217 = vadd.f32 %v3954, %v4202
  %v4218 = vadd.f32 %v3955, %v4202
  %v4219 = vadd.f32 %v3956, %v4202
  %v4220 = vadd.f32 %v3957, %v4202
  %v4221 = vadd.f32 %v3958, %v4202
  %v4222 = vadd.f32 %v3959, %v4202
  %v4223 = vadd.f32 %v3960, %v4202
  %v4224 = vadd.f32 %v3961, %v4202
  %v4225 = vadd.f32 %v3962, %v4202
  %v4226 = vadd.f32 %v3963, %v4202
  %v4227 = vadd.f32 %v3964, %v4202
  %v4228 = vadd.f32 %v3965, %v4202
  %v4229 = vadd.f32 %v3966, %v4202
  %v4230 = vadd.f32 %v3967, %v4202
  %v4231 = vadd.f32 %v3968, %v4202
  %v4232 = vadd.f32 %v3969, %v4202
  %v4233 = vadd.f32 %v3970, %v4202
  %v4234 = vadd.f32 %v3971, %v4202
  %v4235 = vadd.f32 %v3972, %v4202
  %v4236 = vadd.f32 %v3973, %v4202
  %v4237 = vadd.f32 %v3974, %v4202
  %v4238 = vadd.f32 %v3975, %v4202
  %v4239 = vadd.f32 %v3976, %v4202
  %v4240 = vadd.f32 %v3977, %v4202
  %v4241 = vadd.f32 %v3978, %v4202
  %v4242 = vadd.f32 %v3979, %v4202
  %v4243 = vadd.f32 %v3980, %v4202
  %v4244 = vadd.f32 %v3981, %v4202
  %v4245 = vadd.f32 %v3982, %v4202
  %v4246 = vadd.f32 %v3983, %v4202
  %v4247 = vadd.f32 %v3984, %v4202
  %v4248 = vadd.f32 %v3985, %v4202
  %v4249 = vadd.f32 %v3986, %v4202
  %v4250 = vadd.f32 %v3987, %v4202
  %v4251 = vadd.f32 %v3988, %v4202
  %v4252 = vadd.f32 %v3989, %v4202
  %v4253 = vadd.f32 %v3990, %v4202
  %v4254 = vadd.f32 %v3991, %v4202
  %v4255 = vadd.f32 %v3992, %v4202
  %v4256 = vadd.f32 %v3993, %v4202
  %v4257 = vadd.f32 %v3994, %v4202
  %v4258 = vadd.f32 %v3995, %v4202
  %v4259 = vadd.f32 %v3996, %v4202
  %v4260 = vadd.f32 %v3997, %v4202
  %v4261 = vadd.f32 %v3998, %v4202
  %v4262 = vadd.f32 %v3999, %v4202
  %v4263 = vadd.f32 %v4000, %v4202
  %v4264 = vadd.f32 %v4001, %v4202
  %v4265 = vadd.f32 %v4002, %v4202
  %v4266 = vadd.f32 %v4003, %v4202
  %v4267 = vadd.f32 %v4004, %v4202
  %v4268 = vadd.f32 %v4005, %v4202
  %v4269 = vadd.f32 %v4006, %v4202
  %v4270 = vadd.f32 %v4007, %v4202
  %v4271 = vadd.f32 %v4008, %v4202
  %v4272 = vadd.f32 %v4009, %v4202
  %v4273 = vadd.f32 %v4010, %v4202
  %v4274 = vadd.f32 %v4011, %v4202
  %v4275 = vadd.f32 %v4012, %v4202
  %v4276 = vadd.f32 %v4013, %v4202
  %v4277 = vadd.f32 %v4014, %v4202
  %v4278 = vadd.f32 %v4015, %v4202
  %v4279 = vadd.f32 %v4016, %v4202
  %v4280 = vadd.f32 %v4017, %v4202
  %v4281 = vadd.f32 %v4018, %v4202
  %v4282 = vadd.f32 %v4019, %v4202
  %v4283 = vadd.f32 %v4020, %v4202
  %v4284 = vadd.f32 %v4021, %v4202
  %v4285 = vadd.f32 %v4022, %v4202
  %v4286 = vadd.f32 %v4023, %v4202
  %v4287 = vadd.f32 %v4024, %v4202
  %v4288 = vadd.f32 %v4025, %v4202
  %v4289 = vadd.f32 %v4026, %v4202
  %v4290 = vadd.f32 %v4027, %v4202
  %v4291 = vadd.f32 %v4028, %v4202
  %v4292 = vadd.f32 %v4029, %v4202
  %v4293 = vadd.f32 %v4030, %v4202
  %v4294 = vadd.f32 %v4031, %v4202
  %v4295 = vadd.f32 %v4032, %v4202
  %v4296 = vadd.f32 %v4033, %v4202
  %v4297 = vadd.f32 %v4034, %v4202
  %v4298 = vadd.f32 %v4035, %v4202
  %v4299 = vadd.f32 %v4036, %v4202
  %v4300 = vadd.f32 %v4037, %v4202
  %v4301 = vadd.f32 %v4038, %v4202
  %v4302 = vadd.f32 %v4039, %v4202
  %v4303 = vadd.f32 %v4040, %v4202
  %v4304 = vadd.f32 %v4041, %v4202
  %v4305 = vadd.f32 %v4042, %v4202
  %v4306 = vadd.f32 %v4043, %v4202
  %v4307 = vadd.f32 %v4044, %v4202
  %v4308 = vadd.f32 %v4045, %v4202
  %v4309 = vadd.f32 %v4046, %v4202
  %v4310 = vadd.f32 %v4047, %v4202
  %v4311 = vadd.f32 %v4048, %v4202
  %v4312 = vadd.f32 %v4049, %v4202
  %v4313 = vadd.f32 %v4050, %v4202
  %v4314 = vadd.f32 %v4051, %v4202
  %v4315 = vadd.f32 %v4052, %v4202
  %v4316 = vadd.f32 %v4053, %v4202
  %v4317 = vadd.f32 %v4054, %v4202
  %v4318 = vadd.f32 %v4055, %v4202
  %v4319 = vadd.f32 %v4056, %v4202
  %v4320 = vadd.f32 %v4057, %v4202
  %v4321 = vadd.f32 %v4058, %v4202
  %v4322 = vadd.f32 %v4059, %v4202
  %v4323 = vadd.f32 %v4060, %v4202
  %v4324 = vadd.f32 %v4061, %v4202
  %v4325 = vadd.f32 %v4062, %v4202
  %v4326 = vadd.f32 %v4063, %v4202
  %v4327 = vadd.f32 %v4064, %v4202
  %v4328 = vadd.f32 %v4065, %v4202
  %v4329 = vadd.f32 %v4066, %v4202
  %v4330 = vadd.f32 %v4067, %v4202
  %v4331 = vadd.f32 %v4068, %v4202
  %v4332 = vadd.f32 %v4069, %v4202
  %v4333 = vadd.f32 %v4070, %v4202
  %v4334 = vadd.f32 %v4071, %v4202
  %v4335 = vadd.f32 %v4072, %v4202
  %v4336 = vadd.f32 %v4073, %v4202
  %v4337 = vadd.f32 %v4074, %v4202
  %v4338 = vadd.f32 %v4075, %v4202
  %v4339 = vadd.f32 %v4076, %v4202
  %v4340 = vadd.f32 %v4077, %v4202
  %v4341 = vadd.f32 %v4078, %v4202
  %v4342 = vadd.f32 %v4079, %v4202
  %v4343 = vadd.f32 %v4080, %v4202
  %v4344 = vadd.f32 %v4081, %v4202
  %v4345 = vadd.f32 %v4082, %v4202
  %v4346 = vadd.f32 %v4083, %v4202
  %v4347 = vadd.f32 %v4084, %v4202
  %v4348 = vadd.f32 %v4085, %v4202
  %v4349 = vadd.f32 %v4086, %v4202
  %v4350 = vadd.f32 %v4087, %v4202
  %v4351 = vadd.f32 %v4088, %v4202
  %v4352 = vadd.f32 %v4089, %v4202
  %v4353 = vadd.f32 %v4090, %v4202
  %v4354 = vadd.f32 %v4091, %v4202
  %v4355 = vadd.f32 %v4092, %v4202
  %v4356 = vadd.f32 %v4093, %v4202
  %v4357 = vadd.f32 %v4094, %v4202
  %v4358 = vadd.f32 %v4095, %v4202
  %v4359 = vadd.f32 %v4096, %v4202
  %v4360 = vadd.f32 %v4097, %v4202
  %v4361 = vadd.f32 %v4098, %v4202
  %v4362 = vadd.f32 %v4099, %v4202
  %v4363 = vadd.f32 %v4100, %v4202
  %v4364 = vadd.f32 %v4101, %v4202
  %v4365 = vadd.f32 %v4102, %v4202
  %v4366 = vadd.f32 %v4103, %v4202
  %v4367 = vadd.f32 %v4104, %v4202
  %v4368 = vadd.f32 %v4105, %v4202
  %v4369 = vadd.f32 %v4106, %v4202
  %v4370 = vadd.f32 %v4107, %v4202
  %v4371 = vadd.f32 %v4108, %v4202
  %v4372 = vadd.f32 %v4109, %v4202
  %v4373 = vadd.f32 %v4110, %v4202
  %v4374 = vadd.f32 %v4111, %v4202
  %v4375 = vadd.f32 %v4112, %v4202
  %v4376 = vadd.f32 %v4113, %v4202
  %v4377 = vadd.f32 %v4114, %v4202
  %v4378 = vadd.f32 %v4115, %v4202
  %v4379 = vadd.f32 %v4116, %v4202
  %v4380 = vadd.f32 %v4117, %v4202
  %v4381 = vadd.f32 %v4118, %v4202
  %v4382 = vadd.f32 %v4119, %v4202
  %v4383 = vadd.f32 %v4120, %v4202
  %v4384 = vadd.f32 %v4121, %v4202
  %v4385 = vadd.f32 %v4122, %v4202
  %v4386 = vadd.f32 %v4123, %v4202
  %v4387 = vadd.f32 %v4124, %v4202
  %v4388 = vadd.f32 %v4125, %v4202
  %v4389 = vadd.f32 %v4126, %v4202
  %v4390 = vadd.f32 %v4127, %v4202
  %v4391 = vadd.f32 %v4128, %v4202
  %v4392 = vadd.f32 %v4129, %v4202
  %v4393 = vadd.f32 %v4130, %v4202
  %v4394 = vadd.f32 %v4131, %v4202
  %v4395 = vadd.f32 %v4132, %v4202
  %v4396 = vadd.f32 %v4133, %v4202
  %v4397 = vadd.f32 %v4134, %v4202
  %v4398 = vadd.f32 %v4135, %v4202
  %v4399 = vadd.f32 %v4136, %v4202
  %v4400 = vadd.f32 %v4137, %v4202
  %v4401 = vadd.f32 %v4138, %v4202
  %v4402 = vadd.f32 %v4139, %v4202
  %v4403 = vadd.f32 %v4140, %v4202
  %v4404 = vadd.f32 %v4141, %v4202
  %v4405 = vadd.f32 %v4142, %v4202
  %v4406 = vadd.f32 %v4143, %v4202
  %v4407 = vadd.f32 %v4144, %v4202
  %v4408 = vadd.f32 %v4145, %v4202
  %v4409 = vadd.f32 %v4146, %v4202
  %v4410 = vadd.f32 %v4147, %v4202
  %v4411 = vadd.f32 %v4148, %v4202
  %v4412 = vadd.f32 %v4149, %v4202
  %v4413 = vadd.f32 %v4150, %v4202
  %v4414 = vadd.f32 %v4151, %v4202
  %v4415 = vadd.f32 %v4152, %v4202
  %v4416 = vadd.f32 %v4153, %v4202
  %v4417 = vadd.f32 %v4154, %v4202
  %v4418 = vadd.f32 %v4155, %v4202
  %v4419 = vadd.f32 %v4156, %v4202
  %v4420 = vadd.f32 %v4157, %v4202
  %v4421 = vadd.f32 %v4158, %v4202
  %v4422 = vadd.f32 %v4159, %v4202
  %v4423 = vadd.f32 %v4160, %v4202
  %v4424 = vadd.f32 %v4161, %v4202
  %v4425 = vadd.f32 %v4162, %v4202
  %v4426 = vadd.f32 %v4163, %v4202
  %v4427 = vadd.f32 %v4164, %v4202
  %v4428 = vadd.f32 %v4165, %v4202
  %v4429 = vadd.f32 %v4166, %v4202
  %v4430 = vadd.f32 %v4167, %v4202
  %v4431 = vadd.f32 %v4168, %v4202
  %v4432 = vadd.f32 %v4169, %v4202
  %v4433 = vadd.f32 %v4170, %v4202
  %v4434 = vadd.f32 %v4171, %v4202
  %v4435 = vadd.f32 %v4172, %v4202
  %v4436 = vadd.f32 %v4173, %v4202
  %v4437 = vadd.f32 %v4174, %v4202
  %v4438 = vadd.f32 %v4175, %v4202
  %v4439 = vadd.f32 %v4176, %v4202
  %v4440 = vadd.f32 %v4177, %v4202
  %v4441 = vadd.f32 %v4178, %v4202
  %v4442 = vadd.f32 %v4179, %v4202
  %v4443 = vadd.f32 %v4180, %v4202
  %v4444 = vadd.f32 %v4181, %v4202
  %v4445 = vadd.f32 %v4182, %v4202
  %v4446 = vadd.f32 %v4183, %v4202
  %v4447 = vadd.f32 %v4184, %v4202
  %v4448 = vadd.f32 %v4185, %v4202
  %v4449 = vadd.f32 %v4186, %v4202
  %v4450 = vadd.f32 %v4187, %v4202
  %v4451 = vadd.f32 %v4188, %v4202
  %v4452 = vadd.f32 %v4189, %v4202
  %v4453 = vadd.f32 %v4190, %v4202
  %v4454 = vadd.f32 %v4191, %v4202
  %v4455 = vadd.f32 %v4192, %v4202
  %v4456 = vadd.f32 %v4193, %v4202
  %v4457 = vadd.f32 %v4194, %v4202
  %v4458 = vadd.f32 %v4195, %v4202
  %v4459 = vadd.f32 %v4196, %v4202
  %v4460 = vmax.f32 %v4204, 0.0
  %v4461 = vmax.f32 %v4205, 0.0
  %v4462 = vmax.f32 %v4206, 0.0
  %v4463 = vmax.f32 %v4207, 0.0
  %v4464 = vmax.f32 %v4208, 0.0
  %v4465 = vmax.f32 %v4209, 0.0
  %v4466 = vmax.f32 %v4210, 0.0
  %v4467 = vmax.f32 %v4211, 0.0
  %v4468 = vmax.f32 %v4212, 0.0
  %v4469 = vmax.f32 %v4213, 0.0
  %v4470 = vmax.f32 %v4214, 0.0
  %v4471 = vmax.f32 %v4215, 0.0
  %v4472 = vmax.f32 %v4216, 0.0
  %v4473 = vmax.f32 %v4217, 0.0
  %v4474 = vmax.f32 %v4218, 0.0
  %v4475 = vmax.f32 %v4219, 0.0
  %v4476 = vmax.f32 %v4220, 0.0
  %v4477 = vmax.f32 %v4221, 0.0
  %v4478 = vmax.f32 %v4222, 0.0
  %v4479 = vmax.f32 %v4223, 0.0
  %v4480 = vmax.f32 %v4224, 0.0
  %v4481 = vmax.f32 %v4225, 0.0
  %v4482 = vmax.f32 %v4226, 0.0
  %v4483 = vmax.f32 %v4227, 0.0
  %v4484 = vmax.f32 %v4228, 0.0
  %v4485 = vmax.f32 %v4229, 0.0
  %v4486 = vmax.f32 %v4230, 0.0
  %v4487 = vmax.f32 %v4231, 0.0
  %v4488 = vmax.f32 %v4232, 0.0
  %v4489 = vmax.f32 %v4233, 0.0
  %v4490 = vmax.f32 %v4234, 0.0
  %v4491 = vmax.f32 %v4235, 0.0
  %v4492 = vmax.f32 %v4236, 0.0
  %v4493 = vmax.f32 %v4237, 0.0
  %v4494 = vmax.f32 %v4238, 0.0
  %v4495 = vmax.f32 %v4239, 0.0
  %v4496 = vmax.f32 %v4240, 0.0
  %v4497 = vmax.f32 %v4241, 0.0
  %v4498 = vmax.f32 %v4242, 0.0
  %v4499 = vmax.f32 %v4243, 0.0
  %v4500 = vmax.f32 %v4244, 0.0
  %v4501 = vmax.f32 %v4245, 0.0
  %v4502 = vmax.f32 %v4246, 0.0
  %v4503 = vmax.f32 %v4247, 0.0
  %v4504 = vmax.f32 %v4248, 0.0
  %v4505 = vmax.f32 %v4249, 0.0
  %v4506 = vmax.f32 %v4250, 0.0
  %v4507 = vmax.f32 %v4251, 0.0
  %v4508 = vmax.f32 %v4252, 0.0
  %v4509 = vmax.f32 %v4253, 0.0
  %v4510 = vmax.f32 %v4254, 0.0
  %v4511 = vmax.f32 %v4255, 0.0
  %v4512 = vmax.f32 %v4256, 0.0
  %v4513 = vmax.f32 %v4257, 0.0
  %v4514 = vmax.f32 %v4258, 0.0
  %v4515 = vmax.f32 %v4259, 0.0
  %v4516 = vmax.f32 %v4260, 0.0
  %v4517 = vmax.f32 %v4261, 0.0
  %v4518 = vmax.f32 %v4262, 0.0
  %v4519 = vmax.f32 %v4263, 0.0
  %v4520 = vmax.f32 %v4264, 0.0
  %v4521 = vmax.f32 %v4265, 0.0
  %v4522 = vmax.f32 %v4266, 0.0
  %v4523 = vmax.f32 %v4267, 0.0
  %v4524 = vmax.f32 %v4268, 0.0
  %v4525 = vmax.f32 %v4269, 0.0
  %v4526 = vmax.f32 %v4270, 0.0
  %v4527 = vmax.f32 %v4271, 0.0
  %v4528 = vmax.f32 %v4272, 0.0
  %v4529 = vmax.f32 %v4273, 0.0
  %v4530 = vmax.f32 %v4274, 0.0
  %v4531 = vmax.f32 %v4275, 0.0
  %v4532 = vmax.f32 %v4276, 0.0
  %v4533 = vmax.f32 %v4277, 0.0
  %v4534 = vmax.f32 %v4278, 0.0
  %v4535 = vmax.f32 %v4279, 0.0
  %v4536 = vmax.f32 %v4280, 0.0
  %v4537 = vmax.f32 %v4281, 0.0
  %v4538 = vmax.f32 %v4282, 0.0
  %v4539 = vmax.f32 %v4283, 0.0
  %v4540 = vmax.f32 %v4284, 0.0
  %v4541 = vmax.f32 %v4285, 0.0
  %v4542 = vmax.f32 %v4286, 0.0
  %v4543 = vmax.f32 %v4287, 0.0
  %v4544 = vmax.f32 %v4288, 0.0
  %v4545 = vmax.f32 %v4289, 0.0
  %v4546 = vmax.f32 %v4290, 0.0
  %v4547 = vmax.f32 %v4291, 0.0
  %v4548 = vmax.f32 %v4292, 0.0
  %v4549 = vmax.f32 %v4293, 0.0
  %v4550 = vmax.f32 %v4294, 0.0
  %v4551 = vmax.f32 %v4295, 0.0
  %v4552 = vmax.f32 %v4296, 0.0
  %v4553 = vmax.f32 %v4297, 0.0
  %v4554 = vmax.f32 %v4298, 0.0
  %v4555 = vmax.f32 %v4299, 0.0
  %v4556 = vmax.f32 %v4300, 0.0
  %v4557 = vmax.f32 %v4301, 0.0
  %v4558 = vmax.f32 %v4302, 0.0
  %v4559 = vmax.f32 %v4303, 0.0
  %v4560 = vmax.f32 %v4304, 0.0
  %v4561 = vmax.f32 %v4305, 0.0
  %v4562 = vmax.f32 %v4306, 0.0
  %v4563 = vmax.f32 %v4307, 0.0
  %v4564 = vmax.f32 %v4308, 0.0
  %v4565 = vmax.f32 %v4309, 0.0
  %v4566 = vmax.f32 %v4310, 0.0
  %v4567 = vmax.f32 %v4311, 0.0
  %v4568 = vmax.f32 %v4312, 0.0
  %v4569 = vmax.f32 %v4313, 0.0
  %v4570 = vmax.f32 %v4314, 0.0
  %v4571 = vmax.f32 %v4315, 0.0
  %v4572 = vmax.f32 %v4316, 0.0
  %v4573 = vmax.f32 %v4317, 0.0
  %v4574 = vmax.f32 %v4318, 0.0
  %v4575 = vmax.f32 %v4319, 0.0
  %v4576 = vmax.f32 %v4320, 0.0
  %v4577 = vmax.f32 %v4321, 0.0
  %v4578 = vmax.f32 %v4322, 0.0
  %v4579 = vmax.f32 %v4323, 0.0
  %v4580 = vmax.f32 %v4324, 0.0
  %v4581 = vmax.f32 %v4325, 0.0
  %v4582 = vmax.f32 %v4326, 0.0
  %v4583 = vmax.f32 %v4327, 0.0
  %v4584 = vmax.f32 %v4328, 0.0
  %v4585 = vmax.f32 %v4329, 0.0
  %v4586 = vmax.f32 %v4330, 0.0
  %v4587 = vmax.f32 %v4331, 0.0
  %v4588 = vmax.f32 %v4332, 0.0
  %v4589 = vmax.f32 %v4333, 0.0
  %v4590 = vmax.f32 %v4334, 0.0
  %v4591 = vmax.f32 %v4335, 0.0
  %v4592 = vmax.f32 %v4336, 0.0
  %v4593 = vmax.f32 %v4337, 0.0
  %v4594 = vmax.f32 %v4338, 0.0
  %v4595 = vmax.f32 %v4339, 0.0
  %v4596 = vmax.f32 %v4340, 0.0
  %v4597 = vmax.f32 %v4341, 0.0
  %v4598 = vmax.f32 %v4342, 0.0
  %v4599 = vmax.f32 %v4343, 0.0
  %v4600 = vmax.f32 %v4344, 0.0
  %v4601 = vmax.f32 %v4345, 0.0
  %v4602 = vmax.f32 %v4346, 0.0
  %v4603 = vmax.f32 %v4347, 0.0
  %v4604 = vmax.f32 %v4348, 0.0
  %v4605 = vmax.f32 %v4349, 0.0
  %v4606 = vmax.f32 %v4350, 0.0
  %v4607 = vmax.f32 %v4351, 0.0
  %v4608 = vmax.f32 %v4352, 0.0
  %v4609 = vmax.f32 %v4353, 0.0
  %v4610 = vmax.f32 %v4354, 0.0
  %v4611 = vmax.f32 %v4355, 0.0
  %v4612 = vmax.f32 %v4356, 0.0
  %v4613 = vmax.f32 %v4357, 0.0
  %v4614 = vmax.f32 %v4358, 0.0
  %v4615 = vmax.f32 %v4359, 0.0
  %v4616 = vmax.f32 %v4360, 0.0
  %v4617 = vmax.f32 %v4361, 0.0
  %v4618 = vmax.f32 %v4362, 0.0
  %v4619 = vmax.f32 %v4363, 0.0
  %v4620 = vmax.f32 %v4364, 0.0
  %v4621 = vmax.f32 %v4365, 0.0
  %v4622 = vmax.f32 %v4366, 0.0
  %v4623 = vmax.f32 %v4367, 0.0
  %v4624 = vmax.f32 %v4368, 0.0
  %v4625 = vmax.f32 %v4369, 0.0
  %v4626 = vmax.f32 %v4370, 0.0
  %v4627 = vmax.f32 %v4371, 0.0
  %v4628 = vmax.f32 %v4372, 0.0
  %v4629 = vmax.f32 %v4373, 0.0
  %v4630 = vmax.f32 %v4374, 0.0
  %v4631 = vmax.f32 %v4375, 0.0
  %v4632 = vmax.f32 %v4376, 0.0
  %v4633 = vmax.f32 %v4377, 0.0
  %v4634 = vmax.f32 %v4378, 0.0
  %v4635 = vmax.f32 %v4379, 0.0
  %v4636 = vmax.f32 %v4380, 0.0
  %v4637 = vmax.f32 %v4381, 0.0
  %v4638 = vmax.f32 %v4382, 0.0
  %v4639 = vmax.f32 %v4383, 0.0
  %v4640 = vmax.f32 %v4384, 0.0
  %v4641 = vmax.f32 %v4385, 0.0
  %v4642 = vmax.f32 %v4386, 0.0
  %v4643 = vmax.f32 %v4387, 0.0
  %v4644 = vmax.f32 %v4388, 0.0
  %v4645 = vmax.f32 %v4389, 0.0
  %v4646 = vmax.f32 %v4390, 0.0
  %v4647 = vmax.f32 %v4391, 0.0
  %v4648 = vmax.f32 %v4392, 0.0
  %v4649 = vmax.f32 %v4393, 0.0
  %v4650 = vmax.f32 %v4394, 0.0
  %v4651 = vmax.f32 %v4395, 0.0
  %v4652 = vmax.f32 %v4396, 0.0
  %v4653 = vmax.f32 %v4397, 0.0
  %v4654 = vmax.f32 %v4398, 0.0
  %v4655 = vmax.f32 %v4399, 0.0
  %v4656 = vmax.f32 %v4400, 0.0
  %v4657 = vmax.f32 %v4401, 0.0
  %v4658 = vmax.f32 %v4402, 0.0
  %v4659 = vmax.f32 %v4403, 0.0
  %v4660 = vmax.f32 %v4404, 0.0
  %v4661 = vmax.f32 %v4405, 0.0
  %v4662 = vmax.f32 %v4406, 0.0
  %v4663 = vmax.f32 %v4407, 0.0
  %v4664 = vmax.f32 %v4408, 0.0
  %v4665 = vmax.f32 %v4409, 0.0
  %v4666 = vmax.f32 %v4410, 0.0
  %v4667 = vmax.f32 %v4411, 0.0
  %v4668 = vmax.f32 %v4412, 0.0
  %v4669 = vmax.f32 %v4413, 0.0
  %v4670 = vmax.f32 %v4414, 0.0
  %v4671 = vmax.f32 %v4415, 0.0
  %v4672 = vmax.f32 %v4416, 0.0
  %v4673 = vmax.f32 %v4417, 0.0
  %v4674 = vmax.f32 %v4418, 0.0
  %v4675 = vmax.f32 %v4419, 0.0
  %v4676 = vmax.f32 %v4420, 0.0
  %v4677 = vmax.f32 %v4421, 0.0
  %v4678 = vmax.f32 %v4422, 0.0
  %v4679 = vmax.f32 %v4423, 0.0
  %v4680 = vmax.f32 %v4424, 0.0
  %v4681 = vmax.f32 %v4425, 0.0
  %v4682 = vmax.f32 %v4426, 0.0
  %v4683 = vmax.f32 %v4427, 0.0
  %v4684 = vmax.f32 %v4428, 0.0
  %v4685 = vmax.f32 %v4429, 0.0
  %v4686 = vmax.f32 %v4430, 0.0
  %v4687 = vmax.f32 %v4431, 0.0
  %v4688 = vmax.f32 %v4432, 0.0
  %v4689 = vmax.f32 %v4433, 0.0
  %v4690 = vmax.f32 %v4434, 0.0
  %v4691 = vmax.f32 %v4435, 0.0
  %v4692 = vmax.f32 %v4436, 0.0
  %v4693 = vmax.f32 %v4437, 0.0
  %v4694 = vmax.f32 %v4438, 0.0
  %v4695 = vmax.f32 %v4439, 0.0
  %v4696 = vmax.f32 %v4440, 0.0
  %v4697 = vmax.f32 %v4441, 0.0
  %v4698 = vmax.f32 %v4442, 0.0
  %v4699 = vmax.f32 %v4443, 0.0
  %v4700 = vmax.f32 %v4444, 0.0
  %v4701 = vmax.f32 %v4445, 0.0
  %v4702 = vmax.f32 %v4446, 0.0
  %v4703 = vmax.f32 %v4447, 0.0
  %v4704 = vmax.f32 %v4448, 0.0
  %v4705 = vmax.f32 %v4449, 0.0
  %v4706 = vmax.f32 %v4450, 0.0
  %v4707 = vmax.f32 %v4451, 0.0
  %v4708 = vmax.f32 %v4452, 0.0
  %v4709 = vmax.f32 %v4453, 0.0
  %v4710 = vmax.f32 %v4454, 0.0
  %v4711 = vmax.f32 %v4455, 0.0
  %v4712 = vmax.f32 %v4456, 0.0
  %v4713 = vmax.f32 %v4457, 0.0
  %v4714 = vmax.f32 %v4458, 0.0
  %v4715 = vmax.f32 %v4459, 0.0
  %4716 = vst.msk [vmem:[%s5] sm:$0xff] %vm2382, %v4460
  %4717 = vst.msk [vmem:[%s5 + $0x8] sm:$0xff] %vm2382, %v4461
  %4718 = vst.msk [vmem:[%s5 + $0x10] sm:$0xff] %vm2382, %v4462
  %4719 = vst.msk [vmem:[%s5 + $0x18] sm:$0xff] %vm2382, %v4463
  %4720 = vst.msk [vmem:[%s5 + $0x20] sm:$0xff] %vm2382, %v4464
  %4721 = vst.msk [vmem:[%s5 + $0x28] sm:$0xff] %vm2382, %v4465
  %4722 = vst.msk [vmem:[%s5 + $0x30] sm:$0xff] %vm2382, %v4466
  %4723 = vst.msk [vmem:[%s5 + $0x38] sm:$0xff] %vm2382, %v4467
  %4724 = vst.msk [vmem:[%s5 + $0x40] sm:$0xff] %vm2382, %v4468
  %4725 = vst.msk [vmem:[%s5 + $0x48] sm:$0xff] %vm2382, %v4469
  %4726 = vst.msk [vmem:[%s5 + $0x50] sm:$0xff] %vm2382, %v4470
  %4727 = vst.msk [vmem:[%s5 + $0x58] sm:$0xff] %vm2382, %v4471
  %4728 = vst.msk [vmem:[%s5 + $0x60] sm:$0xff] %vm2382, %v4472
  %4729 = vst.msk [vmem:[%s5 + $0x68] sm:$0xff] %vm2382, %v4473
  %4730 = vst.msk [vmem:[%s5 + $0x70] sm:$0xff] %vm2382, %v4474
  %4731 = vst.msk [vmem:[%s5 + $0x78] sm:$0xff] %vm2382, %v4475
  %4732 = vst.msk [vmem:[%s5 + $0x80] sm:$0xff] %vm2382, %v4476
  %4733 = vst.msk [vmem:[%s5 + $0x88] sm:$0xff] %vm2382, %v4477
  %4734 = vst.msk [vmem:[%s5 + $0x90] sm:$0xff] %vm2382, %v4478
  %4735 = vst.msk [vmem:[%s5 + $0x98] sm:$0xff] %vm2382, %v4479
  %4736 = vst.msk [vmem:[%s5 + $0xa0] sm:$0xff] %vm2382, %v4480
  %4737 = vst.msk [vmem:[%s5 + $0xa8] sm:$0xff] %vm2382, %v4481
  %4738 = vst.msk [vmem:[%s5 + $0xb0] sm:$0xff] %vm2382, %v4482
  %4739 = vst.msk [vmem:[%s5 + $0xb8] sm:$0xff] %vm2382, %v4483
  %4740 = vst.msk [vmem:[%s5 + $0xc0] sm:$0xff] %vm2382, %v4484
  %4741 = vst.msk [vmem:[%s5 + $0xc8] sm:$0xff] %vm2382, %v4485
  %4742 = vst.msk [vmem:[%s5 + $0xd0] sm:$0xff] %vm2382, %v4486
  %4743 = vst.msk [vmem:[%s5 + $0xd8] sm:$0xff] %vm2382, %v4487
  %4744 = vst.msk [vmem:[%s5 + $0xe0] sm:$0xff] %vm2382, %v4488
  %4745 = vst.msk [vmem:[%s5 + $0xe8] sm:$0xff] %vm2382, %v4489
  %4746 = vst.msk [vmem:[%s5 + $0xf0] sm:$0xff] %vm2382, %v4490
  %4747 = vst.msk [vmem:[%s5 + $0xf8] sm:$0xff] %vm2382, %v4491
  %4748 = vst.msk [vmem:[%s5 + $0x100] sm:$0xff] %vm2382, %v4492
  %4749 = vst.msk [vmem:[%s5 + $0x108] sm:$0xff] %vm2382, %v4493
  %4750 = vst.msk [vmem:[%s5 + $0x110] sm:$0xff] %vm2382, %v4494
  %4751 = vst.msk [vmem:[%s5 + $0x118] sm:$0xff] %vm2382, %v4495
  %4752 = vst.msk [vmem:[%s5 + $0x120] sm:$0xff] %vm2382, %v4496
  %4753 = vst.msk [vmem:[%s5 + $0x128] sm:$0xff] %vm2382, %v4497
  %4754 = vst.msk [vmem:[%s5 + $0x130] sm:$0xff] %vm2382, %v4498
  %4755 = vst.msk [vmem:[%s5 + $0x138] sm:$0xff] %vm2382, %v4499
  %4756 = vst.msk [vmem:[%s5 + $0x140] sm:$0xff] %vm2382, %v4500
  %4757 = vst.msk [vmem:[%s5 + $0x148] sm:$0xff] %vm2382, %v4501
  %4758 = vst.msk [vmem:[%s5 + $0x150] sm:$0xff] %vm2382, %v4502
  %4759 = vst.msk [vmem:[%s5 + $0x158] sm:$0xff] %vm2382, %v4503
  %4760 = vst.msk [vmem:[%s5 + $0x160] sm:$0xff] %vm2382, %v4504
  %4761 = vst.msk [vmem:[%s5 + $0x168] sm:$0xff] %vm2382, %v4505
  %4762 = vst.msk [vmem:[%s5 + $0x170] sm:$0xff] %vm2382, %v4506
  %4763 = vst.msk [vmem:[%s5 + $0x178] sm:$0xff] %vm2382, %v4507
  %4764 = vst.msk [vmem:[%s5 + $0x180] sm:$0xff] %vm2382, %v4508
  %4765 = vst.msk [vmem:[%s5 + $0x188] sm:$0xff] %vm2382, %v4509
  %4766 = vst.msk [vmem:[%s5 + $0x190] sm:$0xff] %vm2382, %v4510
  %4767 = vst.msk [vmem:[%s5 + $0x198] sm:$0xff] %vm2382, %v4511
  %4768 = vst.msk [vmem:[%s5 + $0x1a0] sm:$0xff] %vm2382, %v4512
  %4769 = vst.msk [vmem:[%s5 + $0x1a8] sm:$0xff] %vm2382, %v4513
  %4770 = vst.msk [vmem:[%s5 + $0x1b0] sm:$0xff] %vm2382, %v4514
  %4771 = vst.msk [vmem:[%s5 + $0x1b8] sm:$0xff] %vm2382, %v4515
  %4772 = vst.msk [vmem:[%s5 + $0x1c0] sm:$0xff] %vm2382, %v4516
  %4773 = vst.msk [vmem:[%s5 + $0x1c8] sm:$0xff] %vm2382, %v4517
  %4774 = vst.msk [vmem:[%s5 + $0x1d0] sm:$0xff] %vm2382, %v4518
  %4775 = vst.msk [vmem:[%s5 + $0x1d8] sm:$0xff] %vm2382, %v4519
  %4776 = vst.msk [vmem:[%s5 + $0x1e0] sm:$0xff] %vm2382, %v4520
  %4777 = vst.msk [vmem:[%s5 + $0x1e8] sm:$0xff] %vm2382, %v4521
  %4778 = vst.msk [vmem:[%s5 + $0x1f0] sm:$0xff] %vm2382, %v4522
  %4779 = vst.msk [vmem:[%s5 + $0x1f8] sm:$0xff] %vm2382, %v4523
  %4780 = vst.msk [vmem:[%s5 + $0x200] sm:$0xff] %vm2382, %v4524
  %4781 = vst.msk [vmem:[%s5 + $0x208] sm:$0xff] %vm2382, %v4525
  %4782 = vst.msk [vmem:[%s5 + $0x210] sm:$0xff] %vm2382, %v4526
  %4783 = vst.msk [vmem:[%s5 + $0x218] sm:$0xff] %vm2382, %v4527
  %4784 = vst.msk [vmem:[%s5 + $0x220] sm:$0xff] %vm2382, %v4528
  %4785 = vst.msk [vmem:[%s5 + $0x228] sm:$0xff] %vm2382, %v4529
  %4786 = vst.msk [vmem:[%s5 + $0x230] sm:$0xff] %vm2382, %v4530
  %4787 = vst.msk [vmem:[%s5 + $0x238] sm:$0xff] %vm2382, %v4531
  %4788 = vst.msk [vmem:[%s5 + $0x240] sm:$0xff] %vm2382, %v4532
  %4789 = vst.msk [vmem:[%s5 + $0x248] sm:$0xff] %vm2382, %v4533
  %4790 = vst.msk [vmem:[%s5 + $0x250] sm:$0xff] %vm2382, %v4534
  %4791 = vst.msk [vmem:[%s5 + $0x258] sm:$0xff] %vm2382, %v4535
  %4792 = vst.msk [vmem:[%s5 + $0x260] sm:$0xff] %vm2382, %v4536
  %4793 = vst.msk [vmem:[%s5 + $0x268] sm:$0xff] %vm2382, %v4537
  %4794 = vst.msk [vmem:[%s5 + $0x270] sm:$0xff] %vm2382, %v4538
  %4795 = vst.msk [vmem:[%s5 + $0x278] sm:$0xff] %vm2382, %v4539
  %4796 = vst.msk [vmem:[%s5 + $0x280] sm:$0xff] %vm2382, %v4540
  %4797 = vst.msk [vmem:[%s5 + $0x288] sm:$0xff] %vm2382, %v4541
  %4798 = vst.msk [vmem:[%s5 + $0x290] sm:$0xff] %vm2382, %v4542
  %4799 = vst.msk [vmem:[%s5 + $0x298] sm:$0xff] %vm2382, %v4543
  %4800 = vst.msk [vmem:[%s5 + $0x2a0] sm:$0xff] %vm2382, %v4544
  %4801 = vst.msk [vmem:[%s5 + $0x2a8] sm:$0xff] %vm2382, %v4545
  %4802 = vst.msk [vmem:[%s5 + $0x2b0] sm:$0xff] %vm2382, %v4546
  %4803 = vst.msk [vmem:[%s5 + $0x2b8] sm:$0xff] %vm2382, %v4547
  %4804 = vst.msk [vmem:[%s5 + $0x2c0] sm:$0xff] %vm2382, %v4548
  %4805 = vst.msk [vmem:[%s5 + $0x2c8] sm:$0xff] %vm2382, %v4549
  %4806 = vst.msk [vmem:[%s5 + $0x2d0] sm:$0xff] %vm2382, %v4550
  %4807 = vst.msk [vmem:[%s5 + $0x2d8] sm:$0xff] %vm2382, %v4551
  %4808 = vst.msk [vmem:[%s5 + $0x2e0] sm:$0xff] %vm2382, %v4552
  %4809 = vst.msk [vmem:[%s5 + $0x2e8] sm:$0xff] %vm2382, %v4553
  %4810 = vst.msk [vmem:[%s5 + $0x2f0] sm:$0xff] %vm2382, %v4554
  %4811 = vst.msk [vmem:[%s5 + $0x2f8] sm:$0xff] %vm2382, %v4555
  %4812 = vst.msk [vmem:[%s5 + $0x300] sm:$0xff] %vm2382, %v4556
  %4813 = vst.msk [vmem:[%s5 + $0x308] sm:$0xff] %vm2382, %v4557
  %4814 = vst.msk [vmem:[%s5 + $0x310] sm:$0xff] %vm2382, %v4558
  %4815 = vst.msk [vmem:[%s5 + $0x318] sm:$0xff] %vm2382, %v4559
  %4816 = vst.msk [vmem:[%s5 + $0x320] sm:$0xff] %vm2382, %v4560
  %4817 = vst.msk [vmem:[%s5 + $0x328] sm:$0xff] %vm2382, %v4561
  %4818 = vst.msk [vmem:[%s5 + $0x330] sm:$0xff] %vm2382, %v4562
  %4819 = vst.msk [vmem:[%s5 + $0x338] sm:$0xff] %vm2382, %v4563
  %4820 = vst.msk [vmem:[%s5 + $0x340] sm:$0xff] %vm2382, %v4564
  %4821 = vst.msk [vmem:[%s5 + $0x348] sm:$0xff] %vm2382, %v4565
  %4822 = vst.msk [vmem:[%s5 + $0x350] sm:$0xff] %vm2382, %v4566
  %4823 = vst.msk [vmem:[%s5 + $0x358] sm:$0xff] %vm2382, %v4567
  %4824 = vst.msk [vmem:[%s5 + $0x360] sm:$0xff] %vm2382, %v4568
  %4825 = vst.msk [vmem:[%s5 + $0x368] sm:$0xff] %vm2382, %v4569
  %4826 = vst.msk [vmem:[%s5 + $0x370] sm:$0xff] %vm2382, %v4570
  %4827 = vst.msk [vmem:[%s5 + $0x378] sm:$0xff] %vm2382, %v4571
  %4828 = vst.msk [vmem:[%s5 + $0x380] sm:$0xff] %vm2382, %v4572
  %4829 = vst.msk [vmem:[%s5 + $0x388] sm:$0xff] %vm2382, %v4573
  %4830 = vst.msk [vmem:[%s5 + $0x390] sm:$0xff] %vm2382, %v4574
  %4831 = vst.msk [vmem:[%s5 + $0x398] sm:$0xff] %vm2382, %v4575
  %4832 = vst.msk [vmem:[%s5 + $0x3a0] sm:$0xff] %vm2382, %v4576
  %4833 = vst.msk [vmem:[%s5 + $0x3a8] sm:$0xff] %vm2382, %v4577
  %4834 = vst.msk [vmem:[%s5 + $0x3b0] sm:$0xff] %vm2382, %v4578
  %4835 = vst.msk [vmem:[%s5 + $0x3b8] sm:$0xff] %vm2382, %v4579
  %4836 = vst.msk [vmem:[%s5 + $0x3c0] sm:$0xff] %vm2382, %v4580
  %4837 = vst.msk [vmem:[%s5 + $0x3c8] sm:$0xff] %vm2382, %v4581
  %4838 = vst.msk [vmem:[%s5 + $0x3d0] sm:$0xff] %vm2382, %v4582
  %4839 = vst.msk [vmem:[%s5 + $0x3d8] sm:$0xff] %vm2382, %v4583
  %4840 = vst.msk [vmem:[%s5 + $0x3e0] sm:$0xff] %vm2382, %v4584
  %4841 = vst.msk [vmem:[%s5 + $0x3e8] sm:$0xff] %vm2382, %v4585
  %4842 = vst.msk [vmem:[%s5 + $0x3f0] sm:$0xff] %vm2382, %v4586
  %4843 = vst.msk [vmem:[%s5 + $0x3f8] sm:$0xff] %vm2382, %v4587
  %4844 = vst.msk [vmem:[%s5 + $0x400] sm:$0xff] %vm2382, %v4588
  %4845 = vst.msk [vmem:[%s5 + $0x408] sm:$0xff] %vm2382, %v4589
  %4846 = vst.msk [vmem:[%s5 + $0x410] sm:$0xff] %vm2382, %v4590
  %4847 = vst.msk [vmem:[%s5 + $0x418] sm:$0xff] %vm2382, %v4591
  %4848 = vst.msk [vmem:[%s5 + $0x420] sm:$0xff] %vm2382, %v4592
  %4849 = vst.msk [vmem:[%s5 + $0x428] sm:$0xff] %vm2382, %v4593
  %4850 = vst.msk [vmem:[%s5 + $0x430] sm:$0xff] %vm2382, %v4594
  %4851 = vst.msk [vmem:[%s5 + $0x438] sm:$0xff] %vm2382, %v4595
  %4852 = vst.msk [vmem:[%s5 + $0x440] sm:$0xff] %vm2382, %v4596
  %4853 = vst.msk [vmem:[%s5 + $0x448] sm:$0xff] %vm2382, %v4597
  %4854 = vst.msk [vmem:[%s5 + $0x450] sm:$0xff] %vm2382, %v4598
  %4855 = vst.msk [vmem:[%s5 + $0x458] sm:$0xff] %vm2382, %v4599
  %4856 = vst.msk [vmem:[%s5 + $0x460] sm:$0xff] %vm2382, %v4600
  %4857 = vst.msk [vmem:[%s5 + $0x468] sm:$0xff] %vm2382, %v4601
  %4858 = vst.msk [vmem:[%s5 + $0x470] sm:$0xff] %vm2382, %v4602
  %4859 = vst.msk [vmem:[%s5 + $0x478] sm:$0xff] %vm2382, %v4603
  %4860 = vst.msk [vmem:[%s5 + $0x480] sm:$0xff] %vm2382, %v4604
  %4861 = vst.msk [vmem:[%s5 + $0x488] sm:$0xff] %vm2382, %v4605
  %4862 = vst.msk [vmem:[%s5 + $0x490] sm:$0xff] %vm2382, %v4606
  %4863 = vst.msk [vmem:[%s5 + $0x498] sm:$0xff] %vm2382, %v4607
  %4864 = vst.msk [vmem:[%s5 + $0x4a0] sm:$0xff] %vm2382, %v4608
  %4865 = vst.msk [vmem:[%s5 + $0x4a8] sm:$0xff] %vm2382, %v4609
  %4866 = vst.msk [vmem:[%s5 + $0x4b0] sm:$0xff] %vm2382, %v4610
  %4867 = vst.msk [vmem:[%s5 + $0x4b8] sm:$0xff] %vm2382, %v4611
  %4868 = vst.msk [vmem:[%s5 + $0x4c0] sm:$0xff] %vm2382, %v4612
  %4869 = vst.msk [vmem:[%s5 + $0x4c8] sm:$0xff] %vm2382, %v4613
  %4870 = vst.msk [vmem:[%s5 + $0x4d0] sm:$0xff] %vm2382, %v4614
  %4871 = vst.msk [vmem:[%s5 + $0x4d8] sm:$0xff] %vm2382, %v4615
  %4872 = vst.msk [vmem:[%s5 + $0x4e0] sm:$0xff] %vm2382, %v4616
  %4873 = vst.msk [vmem:[%s5 + $0x4e8] sm:$0xff] %vm2382, %v4617
  %4874 = vst.msk [vmem:[%s5 + $0x4f0] sm:$0xff] %vm2382, %v4618
  %4875 = vst.msk [vmem:[%s5 + $0x4f8] sm:$0xff] %vm2382, %v4619
  %4876 = vst.msk [vmem:[%s5 + $0x500] sm:$0xff] %vm2382, %v4620
  %4877 = vst.msk [vmem:[%s5 + $0x508] sm:$0xff] %vm2382, %v4621
  %4878 = vst.msk [vmem:[%s5 + $0x510] sm:$0xff] %vm2382, %v4622
  %4879 = vst.msk [vmem:[%s5 + $0x518] sm:$0xff] %vm2382, %v4623
  %4880 = vst.msk [vmem:[%s5 + $0x520] sm:$0xff] %vm2382, %v4624
  %4881 = vst.msk [vmem:[%s5 + $0x528] sm:$0xff] %vm2382, %v4625
  %4882 = vst.msk [vmem:[%s5 + $0x530] sm:$0xff] %vm2382, %v4626
  %4883 = vst.msk [vmem:[%s5 + $0x538] sm:$0xff] %vm2382, %v4627
  %4884 = vst.msk [vmem:[%s5 + $0x540] sm:$0xff] %vm2382, %v4628
  %4885 = vst.msk [vmem:[%s5 + $0x548] sm:$0xff] %vm2382, %v4629
  %4886 = vst.msk [vmem:[%s5 + $0x550] sm:$0xff] %vm2382, %v4630
  %4887 = vst.msk [vmem:[%s5 + $0x558] sm:$0xff] %vm2382, %v4631
  %4888 = vst.msk [vmem:[%s5 + $0x560] sm:$0xff] %vm2382, %v4632
  %4889 = vst.msk [vmem:[%s5 + $0x568] sm:$0xff] %vm2382, %v4633
  %4890 = vst.msk [vmem:[%s5 + $0x570] sm:$0xff] %vm2382, %v4634
  %4891 = vst.msk [vmem:[%s5 + $0x578] sm:$0xff] %vm2382, %v4635
  %4892 = vst.msk [vmem:[%s5 + $0x580] sm:$0xff] %vm2382, %v4636
  %4893 = vst.msk [vmem:[%s5 + $0x588] sm:$0xff] %vm2382, %v4637
  %4894 = vst.msk [vmem:[%s5 + $0x590] sm:$0xff] %vm2382, %v4638
  %4895 = vst.msk [vmem:[%s5 + $0x598] sm:$0xff] %vm2382, %v4639
  %4896 = vst.msk [vmem:[%s5 + $0x5a0] sm:$0xff] %vm2382, %v4640
  %4897 = vst.msk [vmem:[%s5 + $0x5a8] sm:$0xff] %vm2382, %v4641
  %4898 = vst.msk [vmem:[%s5 + $0x5b0] sm:$0xff] %vm2382, %v4642
  %4899 = vst.msk [vmem:[%s5 + $0x5b8] sm:$0xff] %vm2382, %v4643
  %4900 = vst.msk [vmem:[%s5 + $0x5c0] sm:$0xff] %vm2382, %v4644
  %4901 = vst.msk [vmem:[%s5 + $0x5c8] sm:$0xff] %vm2382, %v4645
  %4902 = vst.msk [vmem:[%s5 + $0x5d0] sm:$0xff] %vm2382, %v4646
  %4903 = vst.msk [vmem:[%s5 + $0x5d8] sm:$0xff] %vm2382, %v4647
  %4904 = vst.msk [vmem:[%s5 + $0x5e0] sm:$0xff] %vm2382, %v4648
  %4905 = vst.msk [vmem:[%s5 + $0x5e8] sm:$0xff] %vm2382, %v4649
  %4906 = vst.msk [vmem:[%s5 + $0x5f0] sm:$0xff] %vm2382, %v4650
  %4907 = vst.msk [vmem:[%s5 + $0x5f8] sm:$0xff] %vm2382, %v4651
  %4908 = vst.msk [vmem:[%s5 + $0x600] sm:$0xff] %vm2382, %v4652
  %4909 = vst.msk [vmem:[%s5 + $0x608] sm:$0xff] %vm2382, %v4653
  %4910 = vst.msk [vmem:[%s5 + $0x610] sm:$0xff] %vm2382, %v4654
  %4911 = vst.msk [vmem:[%s5 + $0x618] sm:$0xff] %vm2382, %v4655
  %4912 = vst.msk [vmem:[%s5 + $0x620] sm:$0xff] %vm2382, %v4656
  %4913 = vst.msk [vmem:[%s5 + $0x628] sm:$0xff] %vm2382, %v4657
  %4914 = vst.msk [vmem:[%s5 + $0x630] sm:$0xff] %vm2382, %v4658
  %4915 = vst.msk [vmem:[%s5 + $0x638] sm:$0xff] %vm2382, %v4659
  %4916 = vst.msk [vmem:[%s5 + $0x640] sm:$0xff] %vm2382, %v4660
  %4917 = vst.msk [vmem:[%s5 + $0x648] sm:$0xff] %vm2382, %v4661
  %4918 = vst.msk [vmem:[%s5 + $0x650] sm:$0xff] %vm2382, %v4662
  %4919 = vst.msk [vmem:[%s5 + $0x658] sm:$0xff] %vm2382, %v4663
  %4920 = vst.msk [vmem:[%s5 + $0x660] sm:$0xff] %vm2382, %v4664
  %4921 = vst.msk [vmem:[%s5 + $0x668] sm:$0xff] %vm2382, %v4665
  %4922 = vst.msk [vmem:[%s5 + $0x670] sm:$0xff] %vm2382, %v4666
  %4923 = vst.msk [vmem:[%s5 + $0x678] sm:$0xff] %vm2382, %v4667
  %4924 = vst.msk [vmem:[%s5 + $0x680] sm:$0xff] %vm2382, %v4668
  %4925 = vst.msk [vmem:[%s5 + $0x688] sm:$0xff] %vm2382, %v4669
  %4926 = vst.msk [vmem:[%s5 + $0x690] sm:$0xff] %vm2382, %v4670
  %4927 = vst.msk [vmem:[%s5 + $0x698] sm:$0xff] %vm2382, %v4671
  %4928 = vst.msk [vmem:[%s5 + $0x6a0] sm:$0xff] %vm2382, %v4672
  %4929 = vst.msk [vmem:[%s5 + $0x6a8] sm:$0xff] %vm2382, %v4673
  %4930 = vst.msk [vmem:[%s5 + $0x6b0] sm:$0xff] %vm2382, %v4674
  %4931 = vst.msk [vmem:[%s5 + $0x6b8] sm:$0xff] %vm2382, %v4675
  %4932 = vst.msk [vmem:[%s5 + $0x6c0] sm:$0xff] %vm2382, %v4676
  %4933 = vst.msk [vmem:[%s5 + $0x6c8] sm:$0xff] %vm2382, %v4677
  %4934 = vst.msk [vmem:[%s5 + $0x6d0] sm:$0xff] %vm2382, %v4678
  %4935 = vst.msk [vmem:[%s5 + $0x6d8] sm:$0xff] %vm2382, %v4679
  %4936 = vst.msk [vmem:[%s5 + $0x6e0] sm:$0xff] %vm2382, %v4680
  %4937 = vst.msk [vmem:[%s5 + $0x6e8] sm:$0xff] %vm2382, %v4681
  %4938 = vst.msk [vmem:[%s5 + $0x6f0] sm:$0xff] %vm2382, %v4682
  %4939 = vst.msk [vmem:[%s5 + $0x6f8] sm:$0xff] %vm2382, %v4683
  %4940 = vst.msk [vmem:[%s5 + $0x700] sm:$0xff] %vm2382, %v4684
  %4941 = vst.msk [vmem:[%s5 + $0x708] sm:$0xff] %vm2382, %v4685
  %4942 = vst.msk [vmem:[%s5 + $0x710] sm:$0xff] %vm2382, %v4686
  %4943 = vst.msk [vmem:[%s5 + $0x718] sm:$0xff] %vm2382, %v4687
  %4944 = vst.msk [vmem:[%s5 + $0x720] sm:$0xff] %vm2382, %v4688
  %4945 = vst.msk [vmem:[%s5 + $0x728] sm:$0xff] %vm2382, %v4689
  %4946 = vst.msk [vmem:[%s5 + $0x730] sm:$0xff] %vm2382, %v4690
  %4947 = vst.msk [vmem:[%s5 + $0x738] sm:$0xff] %vm2382, %v4691
  %4948 = vst.msk [vmem:[%s5 + $0x740] sm:$0xff] %vm2382, %v4692
  %4949 = vst.msk [vmem:[%s5 + $0x748] sm:$0xff] %vm2382, %v4693
  %4950 = vst.msk [vmem:[%s5 + $0x750] sm:$0xff] %vm2382, %v4694
  %4951 = vst.msk [vmem:[%s5 + $0x758] sm:$0xff] %vm2382, %v4695
  %4952 = vst.msk [vmem:[%s5 + $0x760] sm:$0xff] %vm2382, %v4696
  %4953 = vst.msk [vmem:[%s5 + $0x768] sm:$0xff] %vm2382, %v4697
  %4954 = vst.msk [vmem:[%s5 + $0x770] sm:$0xff] %vm2382, %v4698
  %4955 = vst.msk [vmem:[%s5 + $0x778] sm:$0xff] %vm2382, %v4699
  %4956 = vst.msk [vmem:[%s5 + $0x780] sm:$0xff] %vm2382, %v4700
  %4957 = vst.msk [vmem:[%s5 + $0x788] sm:$0xff] %vm2382, %v4701
  %4958 = vst.msk [vmem:[%s5 + $0x790] sm:$0xff] %vm2382, %v4702
  %4959 = vst.msk [vmem:[%s5 + $0x798] sm:$0xff] %vm2382, %v4703
  %4960 = vst.msk [vmem:[%s5 + $0x7a0] sm:$0xff] %vm2382, %v4704
  %4961 = vst.msk [vmem:[%s5 + $0x7a8] sm:$0xff] %vm2382, %v4705
  %4962 = vst.msk [vmem:[%s5 + $0x7b0] sm:$0xff] %vm2382, %v4706
  %4963 = vst.msk [vmem:[%s5 + $0x7b8] sm:$0xff] %vm2382, %v4707
  %4964 = vst.msk [vmem:[%s5 + $0x7c0] sm:$0xff] %vm2382, %v4708
  %4965 = vst.msk [vmem:[%s5 + $0x7c8] sm:$0xff] %vm2382, %v4709
  %4966 = vst.msk [vmem:[%s5 + $0x7d0] sm:$0xff] %vm2382, %v4710
  %4967 = vst.msk [vmem:[%s5 + $0x7d8] sm:$0xff] %vm2382, %v4711
  %4968 = vst.msk [vmem:[%s5 + $0x7e0] sm:$0xff] %vm2382, %v4712
  %4969 = vst.msk [vmem:[%s5 + $0x7e8] sm:$0xff] %vm2382, %v4713
  %4970 = vst.msk [vmem:[%s5 + $0x7f0] sm:$0xff] %vm2382, %v4714
  %4971 = vst.msk [vmem:[%s5 + $0x7f8] sm:$0xff] %vm2382, %v4715
  // Predicated region
  $region22: #{up_forward.1} parent=0 // pred_check
    _
  $region23: #{up_forward.1} parent=0 // pred_check_branch
    %4973 = sbr.rel (0) target = $region25
  $region24: #{up_forward.1} parent=0 // pred_region
    _
  $region25: #{up_forward.1} parent=0 // pred_fallthru
    _
  // Predicated region
  $region26: #{up_forward.1} parent=0 // pred_check
    _
  $region27: #{up_forward.1} parent=0 // pred_check_branch
    %4975 = sbr.rel (0) target = $region29
  $region28: #{up_forward.1} parent=0 // pred_region
    _
  $region29: #{up_forward.1} parent=0 // pred_fallthru
    _

</llo_original>
